<compile_context>
chip_gen: v6e
topology: v6e:2x2x1
jax: 0.10.0
libtpu: 0.0.40
codegen_flags: <defaults>
</compile_context>

<pallas_src>
import functools

import jax
import jax.numpy as jnp
from jax.experimental import pallas as pl
from jax.experimental.pallas import tpu as pltpu

_HP = 128  # lane-aligned padded hidden size (assumes hidden_size <= 128)


def _lstm_groups_head_kernel(x_ref, len_ref, gs_ref, wih_ref, whh_ref, b_ref,
                             w1_ref, b1_ref, w2_ref, b2_ref, out_ref,
                             xproj_ref):
    TB, _ = x_ref.shape              # (T*Bp, Dp) time-major, batch padded
    Bp = len_ref.shape[0]
    Hp = whh_ref.shape[0]            # padded hidden size (128)
    T = TB // Bp

    # ---- hoisted input projection, staged into VMEM scratch -----------------
    # One (T*Bp, Dp) x (Dp, 4*Hp) matmul; storing to scratch keeps the 96 KB
    # result out of the vreg file across the serial time loop.
    xproj_ref[...] = (jnp.dot(x_ref[...], wih_ref[...],
                              preferred_element_type=jnp.float32)
                      + b_ref[...])                       # gate order (i,f,g,o)

    lengths = len_ref[...]                                # (Bp, 1) int32
    h0 = jnp.zeros((Bp, Hp), jnp.float32)
    c0 = jnp.zeros((Bp, Hp), jnp.float32)

    def step(t, carry):
        h, c = carry
        start = pl.multiple_of(t * Bp, Bp)
        slab = xproj_ref[pl.ds(start, Bp), :]             # (Bp, 4*Hp), 4 vregs

        # Per-gate (Bp,Hp)x(Hp,Hp) dots; W_hh gate slices are read from VMEM at
        # the dot (never held live across the loop).
        def gate_pre(g):
            return slab[:, g * Hp:(g + 1) * Hp] + jnp.dot(
                h, whh_ref[:, g * Hp:(g + 1) * Hp],
                preferred_element_type=jnp.float32)

        i_g = jax.nn.sigmoid(gate_pre(0))
        f_g = jax.nn.sigmoid(gate_pre(1))
        g_g = jnp.tanh(gate_pre(2))
        o_g = jax.nn.sigmoid(gate_pre(3))
        c_new = f_g * c + i_g * g_g
        h_new = o_g * jnp.tanh(c_new)
        # pack_padded_sequence semantics: state frozen once t >= length[b]
        valid = t < lengths                               # (Bp, 1) bool
        return (jnp.where(valid, h_new, h), jnp.where(valid, c_new, c))

    h, _ = jax.lax.fori_loop(0, T, step, (h0, c0), unroll=True)

    # ---- strictly linear head with group-size weighted batch-sum folded in --
    gs = gs_ref[...]                                      # (1, Bp)
    gsum = jnp.sum(gs)
    hg = jnp.dot(gs, h, preferred_element_type=jnp.float32)          # (1, Hp)
    z1 = (jnp.dot(hg, w1_ref[...], preferred_element_type=jnp.float32)
          + gsum * b1_ref[...])                                       # (1, F1p)
    out_ref[...] = (jnp.dot(z1, w2_ref[...], preferred_element_type=jnp.float32)
                    + gsum * b2_ref[...])                             # (1, 1)


def prepare_params(params, hp=_HP):
    """One-time weight preprocessing. Call ONCE and reuse across forward calls
    (this is the dominant per-call overhead if re-done every call)."""
    H = params["w_hh"].shape[1]       # logical hidden size (100)
    D = params["w_ih"].shape[1]
    Dp = ((D + 7) // 8) * 8           # sublane-aligned input dim
    F1 = params["w1"].shape[0]        # 50
    F1p = 128                         # lane-aligned head width

    def pad_gates(w):                 # (4H, ...) -> (4*hp, ...), order i,f,g,o
        blocks = jnp.split(w, 4, axis=0)
        pad_cfg = ((0, hp - H),) + ((0, 0),) * (w.ndim - 1)
        return jnp.concatenate([jnp.pad(b, pad_cfg) for b in blocks], axis=0)

    w_ih = pad_gates(params["w_ih"].astype(jnp.float32))              # (4hp, D)
    w_ih_t = jnp.pad(w_ih, ((0, 0), (0, Dp - D))).T                   # (Dp, 4hp)
    w_hh = pad_gates(params["w_hh"].astype(jnp.float32))              # (4hp, H)
    w_hh_t = jnp.pad(w_hh, ((0, 0), (0, hp - H))).T                   # (hp, 4hp)
    b_gate = pad_gates((params["b_ih"] + params["b_hh"])
                       .astype(jnp.float32)).reshape(1, -1)           # (1, 4hp)

    w1 = jnp.pad(params["w1"].astype(jnp.float32),
                 ((0, F1p - F1), (0, hp - H)))                        # (F1p, hp)
    w1_t = w1.T                                                       # (hp, F1p)
    b1 = jnp.pad(params["b1"].astype(jnp.float32),
                 (0, F1p - F1)).reshape(1, -1)                        # (1, F1p)
    w2_t = jnp.pad(params["w2"].astype(jnp.float32),
                   ((0, 0), (0, F1p - F1))).T                         # (F1p, 1)
    b2 = params["b2"].astype(jnp.float32).reshape(1, -1)              # (1, 1)

    return {"w_ih_t": w_ih_t, "w_hh_t": w_hh_t, "b_gate": b_gate,
            "w1_t": w1_t, "b1": b1, "w2_t": w2_t, "b2": b2}


@jax.jit
def yield_groups_rnn_forward(inputs, input_lengths, group_sizes, prepared):
    """inputs: (B, T, D) float32 batch-first (PyTorch convention);
       input_lengths: (B,) int; group_sizes: (B,) float;
       prepared: output of prepare_params();  returns scalar."""
    B, T, D = inputs.shape
    Dp = prepared["w_ih_t"].shape[0]
    Hp = prepared["w_hh_t"].shape[0]
    Bp = max(8, ((B + 7) // 8) * 8)   # sublane-aligned padded batch

    # ---- per-call activation layout: time-major, batch/input-dim padded -----
    x = jnp.transpose(inputs.astype(jnp.float32), (1, 0, 2))          # (T, B, D)
    x = jnp.pad(x, ((0, 0), (0, Bp - B), (0, Dp - D)))                # (T, Bp, Dp)
    x = x.reshape(T * Bp, Dp)
    lens = jnp.pad(input_lengths.astype(jnp.int32),
                   (0, Bp - B)).reshape(Bp, 1)                        # pads -> len 0
    gs = jnp.pad(group_sizes.astype(jnp.float32),
                 (0, Bp - B)).reshape(1, Bp)                          # pads -> weight 0

    flops = (2 * T * Bp * Dp * 4 * Hp          # input projection
             + 2 * T * Bp * Hp * 4 * Hp        # recurrence
             + 2 * Bp * Hp + 2 * Hp * 128 + 2 * 128)   # head
    transcendentals = T * Bp * 5 * Hp          # 4 gate nonlinearities + tanh(c)
    bytes_accessed = 4 * (x.size + lens.size + gs.size + 1 + sum(
        prepared[k].size for k in ("w_ih_t", "w_hh_t", "b_gate",
                                   "w1_t", "b1", "w2_t", "b2")))

    vmem = pl.BlockSpec(memory_space=pltpu.MemorySpace.VMEM)
    out = pl.pallas_call(
        _lstm_groups_head_kernel,
        out_shape=jax.ShapeDtypeStruct((1, 1), jnp.float32),
        in_specs=[vmem] * 10,
        out_specs=vmem,
        scratch_shapes=[pltpu.VMEM((T * Bp, 4 * Hp), jnp.float32)],
        cost_estimate=pl.CostEstimate(flops=flops,
                                      transcendentals=transcendentals,
                                      bytes_accessed=bytes_accessed),
    )(x, lens, gs, prepared["w_ih_t"], prepared["w_hh_t"], prepared["b_gate"],
      prepared["w1_t"], prepared["b1"], prepared["w2_t"], prepared["b2"])
    return out[0, 0]


def make_params(key, input_dim, hidden_size=100):
    ks = jax.random.split(key, 8)
    s = 1.0 / jnp.sqrt(hidden_size)
    u = lambda k, shape: jax.random.uniform(k, shape, jnp.float32, -s, s)
    return {
        "w_ih": u(ks[0], (4 * hidden_size, input_dim)),
        "w_hh": u(ks[1], (4 * hidden_size, hidden_size)),
        "b_ih": u(ks[2], (4 * hidden_size,)),
        "b_hh": u(ks[3], (4 * hidden_size,)),
        "w1": u(ks[4], (50, hidden_size)),
        "b1": u(ks[5], (50,)),
        "w2": u(ks[6], (1, 50)),
        "b2": u(ks[7], (1,)),
    }


def _reference(inputs, input_lengths, group_sizes, params):
    """Pure-JAX reference mirroring PyTorch packed-LSTM + linear head +
    group-size weighted sum (gate order i, f, g, o; NO activation in head)."""
    B, T, _ = inputs.shape
    H = params["w_hh"].shape[1]
    h = jnp.zeros((B, H), jnp.float32)
    c = jnp.zeros((B, H), jnp.float32)
    b = (params["b_ih"] + params["b_hh"])[None, :]
    for t in range(T):
        g = inputs[:, t, :] @ params["w_ih"].T + h @ params["w_hh"].T + b
        i_g = jax.nn.sigmoid(g[:, 0 * H:1 * H])
        f_g = jax.nn.sigmoid(g[:, 1 * H:2 * H])
        g_g = jnp.tanh(g[:, 2 * H:3 * H])
        o_g = jax.nn.sigmoid(g[:, 3 * H:4 * H])
        c_new = f_g * c + i_g * g_g
        h_new = o_g * jnp.tanh(c_new)
        valid = (t < input_lengths)[:, None]
        h = jnp.where(valid, h_new, h)
        c = jnp.where(valid, c_new, c)
    z1 = h @ params["w1"].T + params["b1"][None, :]
    z2 = z1 @ params["w2"].T + params["b2"][None, :]
    return jnp.sum(z2.reshape(-1) * group_sizes)


if __name__ == "__main__":
    B, T, D, H = 4, 6, 8, 100   # hidden must be 100 (head hardcodes Linear(100,50))
    key = jax.random.PRNGKey(0)
    kx, kg, kp = jax.random.split(key, 3)
    inputs = jax.random.normal(kx, (B, T, D), jnp.float32)
    input_lengths = jnp.array([6, 3, 5, 2], jnp.int32)
    group_sizes = jax.random.uniform(kg, (B,), jnp.float32, 0.5, 3.0)
    params = make_params(kp, D, H)

    prepared = prepare_params(params)          # one-time weight preprocessing
    out = yield_groups_rnn_forward(inputs, input_lengths, group_sizes, prepared)
    out = jax.block_until_ready(out)

    ref = _reference(inputs, input_lengths, group_sizes, params)
    assert jnp.allclose(out, ref, rtol=1e-4, atol=1e-4), (out, ref)
    print("KERNEL_OK")
</pallas_src>

<mosaic_0001>
module attributes {stable_mosaic.version = 11 : i64} {
  func.func @_lstm_groups_head_kernel(%arg0: memref<48x8xf32, #tpu.memory_space<vmem>>, %arg1: memref<8x1xi32, #tpu.memory_space<vmem>>, %arg2: memref<1x8xf32, #tpu.memory_space<vmem>>, %arg3: memref<8x512xf32, #tpu.memory_space<vmem>>, %arg4: memref<128x512xf32, #tpu.memory_space<vmem>>, %arg5: memref<1x512xf32, #tpu.memory_space<vmem>>, %arg6: memref<128x128xf32, #tpu.memory_space<vmem>>, %arg7: memref<1x128xf32, #tpu.memory_space<vmem>>, %arg8: memref<128x1xf32, #tpu.memory_space<vmem>>, %arg9: memref<1x1xf32, #tpu.memory_space<vmem>>, %arg10: memref<1x1xf32, #tpu.memory_space<vmem>>, %arg11: memref<48x512xf32, #tpu.memory_space<vmem>>) attributes {dimension_semantics = [], scalar_prefetch = 0 : i64, scratch_operands = 1 : i64, tpu.core_type = #tpu.core_type<tc>} {
    %c0 = arith.constant 0 : index
    %c0_0 = arith.constant 0 : index
    %0 = vector.load %arg0[%c0, %c0_0] : memref<48x8xf32, #tpu.memory_space<vmem>>, vector<48x8xf32>
    %c0_1 = arith.constant 0 : index
    %c0_2 = arith.constant 0 : index
    %1 = vector.load %arg3[%c0_1, %c0_2] : memref<8x512xf32, #tpu.memory_space<vmem>>, vector<8x512xf32>
    %cst = arith.constant dense<0.000000e+00> : vector<48x512xf32>
    %2 = tpu.matmul %0, %1, %cst {dimension_numbers = #tpu.dot_dimension_numbers<[1], [0], [0], [1], [0, 0, 1, 1], [], []>} : vector<48x8xf32>, vector<8x512xf32>, vector<48x512xf32> -> vector<48x512xf32>
    %c0_3 = arith.constant 0 : index
    %c0_4 = arith.constant 0 : index
    %3 = vector.load %arg5[%c0_3, %c0_4] : memref<1x512xf32, #tpu.memory_space<vmem>>, vector<1x512xf32>
    %4 = vector.broadcast %3 : vector<1x512xf32> to vector<48x512xf32>
    %5 = arith.addf %2, %4 : vector<48x512xf32>
    %c0_5 = arith.constant 0 : index
    %c0_6 = arith.constant 0 : index
    %6 = vector.load %arg11[%c0_5, %c0_6] : memref<48x512xf32, #tpu.memory_space<vmem>>, vector<48x512xf32>
    tpu.vector_store %arg11[%c0_5, %c0_6], %5 {strides = array<i32>} : memref<48x512xf32, #tpu.memory_space<vmem>>, vector<48x512xf32>,
    %c0_7 = arith.constant 0 : index
    %c0_8 = arith.constant 0 : index
    %7 = vector.load %arg1[%c0_7, %c0_8] : memref<8x1xi32, #tpu.memory_space<vmem>>, vector<8x1xi32>
    %cst_9 = arith.constant 0.000000e+00 : f32
    %8 = vector.broadcast %cst_9 : f32 to vector<8x128xf32>
    %cst_10 = arith.constant 0.000000e+00 : f32
    %9 = vector.broadcast %cst_10 : f32 to vector<8x128xf32>
    %c0_i32 = arith.constant 0 : i32
    %c8_i32 = arith.constant 8 : i32
    %10 = arith.muli %c0_i32, %c8_i32 : i32
    %11 = tpu.assume_multiple %10, 8 : i32
    %12 = arith.index_cast %11 : i32 to index
    %c0_11 = arith.constant 0 : index
    %13 = vector.load %arg11[%12, %c0_11] : memref<48x512xf32, #tpu.memory_space<vmem>>, vector<8x512xf32>
    %14 = vector.extract_strided_slice %13 {offsets = [0, 0], sizes = [8, 128], strides = [1, 1]} : vector<8x512xf32> to vector<8x128xf32>
    %c0_12 = arith.constant 0 : index
    %c0_13 = arith.constant 0 : index
    %15 = vector.load %arg4[%c0_12, %c0_13] : memref<128x512xf32, #tpu.memory_space<vmem>>, vector<128x128xf32>
    %cst_14 = arith.constant dense<0.000000e+00> : vector<8x128xf32>
    %16 = tpu.matmul %8, %15, %cst_14 {dimension_numbers = #tpu.dot_dimension_numbers<[1], [0], [0], [1], [0, 0, 1, 1], [], []>} : vector<8x128xf32>, vector<128x128xf32>, vector<8x128xf32> -> vector<8x128xf32>
    %17 = arith.addf %14, %16 : vector<8x128xf32>
    %18 = arith.negf %17 : vector<8x128xf32>
    %19 = math.exp %18 : vector<8x128xf32>
    %cst_15 = arith.constant 1.000000e+00 : f32
    %20 = vector.broadcast %cst_15 : f32 to vector<8x128xf32>
    %21 = arith.addf %20, %19 : vector<8x128xf32>
    %22 = arith.divf %20, %21 : vector<8x128xf32>
    %23 = vector.extract_strided_slice %13 {offsets = [0, 128], sizes = [8, 128], strides = [1, 1]} : vector<8x512xf32> to vector<8x128xf32>
    %c0_16 = arith.constant 0 : index
    %c128 = arith.constant 128 : index
    %24 = vector.load %arg4[%c0_16, %c128] : memref<128x512xf32, #tpu.memory_space<vmem>>, vector<128x128xf32>
    %cst_17 = arith.constant dense<0.000000e+00> : vector<8x128xf32>
    %25 = tpu.matmul %8, %24, %cst_17 {dimension_numbers = #tpu.dot_dimension_numbers<[1], [0], [0], [1], [0, 0, 1, 1], [], []>} : vector<8x128xf32>, vector<128x128xf32>, vector<8x128xf32> -> vector<8x128xf32>
    %26 = arith.addf %23, %25 : vector<8x128xf32>
    %27 = arith.negf %26 : vector<8x128xf32>
    %28 = math.exp %27 : vector<8x128xf32>
    %cst_18 = arith.constant 1.000000e+00 : f32
    %29 = vector.broadcast %cst_18 : f32 to vector<8x128xf32>
    %30 = arith.addf %29, %28 : vector<8x128xf32>
    %31 = arith.divf %29, %30 : vector<8x128xf32>
    %32 = vector.extract_strided_slice %13 {offsets = [0, 256], sizes = [8, 128], strides = [1, 1]} : vector<8x512xf32> to vector<8x128xf32>
    %c0_19 = arith.constant 0 : index
    %c256 = arith.constant 256 : index
    %33 = vector.load %arg4[%c0_19, %c256] : memref<128x512xf32, #tpu.memory_space<vmem>>, vector<128x128xf32>
    %cst_20 = arith.constant dense<0.000000e+00> : vector<8x128xf32>
    %34 = tpu.matmul %8, %33, %cst_20 {dimension_numbers = #tpu.dot_dimension_numbers<[1], [0], [0], [1], [0, 0, 1, 1], [], []>} : vector<8x128xf32>, vector<128x128xf32>, vector<8x128xf32> -> vector<8x128xf32>
    %35 = arith.addf %32, %34 : vector<8x128xf32>
    %36 = math.tanh %35 : vector<8x128xf32>
    %37 = vector.extract_strided_slice %13 {offsets = [0, 384], sizes = [8, 128], strides = [1, 1]} : vector<8x512xf32> to vector<8x128xf32>
    %c0_21 = arith.constant 0 : index
    %c384 = arith.constant 384 : index
    %38 = vector.load %arg4[%c0_21, %c384] : memref<128x512xf32, #tpu.memory_space<vmem>>, vector<128x128xf32>
    %cst_22 = arith.constant dense<0.000000e+00> : vector<8x128xf32>
    %39 = tpu.matmul %8, %38, %cst_22 {dimension_numbers = #tpu.dot_dimension_numbers<[1], [0], [0], [1], [0, 0, 1, 1], [], []>} : vector<8x128xf32>, vector<128x128xf32>, vector<8x128xf32> -> vector<8x128xf32>
    %40 = arith.addf %37, %39 : vector<8x128xf32>
    %41 = arith.negf %40 : vector<8x128xf32>
    %42 = math.exp %41 : vector<8x128xf32>
    %cst_23 = arith.constant 1.000000e+00 : f32
    %43 = vector.broadcast %cst_23 : f32 to vector<8x128xf32>
    %44 = arith.addf %43, %42 : vector<8x128xf32>
    %45 = arith.divf %43, %44 : vector<8x128xf32>
    %46 = arith.mulf %31, %9 : vector<8x128xf32>
    %47 = arith.mulf %22, %36 : vector<8x128xf32>
    %48 = arith.addf %46, %47 : vector<8x128xf32>
    %49 = math.tanh %48 : vector<8x128xf32>
    %50 = arith.mulf %45, %49 : vector<8x128xf32>
    %51 = vector.broadcast %c0_i32 : i32 to vector<8x1xi32>
    %52 = arith.cmpi slt, %51, %7 : vector<8x1xi32>
    %53 = vector.shape_cast %52 : vector<8x1xi1> to vector<8x1xi1>
    %54 = vector.broadcast %53 : vector<8x1xi1> to vector<8x128xi1>
    %55 = arith.select %54, %50, %8 : vector<8x128xi1>, vector<8x128xf32>
    %56 = vector.shape_cast %52 : vector<8x1xi1> to vector<8x1xi1>
    %57 = vector.broadcast %56 : vector<8x1xi1> to vector<8x128xi1>
    %58 = arith.select %57, %48, %9 : vector<8x128xi1>, vector<8x128xf32>
    %c1_i32 = arith.constant 1 : i32
    %c8_i32_24 = arith.constant 8 : i32
    %59 = arith.muli %c1_i32, %c8_i32_24 : i32
    %60 = tpu.assume_multiple %59, 8 : i32
    %61 = arith.index_cast %60 : i32 to index
    %c0_25 = arith.constant 0 : index
    %62 = vector.load %arg11[%61, %c0_25] : memref<48x512xf32, #tpu.memory_space<vmem>>, vector<8x512xf32>
    %63 = vector.extract_strided_slice %62 {offsets = [0, 0], sizes = [8, 128], strides = [1, 1]} : vector<8x512xf32> to vector<8x128xf32>
    %c0_26 = arith.constant 0 : index
    %c0_27 = arith.constant 0 : index
    %64 = vector.load %arg4[%c0_26, %c0_27] : memref<128x512xf32, #tpu.memory_space<vmem>>, vector<128x128xf32>
    %cst_28 = arith.constant dense<0.000000e+00> : vector<8x128xf32>
    %65 = tpu.matmul %55, %64, %cst_28 {dimension_numbers = #tpu.dot_dimension_numbers<[1], [0], [0], [1], [0, 0, 1, 1], [], []>} : vector<8x128xf32>, vector<128x128xf32>, vector<8x128xf32> -> vector<8x128xf32>
    %66 = arith.addf %63, %65 : vector<8x128xf32>
    %67 = arith.negf %66 : vector<8x128xf32>
    %68 = math.exp %67 : vector<8x128xf32>
    %cst_29 = arith.constant 1.000000e+00 : f32
    %69 = vector.broadcast %cst_29 : f32 to vector<8x128xf32>
    %70 = arith.addf %69, %68 : vector<8x128xf32>
    %71 = arith.divf %69, %70 : vector<8x128xf32>
    %72 = vector.extract_strided_slice %62 {offsets = [0, 128], sizes = [8, 128], strides = [1, 1]} : vector<8x512xf32> to vector<8x128xf32>
    %c0_30 = arith.constant 0 : index
    %c128_31 = arith.constant 128 : index
    %73 = vector.load %arg4[%c0_30, %c128_31] : memref<128x512xf32, #tpu.memory_space<vmem>>, vector<128x128xf32>
    %cst_32 = arith.constant dense<0.000000e+00> : vector<8x128xf32>
    %74 = tpu.matmul %55, %73, %cst_32 {dimension_numbers = #tpu.dot_dimension_numbers<[1], [0], [0], [1], [0, 0, 1, 1], [], []>} : vector<8x128xf32>, vector<128x128xf32>, vector<8x128xf32> -> vector<8x128xf32>
    %75 = arith.addf %72, %74 : vector<8x128xf32>
    %76 = arith.negf %75 : vector<8x128xf32>
    %77 = math.exp %76 : vector<8x128xf32>
    %cst_33 = arith.constant 1.000000e+00 : f32
    %78 = vector.broadcast %cst_33 : f32 to vector<8x128xf32>
    %79 = arith.addf %78, %77 : vector<8x128xf32>
    %80 = arith.divf %78, %79 : vector<8x128xf32>
    %81 = vector.extract_strided_slice %62 {offsets = [0, 256], sizes = [8, 128], strides = [1, 1]} : vector<8x512xf32> to vector<8x128xf32>
    %c0_34 = arith.constant 0 : index
    %c256_35 = arith.constant 256 : index
    %82 = vector.load %arg4[%c0_34, %c256_35] : memref<128x512xf32, #tpu.memory_space<vmem>>, vector<128x128xf32>
    %cst_36 = arith.constant dense<0.000000e+00> : vector<8x128xf32>
    %83 = tpu.matmul %55, %82, %cst_36 {dimension_numbers = #tpu.dot_dimension_numbers<[1], [0], [0], [1], [0, 0, 1, 1], [], []>} : vector<8x128xf32>, vector<128x128xf32>, vector<8x128xf32> -> vector<8x128xf32>
    %84 = arith.addf %81, %83 : vector<8x128xf32>
    %85 = math.tanh %84 : vector<8x128xf32>
    %86 = vector.extract_strided_slice %62 {offsets = [0, 384], sizes = [8, 128], strides = [1, 1]} : vector<8x512xf32> to vector<8x128xf32>
    %c0_37 = arith.constant 0 : index
    %c384_38 = arith.constant 384 : index
    %87 = vector.load %arg4[%c0_37, %c384_38] : memref<128x512xf32, #tpu.memory_space<vmem>>, vector<128x128xf32>
    %cst_39 = arith.constant dense<0.000000e+00> : vector<8x128xf32>
    %88 = tpu.matmul %55, %87, %cst_39 {dimension_numbers = #tpu.dot_dimension_numbers<[1], [0], [0], [1], [0, 0, 1, 1], [], []>} : vector<8x128xf32>, vector<128x128xf32>, vector<8x128xf32> -> vector<8x128xf32>
    %89 = arith.addf %86, %88 : vector<8x128xf32>
    %90 = arith.negf %89 : vector<8x128xf32>
    %91 = math.exp %90 : vector<8x128xf32>
    %cst_40 = arith.constant 1.000000e+00 : f32
    %92 = vector.broadcast %cst_40 : f32 to vector<8x128xf32>
    %93 = arith.addf %92, %91 : vector<8x128xf32>
    %94 = arith.divf %92, %93 : vector<8x128xf32>
    %95 = arith.mulf %80, %58 : vector<8x128xf32>
    %96 = arith.mulf %71, %85 : vector<8x128xf32>
    %97 = arith.addf %95, %96 : vector<8x128xf32>
    %98 = math.tanh %97 : vector<8x128xf32>
    %99 = arith.mulf %94, %98 : vector<8x128xf32>
    %100 = vector.broadcast %c1_i32 : i32 to vector<8x1xi32>
    %101 = arith.cmpi slt, %100, %7 : vector<8x1xi32>
    %102 = vector.shape_cast %101 : vector<8x1xi1> to vector<8x1xi1>
    %103 = vector.broadcast %102 : vector<8x1xi1> to vector<8x128xi1>
    %104 = arith.select %103, %99, %55 : vector<8x128xi1>, vector<8x128xf32>
    %105 = vector.shape_cast %101 : vector<8x1xi1> to vector<8x1xi1>
    %106 = vector.broadcast %105 : vector<8x1xi1> to vector<8x128xi1>
    %107 = arith.select %106, %97, %58 : vector<8x128xi1>, vector<8x128xf32>
    %c2_i32 = arith.constant 2 : i32
    %c8_i32_41 = arith.constant 8 : i32
    %108 = arith.muli %c2_i32, %c8_i32_41 : i32
    %109 = tpu.assume_multiple %108, 8 : i32
    %110 = arith.index_cast %109 : i32 to index
    %c0_42 = arith.constant 0 : index
    %111 = vector.load %arg11[%110, %c0_42] : memref<48x512xf32, #tpu.memory_space<vmem>>, vector<8x512xf32>
    %112 = vector.extract_strided_slice %111 {offsets = [0, 0], sizes = [8, 128], strides = [1, 1]} : vector<8x512xf32> to vector<8x128xf32>
    %c0_43 = arith.constant 0 : index
    %c0_44 = arith.constant 0 : index
    %113 = vector.load %arg4[%c0_43, %c0_44] : memref<128x512xf32, #tpu.memory_space<vmem>>, vector<128x128xf32>
    %cst_45 = arith.constant dense<0.000000e+00> : vector<8x128xf32>
    %114 = tpu.matmul %104, %113, %cst_45 {dimension_numbers = #tpu.dot_dimension_numbers<[1], [0], [0], [1], [0, 0, 1, 1], [], []>} : vector<8x128xf32>, vector<128x128xf32>, vector<8x128xf32> -> vector<8x128xf32>
    %115 = arith.addf %112, %114 : vector<8x128xf32>
    %116 = arith.negf %115 : vector<8x128xf32>
    %117 = math.exp %116 : vector<8x128xf32>
    %cst_46 = arith.constant 1.000000e+00 : f32
    %118 = vector.broadcast %cst_46 : f32 to vector<8x128xf32>
    %119 = arith.addf %118, %117 : vector<8x128xf32>
    %120 = arith.divf %118, %119 : vector<8x128xf32>
    %121 = vector.extract_strided_slice %111 {offsets = [0, 128], sizes = [8, 128], strides = [1, 1]} : vector<8x512xf32> to vector<8x128xf32>
    %c0_47 = arith.constant 0 : index
    %c128_48 = arith.constant 128 : index
    %122 = vector.load %arg4[%c0_47, %c128_48] : memref<128x512xf32, #tpu.memory_space<vmem>>, vector<128x128xf32>
    %cst_49 = arith.constant dense<0.000000e+00> : vector<8x128xf32>
    %123 = tpu.matmul %104, %122, %cst_49 {dimension_numbers = #tpu.dot_dimension_numbers<[1], [0], [0], [1], [0, 0, 1, 1], [], []>} : vector<8x128xf32>, vector<128x128xf32>, vector<8x128xf32> -> vector<8x128xf32>
    %124 = arith.addf %121, %123 : vector<8x128xf32>
    %125 = arith.negf %124 : vector<8x128xf32>
    %126 = math.exp %125 : vector<8x128xf32>
    %cst_50 = arith.constant 1.000000e+00 : f32
    %127 = vector.broadcast %cst_50 : f32 to vector<8x128xf32>
    %128 = arith.addf %127, %126 : vector<8x128xf32>
    %129 = arith.divf %127, %128 : vector<8x128xf32>
    %130 = vector.extract_strided_slice %111 {offsets = [0, 256], sizes = [8, 128], strides = [1, 1]} : vector<8x512xf32> to vector<8x128xf32>
    %c0_51 = arith.constant 0 : index
    %c256_52 = arith.constant 256 : index
    %131 = vector.load %arg4[%c0_51, %c256_52] : memref<128x512xf32, #tpu.memory_space<vmem>>, vector<128x128xf32>
    %cst_53 = arith.constant dense<0.000000e+00> : vector<8x128xf32>
    %132 = tpu.matmul %104, %131, %cst_53 {dimension_numbers = #tpu.dot_dimension_numbers<[1], [0], [0], [1], [0, 0, 1, 1], [], []>} : vector<8x128xf32>, vector<128x128xf32>, vector<8x128xf32> -> vector<8x128xf32>
    %133 = arith.addf %130, %132 : vector<8x128xf32>
    %134 = math.tanh %133 : vector<8x128xf32>
    %135 = vector.extract_strided_slice %111 {offsets = [0, 384], sizes = [8, 128], strides = [1, 1]} : vector<8x512xf32> to vector<8x128xf32>
    %c0_54 = arith.constant 0 : index
    %c384_55 = arith.constant 384 : index
    %136 = vector.load %arg4[%c0_54, %c384_55] : memref<128x512xf32, #tpu.memory_space<vmem>>, vector<128x128xf32>
    %cst_56 = arith.constant dense<0.000000e+00> : vector<8x128xf32>
    %137 = tpu.matmul %104, %136, %cst_56 {dimension_numbers = #tpu.dot_dimension_numbers<[1], [0], [0], [1], [0, 0, 1, 1], [], []>} : vector<8x128xf32>, vector<128x128xf32>, vector<8x128xf32> -> vector<8x128xf32>
    %138 = arith.addf %135, %137 : vector<8x128xf32>
    %139 = arith.negf %138 : vector<8x128xf32>
    %140 = math.exp %139 : vector<8x128xf32>
    %cst_57 = arith.constant 1.000000e+00 : f32
    %141 = vector.broadcast %cst_57 : f32 to vector<8x128xf32>
    %142 = arith.addf %141, %140 : vector<8x128xf32>
    %143 = arith.divf %141, %142 : vector<8x128xf32>
    %144 = arith.mulf %129, %107 : vector<8x128xf32>
    %145 = arith.mulf %120, %134 : vector<8x128xf32>
    %146 = arith.addf %144, %145 : vector<8x128xf32>
    %147 = math.tanh %146 : vector<8x128xf32>
    %148 = arith.mulf %143, %147 : vector<8x128xf32>
    %149 = vector.broadcast %c2_i32 : i32 to vector<8x1xi32>
    %150 = arith.cmpi slt, %149, %7 : vector<8x1xi32>
    %151 = vector.shape_cast %150 : vector<8x1xi1> to vector<8x1xi1>
    %152 = vector.broadcast %151 : vector<8x1xi1> to vector<8x128xi1>
    %153 = arith.select %152, %148, %104 : vector<8x128xi1>, vector<8x128xf32>
    %154 = vector.shape_cast %150 : vector<8x1xi1> to vector<8x1xi1>
    %155 = vector.broadcast %154 : vector<8x1xi1> to vector<8x128xi1>
    %156 = arith.select %155, %146, %107 : vector<8x128xi1>, vector<8x128xf32>
    %c3_i32 = arith.constant 3 : i32
    %c8_i32_58 = arith.constant 8 : i32
    %157 = arith.muli %c3_i32, %c8_i32_58 : i32
    %158 = tpu.assume_multiple %157, 8 : i32
    %159 = arith.index_cast %158 : i32 to index
    %c0_59 = arith.constant 0 : index
    %160 = vector.load %arg11[%159, %c0_59] : memref<48x512xf32, #tpu.memory_space<vmem>>, vector<8x512xf32>
    %161 = vector.extract_strided_slice %160 {offsets = [0, 0], sizes = [8, 128], strides = [1, 1]} : vector<8x512xf32> to vector<8x128xf32>
    %c0_60 = arith.constant 0 : index
    %c0_61 = arith.constant 0 : index
    %162 = vector.load %arg4[%c0_60, %c0_61] : memref<128x512xf32, #tpu.memory_space<vmem>>, vector<128x128xf32>
    %cst_62 = arith.constant dense<0.000000e+00> : vector<8x128xf32>
    %163 = tpu.matmul %153, %162, %cst_62 {dimension_numbers = #tpu.dot_dimension_numbers<[1], [0], [0], [1], [0, 0, 1, 1], [], []>} : vector<8x128xf32>, vector<128x128xf32>, vector<8x128xf32> -> vector<8x128xf32>
    %164 = arith.addf %161, %163 : vector<8x128xf32>
    %165 = arith.negf %164 : vector<8x128xf32>
    %166 = math.exp %165 : vector<8x128xf32>
    %cst_63 = arith.constant 1.000000e+00 : f32
    %167 = vector.broadcast %cst_63 : f32 to vector<8x128xf32>
    %168 = arith.addf %167, %166 : vector<8x128xf32>
    %169 = arith.divf %167, %168 : vector<8x128xf32>
    %170 = vector.extract_strided_slice %160 {offsets = [0, 128], sizes = [8, 128], strides = [1, 1]} : vector<8x512xf32> to vector<8x128xf32>
    %c0_64 = arith.constant 0 : index
    %c128_65 = arith.constant 128 : index
    %171 = vector.load %arg4[%c0_64, %c128_65] : memref<128x512xf32, #tpu.memory_space<vmem>>, vector<128x128xf32>
    %cst_66 = arith.constant dense<0.000000e+00> : vector<8x128xf32>
    %172 = tpu.matmul %153, %171, %cst_66 {dimension_numbers = #tpu.dot_dimension_numbers<[1], [0], [0], [1], [0, 0, 1, 1], [], []>} : vector<8x128xf32>, vector<128x128xf32>, vector<8x128xf32> -> vector<8x128xf32>
    %173 = arith.addf %170, %172 : vector<8x128xf32>
    %174 = arith.negf %173 : vector<8x128xf32>
    %175 = math.exp %174 : vector<8x128xf32>
    %cst_67 = arith.constant 1.000000e+00 : f32
    %176 = vector.broadcast %cst_67 : f32 to vector<8x128xf32>
    %177 = arith.addf %176, %175 : vector<8x128xf32>
    %178 = arith.divf %176, %177 : vector<8x128xf32>
    %179 = vector.extract_strided_slice %160 {offsets = [0, 256], sizes = [8, 128], strides = [1, 1]} : vector<8x512xf32> to vector<8x128xf32>
    %c0_68 = arith.constant 0 : index
    %c256_69 = arith.constant 256 : index
    %180 = vector.load %arg4[%c0_68, %c256_69] : memref<128x512xf32, #tpu.memory_space<vmem>>, vector<128x128xf32>
    %cst_70 = arith.constant dense<0.000000e+00> : vector<8x128xf32>
    %181 = tpu.matmul %153, %180, %cst_70 {dimension_numbers = #tpu.dot_dimension_numbers<[1], [0], [0], [1], [0, 0, 1, 1], [], []>} : vector<8x128xf32>, vector<128x128xf32>, vector<8x128xf32> -> vector<8x128xf32>
    %182 = arith.addf %179, %181 : vector<8x128xf32>
    %183 = math.tanh %182 : vector<8x128xf32>
    %184 = vector.extract_strided_slice %160 {offsets = [0, 384], sizes = [8, 128], strides = [1, 1]} : vector<8x512xf32> to vector<8x128xf32>
    %c0_71 = arith.constant 0 : index
    %c384_72 = arith.constant 384 : index
    %185 = vector.load %arg4[%c0_71, %c384_72] : memref<128x512xf32, #tpu.memory_space<vmem>>, vector<128x128xf32>
    %cst_73 = arith.constant dense<0.000000e+00> : vector<8x128xf32>
    %186 = tpu.matmul %153, %185, %cst_73 {dimension_numbers = #tpu.dot_dimension_numbers<[1], [0], [0], [1], [0, 0, 1, 1], [], []>} : vector<8x128xf32>, vector<128x128xf32>, vector<8x128xf32> -> vector<8x128xf32>
    %187 = arith.addf %184, %186 : vector<8x128xf32>
    %188 = arith.negf %187 : vector<8x128xf32>
    %189 = math.exp %188 : vector<8x128xf32>
    %cst_74 = arith.constant 1.000000e+00 : f32
    %190 = vector.broadcast %cst_74 : f32 to vector<8x128xf32>
    %191 = arith.addf %190, %189 : vector<8x128xf32>
    %192 = arith.divf %190, %191 : vector<8x128xf32>
    %193 = arith.mulf %178, %156 : vector<8x128xf32>
    %194 = arith.mulf %169, %183 : vector<8x128xf32>
    %195 = arith.addf %193, %194 : vector<8x128xf32>
    %196 = math.tanh %195 : vector<8x128xf32>
    %197 = arith.mulf %192, %196 : vector<8x128xf32>
    %198 = vector.broadcast %c3_i32 : i32 to vector<8x1xi32>
    %199 = arith.cmpi slt, %198, %7 : vector<8x1xi32>
    %200 = vector.shape_cast %199 : vector<8x1xi1> to vector<8x1xi1>
    %201 = vector.broadcast %200 : vector<8x1xi1> to vector<8x128xi1>
    %202 = arith.select %201, %197, %153 : vector<8x128xi1>, vector<8x128xf32>
    %203 = vector.shape_cast %199 : vector<8x1xi1> to vector<8x1xi1>
    %204 = vector.broadcast %203 : vector<8x1xi1> to vector<8x128xi1>
    %205 = arith.select %204, %195, %156 : vector<8x128xi1>, vector<8x128xf32>
    %c4_i32 = arith.constant 4 : i32
    %c8_i32_75 = arith.constant 8 : i32
    %206 = arith.muli %c4_i32, %c8_i32_75 : i32
    %207 = tpu.assume_multiple %206, 8 : i32
    %208 = arith.index_cast %207 : i32 to index
    %c0_76 = arith.constant 0 : index
    %209 = vector.load %arg11[%208, %c0_76] : memref<48x512xf32, #tpu.memory_space<vmem>>, vector<8x512xf32>
    %210 = vector.extract_strided_slice %209 {offsets = [0, 0], sizes = [8, 128], strides = [1, 1]} : vector<8x512xf32> to vector<8x128xf32>
    %c0_77 = arith.constant 0 : index
    %c0_78 = arith.constant 0 : index
    %211 = vector.load %arg4[%c0_77, %c0_78] : memref<128x512xf32, #tpu.memory_space<vmem>>, vector<128x128xf32>
    %cst_79 = arith.constant dense<0.000000e+00> : vector<8x128xf32>
    %212 = tpu.matmul %202, %211, %cst_79 {dimension_numbers = #tpu.dot_dimension_numbers<[1], [0], [0], [1], [0, 0, 1, 1], [], []>} : vector<8x128xf32>, vector<128x128xf32>, vector<8x128xf32> -> vector<8x128xf32>
    %213 = arith.addf %210, %212 : vector<8x128xf32>
    %214 = arith.negf %213 : vector<8x128xf32>
    %215 = math.exp %214 : vector<8x128xf32>
    %cst_80 = arith.constant 1.000000e+00 : f32
    %216 = vector.broadcast %cst_80 : f32 to vector<8x128xf32>
    %217 = arith.addf %216, %215 : vector<8x128xf32>
    %218 = arith.divf %216, %217 : vector<8x128xf32>
    %219 = vector.extract_strided_slice %209 {offsets = [0, 128], sizes = [8, 128], strides = [1, 1]} : vector<8x512xf32> to vector<8x128xf32>
    %c0_81 = arith.constant 0 : index
    %c128_82 = arith.constant 128 : index
    %220 = vector.load %arg4[%c0_81, %c128_82] : memref<128x512xf32, #tpu.memory_space<vmem>>, vector<128x128xf32>
    %cst_83 = arith.constant dense<0.000000e+00> : vector<8x128xf32>
    %221 = tpu.matmul %202, %220, %cst_83 {dimension_numbers = #tpu.dot_dimension_numbers<[1], [0], [0], [1], [0, 0, 1, 1], [], []>} : vector<8x128xf32>, vector<128x128xf32>, vector<8x128xf32> -> vector<8x128xf32>
    %222 = arith.addf %219, %221 : vector<8x128xf32>
    %223 = arith.negf %222 : vector<8x128xf32>
    %224 = math.exp %223 : vector<8x128xf32>
    %cst_84 = arith.constant 1.000000e+00 : f32
    %225 = vector.broadcast %cst_84 : f32 to vector<8x128xf32>
    %226 = arith.addf %225, %224 : vector<8x128xf32>
    %227 = arith.divf %225, %226 : vector<8x128xf32>
    %228 = vector.extract_strided_slice %209 {offsets = [0, 256], sizes = [8, 128], strides = [1, 1]} : vector<8x512xf32> to vector<8x128xf32>
    %c0_85 = arith.constant 0 : index
    %c256_86 = arith.constant 256 : index
    %229 = vector.load %arg4[%c0_85, %c256_86] : memref<128x512xf32, #tpu.memory_space<vmem>>, vector<128x128xf32>
    %cst_87 = arith.constant dense<0.000000e+00> : vector<8x128xf32>
    %230 = tpu.matmul %202, %229, %cst_87 {dimension_numbers = #tpu.dot_dimension_numbers<[1], [0], [0], [1], [0, 0, 1, 1], [], []>} : vector<8x128xf32>, vector<128x128xf32>, vector<8x128xf32> -> vector<8x128xf32>
    %231 = arith.addf %228, %230 : vector<8x128xf32>
    %232 = math.tanh %231 : vector<8x128xf32>
    %233 = vector.extract_strided_slice %209 {offsets = [0, 384], sizes = [8, 128], strides = [1, 1]} : vector<8x512xf32> to vector<8x128xf32>
    %c0_88 = arith.constant 0 : index
    %c384_89 = arith.constant 384 : index
    %234 = vector.load %arg4[%c0_88, %c384_89] : memref<128x512xf32, #tpu.memory_space<vmem>>, vector<128x128xf32>
    %cst_90 = arith.constant dense<0.000000e+00> : vector<8x128xf32>
    %235 = tpu.matmul %202, %234, %cst_90 {dimension_numbers = #tpu.dot_dimension_numbers<[1], [0], [0], [1], [0, 0, 1, 1], [], []>} : vector<8x128xf32>, vector<128x128xf32>, vector<8x128xf32> -> vector<8x128xf32>
    %236 = arith.addf %233, %235 : vector<8x128xf32>
    %237 = arith.negf %236 : vector<8x128xf32>
    %238 = math.exp %237 : vector<8x128xf32>
    %cst_91 = arith.constant 1.000000e+00 : f32
    %239 = vector.broadcast %cst_91 : f32 to vector<8x128xf32>
    %240 = arith.addf %239, %238 : vector<8x128xf32>
    %241 = arith.divf %239, %240 : vector<8x128xf32>
    %242 = arith.mulf %227, %205 : vector<8x128xf32>
    %243 = arith.mulf %218, %232 : vector<8x128xf32>
    %244 = arith.addf %242, %243 : vector<8x128xf32>
    %245 = math.tanh %244 : vector<8x128xf32>
    %246 = arith.mulf %241, %245 : vector<8x128xf32>
    %247 = vector.broadcast %c4_i32 : i32 to vector<8x1xi32>
    %248 = arith.cmpi slt, %247, %7 : vector<8x1xi32>
    %249 = vector.shape_cast %248 : vector<8x1xi1> to vector<8x1xi1>
    %250 = vector.broadcast %249 : vector<8x1xi1> to vector<8x128xi1>
    %251 = arith.select %250, %246, %202 : vector<8x128xi1>, vector<8x128xf32>
    %252 = vector.shape_cast %248 : vector<8x1xi1> to vector<8x1xi1>
    %253 = vector.broadcast %252 : vector<8x1xi1> to vector<8x128xi1>
    %254 = arith.select %253, %244, %205 : vector<8x128xi1>, vector<8x128xf32>
    %c5_i32 = arith.constant 5 : i32
    %c8_i32_92 = arith.constant 8 : i32
    %255 = arith.muli %c5_i32, %c8_i32_92 : i32
    %256 = tpu.assume_multiple %255, 8 : i32
    %257 = arith.index_cast %256 : i32 to index
    %c0_93 = arith.constant 0 : index
    %258 = vector.load %arg11[%257, %c0_93] : memref<48x512xf32, #tpu.memory_space<vmem>>, vector<8x512xf32>
    %259 = vector.extract_strided_slice %258 {offsets = [0, 0], sizes = [8, 128], strides = [1, 1]} : vector<8x512xf32> to vector<8x128xf32>
    %c0_94 = arith.constant 0 : index
    %c0_95 = arith.constant 0 : index
    %260 = vector.load %arg4[%c0_94, %c0_95] : memref<128x512xf32, #tpu.memory_space<vmem>>, vector<128x128xf32>
    %cst_96 = arith.constant dense<0.000000e+00> : vector<8x128xf32>
    %261 = tpu.matmul %251, %260, %cst_96 {dimension_numbers = #tpu.dot_dimension_numbers<[1], [0], [0], [1], [0, 0, 1, 1], [], []>} : vector<8x128xf32>, vector<128x128xf32>, vector<8x128xf32> -> vector<8x128xf32>
    %262 = arith.addf %259, %261 : vector<8x128xf32>
    %263 = arith.negf %262 : vector<8x128xf32>
    %264 = math.exp %263 : vector<8x128xf32>
    %cst_97 = arith.constant 1.000000e+00 : f32
    %265 = vector.broadcast %cst_97 : f32 to vector<8x128xf32>
    %266 = arith.addf %265, %264 : vector<8x128xf32>
    %267 = arith.divf %265, %266 : vector<8x128xf32>
    %268 = vector.extract_strided_slice %258 {offsets = [0, 128], sizes = [8, 128], strides = [1, 1]} : vector<8x512xf32> to vector<8x128xf32>
    %c0_98 = arith.constant 0 : index
    %c128_99 = arith.constant 128 : index
    %269 = vector.load %arg4[%c0_98, %c128_99] : memref<128x512xf32, #tpu.memory_space<vmem>>, vector<128x128xf32>
    %cst_100 = arith.constant dense<0.000000e+00> : vector<8x128xf32>
    %270 = tpu.matmul %251, %269, %cst_100 {dimension_numbers = #tpu.dot_dimension_numbers<[1], [0], [0], [1], [0, 0, 1, 1], [], []>} : vector<8x128xf32>, vector<128x128xf32>, vector<8x128xf32> -> vector<8x128xf32>
    %271 = arith.addf %268, %270 : vector<8x128xf32>
    %272 = arith.negf %271 : vector<8x128xf32>
    %273 = math.exp %272 : vector<8x128xf32>
    %cst_101 = arith.constant 1.000000e+00 : f32
    %274 = vector.broadcast %cst_101 : f32 to vector<8x128xf32>
    %275 = arith.addf %274, %273 : vector<8x128xf32>
    %276 = arith.divf %274, %275 : vector<8x128xf32>
    %277 = vector.extract_strided_slice %258 {offsets = [0, 256], sizes = [8, 128], strides = [1, 1]} : vector<8x512xf32> to vector<8x128xf32>
    %c0_102 = arith.constant 0 : index
    %c256_103 = arith.constant 256 : index
    %278 = vector.load %arg4[%c0_102, %c256_103] : memref<128x512xf32, #tpu.memory_space<vmem>>, vector<128x128xf32>
    %cst_104 = arith.constant dense<0.000000e+00> : vector<8x128xf32>
    %279 = tpu.matmul %251, %278, %cst_104 {dimension_numbers = #tpu.dot_dimension_numbers<[1], [0], [0], [1], [0, 0, 1, 1], [], []>} : vector<8x128xf32>, vector<128x128xf32>, vector<8x128xf32> -> vector<8x128xf32>
    %280 = arith.addf %277, %279 : vector<8x128xf32>
    %281 = math.tanh %280 : vector<8x128xf32>
    %282 = vector.extract_strided_slice %258 {offsets = [0, 384], sizes = [8, 128], strides = [1, 1]} : vector<8x512xf32> to vector<8x128xf32>
    %c0_105 = arith.constant 0 : index
    %c384_106 = arith.constant 384 : index
    %283 = vector.load %arg4[%c0_105, %c384_106] : memref<128x512xf32, #tpu.memory_space<vmem>>, vector<128x128xf32>
    %cst_107 = arith.constant dense<0.000000e+00> : vector<8x128xf32>
    %284 = tpu.matmul %251, %283, %cst_107 {dimension_numbers = #tpu.dot_dimension_numbers<[1], [0], [0], [1], [0, 0, 1, 1], [], []>} : vector<8x128xf32>, vector<128x128xf32>, vector<8x128xf32> -> vector<8x128xf32>
    %285 = arith.addf %282, %284 : vector<8x128xf32>
    %286 = arith.negf %285 : vector<8x128xf32>
    %287 = math.exp %286 : vector<8x128xf32>
    %cst_108 = arith.constant 1.000000e+00 : f32
    %288 = vector.broadcast %cst_108 : f32 to vector<8x128xf32>
    %289 = arith.addf %288, %287 : vector<8x128xf32>
    %290 = arith.divf %288, %289 : vector<8x128xf32>
    %291 = arith.mulf %276, %254 : vector<8x128xf32>
    %292 = arith.mulf %267, %281 : vector<8x128xf32>
    %293 = arith.addf %291, %292 : vector<8x128xf32>
    %294 = math.tanh %293 : vector<8x128xf32>
    %295 = arith.mulf %290, %294 : vector<8x128xf32>
    %296 = vector.broadcast %c5_i32 : i32 to vector<8x1xi32>
    %297 = arith.cmpi slt, %296, %7 : vector<8x1xi32>
    %298 = vector.shape_cast %297 : vector<8x1xi1> to vector<8x1xi1>
    %299 = vector.broadcast %298 : vector<8x1xi1> to vector<8x128xi1>
    %300 = arith.select %299, %295, %251 : vector<8x128xi1>, vector<8x128xf32>
    %301 = vector.shape_cast %297 : vector<8x1xi1> to vector<8x1xi1>
    %302 = vector.broadcast %301 : vector<8x1xi1> to vector<8x128xi1>
    %303 = arith.select %302, %293, %254 : vector<8x128xi1>, vector<8x128xf32>
    %c6_i32 = arith.constant 6 : i32
    %c0_109 = arith.constant 0 : index
    %c0_110 = arith.constant 0 : index
    %304 = vector.load %arg2[%c0_109, %c0_110] : memref<1x8xf32, #tpu.memory_space<vmem>>, vector<1x8xf32>
    %305 = vector.shape_cast %304 : vector<1x8xf32> to vector<1x1x8xf32>
    %cst_111 = arith.constant dense<0.000000e+00> : vector<1xf32>
    %306 = vector.multi_reduction <add>, %305, %cst_111 [1, 2] : vector<1x1x8xf32> to vector<1xf32>
    %307 = vector.shape_cast %306 : vector<1xf32> to vector<1x1x1xf32>
    %308 = vector.extract %307[0, 0, 0] : f32 from vector<1x1x1xf32>
    %cst_112 = arith.constant dense<0.000000e+00> : vector<1x128xf32>
    %309 = tpu.matmul %304, %300, %cst_112 {dimension_numbers = #tpu.dot_dimension_numbers<[1], [0], [0], [1], [0, 0, 1, 1], [], []>} : vector<1x8xf32>, vector<8x128xf32>, vector<1x128xf32> -> vector<1x128xf32>
    %c0_113 = arith.constant 0 : index
    %c0_114 = arith.constant 0 : index
    %310 = vector.load %arg6[%c0_113, %c0_114] : memref<128x128xf32, #tpu.memory_space<vmem>>, vector<128x128xf32>
    %cst_115 = arith.constant dense<0.000000e+00> : vector<1x128xf32>
    %311 = tpu.matmul %309, %310, %cst_115 {dimension_numbers = #tpu.dot_dimension_numbers<[1], [0], [0], [1], [0, 0, 1, 1], [], []>} : vector<1x128xf32>, vector<128x128xf32>, vector<1x128xf32> -> vector<1x128xf32>
    %c0_116 = arith.constant 0 : index
    %c0_117 = arith.constant 0 : index
    %312 = vector.load %arg7[%c0_116, %c0_117] : memref<1x128xf32, #tpu.memory_space<vmem>>, vector<1x128xf32>
    %313 = vector.broadcast %308 : f32 to vector<1x128xf32>
    %314 = arith.mulf %313, %312 : vector<1x128xf32>
    %315 = arith.addf %311, %314 : vector<1x128xf32>
    %c0_118 = arith.constant 0 : index
    %c0_119 = arith.constant 0 : index
    %316 = vector.load %arg8[%c0_118, %c0_119] : memref<128x1xf32, #tpu.memory_space<vmem>>, vector<128x1xf32>
    %cst_120 = arith.constant dense<0.000000e+00> : vector<1x1xf32>
    %317 = tpu.matmul %315, %316, %cst_120 {dimension_numbers = #tpu.dot_dimension_numbers<[1], [0], [0], [1], [0, 0, 1, 1], [], []>} : vector<1x128xf32>, vector<128x1xf32>, vector<1x1xf32> -> vector<1x1xf32>
    %c0_121 = arith.constant 0 : index
    %c0_122 = arith.constant 0 : index
    %318 = vector.load %arg9[%c0_121, %c0_122] : memref<1x1xf32, #tpu.memory_space<vmem>>, vector<1x1xf32>
    %319 = vector.broadcast %308 : f32 to vector<1x1xf32>
    %320 = arith.mulf %319, %318 : vector<1x1xf32>
    %321 = arith.addf %317, %320 : vector<1x1xf32>
    %c0_123 = arith.constant 0 : index
    %c0_124 = arith.constant 0 : index
    %322 = vector.load %arg10[%c0_123, %c0_124] : memref<1x1xf32, #tpu.memory_space<vmem>>, vector<1x1xf32>
    tpu.vector_store %arg10[%c0_123, %c0_124], %321 {strides = array<i32>} : memref<1x1xf32, #tpu.memory_space<vmem>>, vector<1x1xf32>,
    return
  }
}

</mosaic_0001>

<llo_original>
// kernel: yield_groups_rnn_forward.1
$region0: #{yield_groups_rnn_forward.1}
  #allocation0 [shape = 'u32[]', space=smem, size = 0x4, offset = 0x4, fixed_abs, tag = 'smem constant byte address 0x4 - core index']
  #allocation1 [shape = 'u32[144,128]{1,0:T(1,128)}', space=vmem, size = 0x12000, scoped, tag = 'internal scratch']
  #allocation2 [shape = 'f32[48,512]{1,0:T(8,128)}', space=vmem, size = 0x18000, scoped, tag = 'scratch operand']
  #allocation3 [shape = 'f32[1,1]{1,0:T(1,128)S(1)}', space=vmem, size = 0x200, scoped, tag = 'scoped memory for yield_groups_rnn_forward.1']
  %s0 = inlined_call_operand.vmem [shape: f32[48,8], index: 0, kind: input, shape index: {}]
  %s1 = inlined_call_operand.vmem [shape: s32[8,1], index: 1, kind: input, shape index: {}]
  %s2 = inlined_call_operand.vmem [shape: f32[1,8], index: 2, kind: input, shape index: {}]
  %s3 = inlined_call_operand.vmem [shape: f32[8,512], index: 3, kind: input, shape index: {}]
  %s4 = inlined_call_operand.hbm [shape: f32[128,512], index: 4, kind: input, shape index: {}]
  %s5 = inlined_call_operand.vmem [shape: f32[1,512], index: 5, kind: input, shape index: {}]
  %s6 = inlined_call_operand.vmem [shape: f32[128,128], index: 6, kind: input, shape index: {}]
  %s7 = inlined_call_operand.vmem [shape: f32[1,128], index: 7, kind: input, shape index: {}]
  %s8 = inlined_call_operand.vmem [shape: f32[128,1], index: 8, kind: input, shape index: {}]
  %s9 = inlined_call_operand.<no memory space> [shape: f32[1,1], index: 9, kind: input, shape index: {}]
  %s10 = inlined_call_operand.hbm [shape: f32[1,1], index: 10, kind: output, shape index: {}]
  %s11 = sld [smem:[#allocation0]]
  $region54: #{yield_groups_rnn_forward.1} parent=0
    _
  %s13 = ssub.s32 1, %s11
  %s14 = scalar_select 0, %s13, %s11
  %v15 = vstv %s9
  %16 = vst [vmem:[#allocation3] sm:$0x1] %v15
  $region1: #{yield_groups_rnn_forward.1} parent=0
    #allocation4 [shape = 'u8[262144]{0}', space=vmem, size = 0x40000, scoped, tag = 'input window, operand 4, single buffered']
    #allocation5 [shape = 's32[1]{0}', space=sflag, size = 0x4, scoped, tag = 'scoped memory for yield_groups_rnn_forward.1']
    #allocation6 [shape = 's32[1]{0}', space=sflag, size = 0x4, scoped, tag = 'scoped memory for yield_groups_rnn_forward.1']
    #allocation7 [shape = 'u8[512]{0}', space=vmem, size = 0x400, scoped, tag = 'output window, operand 0, single buffered']
    %17 = vsyncpa [#allocation5], 0
    %18 = vsyncpa [#allocation6], 0
    // Predicated region
    $region2: #{yield_groups_rnn_forward.1} parent=1 // pred_check
      _
    $region3: #{yield_groups_rnn_forward.1} parent=1 // pred_check_branch
      %20 = sbr.rel (0) target = $region5
    $region4: #{yield_groups_rnn_forward.1} parent=1 // pred_region
      _
    $region5: #{yield_groups_rnn_forward.1} parent=1 // pred_fallthru
      _
    // Predicated region
    $region6: #{yield_groups_rnn_forward.1} parent=1 // pred_check
      _
    $region7: #{yield_groups_rnn_forward.1} parent=1 // pred_check_branch
      %22 = sbr.rel (0) target = $region9
    $region8: #{yield_groups_rnn_forward.1} parent=1 // pred_region
      _
    $region9: #{yield_groups_rnn_forward.1} parent=1 // pred_fallthru
      _
    // Predicated region
    $region10: #{yield_groups_rnn_forward.1} parent=1 // pred_check
      _
    $region11: #{yield_groups_rnn_forward.1} parent=1 // pred_check_branch
      %24 = sbr.rel (0) target = $region13
    $region12: #{yield_groups_rnn_forward.1} parent=1 // pred_region
      _
    $region13: #{yield_groups_rnn_forward.1} parent=1 // pred_fallthru
      _
    // Predicated region
    $region14: #{yield_groups_rnn_forward.1} parent=1 // pred_check
      _
    $region15: #{yield_groups_rnn_forward.1} parent=1 // pred_check_branch
      %26 = sbr.rel (0) target = $region17
    $region16: #{yield_groups_rnn_forward.1} parent=1 // pred_region
      _
    $region17: #{yield_groups_rnn_forward.1} parent=1 // pred_fallthru
      _
    // Predicated region
    $region18: #{yield_groups_rnn_forward.1} parent=1 // pred_check
      _
    $region19: #{yield_groups_rnn_forward.1} parent=1 // pred_check_branch
      %28 = sbr.rel (0) target = $region21
    $region20: #{yield_groups_rnn_forward.1} parent=1 // pred_region
      %s30 = ssub.s32 8192, 8192
      %31 = vsyncadd [#allocation5], %s30
      %s32 = sshll.u32 [#allocation4], 4
      %s33 = int_to_ptr.vmem [resolvable:$true] %s32
      %38 = dma.hbm_to_vmem [thread:$0]  %s4, 8192, %s33, [#allocation5], 512, 512, 32
    $region21: #{yield_groups_rnn_forward.1} parent=1 // pred_fallthru
      _
    // Predicated region
    $region22: #{yield_groups_rnn_forward.1} parent=1 // pred_check
      _
    $region23: #{yield_groups_rnn_forward.1} parent=1 // pred_check_branch
      %40 = sbr.rel (0) target = $region25
    $region24: #{yield_groups_rnn_forward.1} parent=1 // pred_region
      _
    $region25: #{yield_groups_rnn_forward.1} parent=1 // pred_fallthru
      _
    // Predicated region
    $region26: #{yield_groups_rnn_forward.1} parent=1 // pred_check
      _
    $region27: #{yield_groups_rnn_forward.1} parent=1 // pred_check_branch
      %42 = sbr.rel (0) target = $region29
    $region28: #{yield_groups_rnn_forward.1} parent=1 // pred_region
      _
    $region29: #{yield_groups_rnn_forward.1} parent=1 // pred_fallthru
      _
    // Predicated region
    $region30: #{yield_groups_rnn_forward.1} parent=1 // pred_check
      _
    $region31: #{yield_groups_rnn_forward.1} parent=1 // pred_check_branch
      %44 = sbr.rel (0) target = $region33
    $region32: #{yield_groups_rnn_forward.1} parent=1 // pred_region
      _
    $region33: #{yield_groups_rnn_forward.1} parent=1 // pred_fallthru
      _
    // Predicated region
    $region34: #{yield_groups_rnn_forward.1} parent=1 // pred_check
      _
    $region35: #{yield_groups_rnn_forward.1} parent=1 // pred_check_branch
      %46 = sbr.rel (0) target = $region37
    $region36: #{yield_groups_rnn_forward.1} parent=1 // pred_region
      _
    $region37: #{yield_groups_rnn_forward.1} parent=1 // pred_fallthru
      _
    // Predicated region
    $region38: #{yield_groups_rnn_forward.1} parent=1 // pred_check
      _
    $region39: #{yield_groups_rnn_forward.1} parent=1 // pred_check_branch
      %48 = sbr.rel (0) target = $region41
    $region40: #{yield_groups_rnn_forward.1} parent=1 // pred_region
      _
    $region41: #{yield_groups_rnn_forward.1} parent=1 // pred_fallthru
      _
    // Predicated region
    $region42: #{yield_groups_rnn_forward.1} parent=1 // pred_check
      _
    $region43: #{yield_groups_rnn_forward.1} parent=1 // pred_check_branch
      %50 = sbr.rel (0) target = $region45
    $region44: #{yield_groups_rnn_forward.1} parent=1 // pred_region
      %51 = dma.done [#allocation5], 8192
    $region45: #{yield_groups_rnn_forward.1} parent=1 // pred_fallthru
      _
    %v52 = vld [vmem:[%s0] sm:$0xff]
    %v53 = vld [vmem:[%s0 + $0x8] sm:$0xff]
    %v54 = vld [vmem:[%s0 + $0x10] sm:$0xff]
    %v55 = vld [vmem:[%s0 + $0x18] sm:$0xff]
    %v56 = vld [vmem:[%s0 + $0x20] sm:$0xff]
    %v57 = vld [vmem:[%s0 + $0x28] sm:$0xff]
    %v58 = vld [vmem:[%s3] sm:$0xff]
    %v59 = vld [vmem:[%s3 + $0x8] sm:$0xff]
    %v60 = vld [vmem:[%s3 + $0x10] sm:$0xff]
    %v61 = vld [vmem:[%s3 + $0x18] sm:$0xff]
    %v62 = vld [vmem:[%s5] sm:$0xf]
    %v64 = vlaneseq
    %v65 = vshrl.u32 %v64, 7
    %v66 = vsub.s32 0, %v65
    %v67 = vrot.slane %v62, %v66
    %v68 = vlaneseq
    %v69 = vshrl.u32 %v68, 7
    %v70 = vsub.s32 1, %v69
    %v71 = vrot.slane %v62, %v70
    %v72 = vlaneseq
    %v73 = vshrl.u32 %v72, 7
    %v74 = vsub.s32 2, %v73
    %v75 = vrot.slane %v62, %v74
    %v76 = vlaneseq
    %v77 = vshrl.u32 %v76, 7
    %v78 = vsub.s32 3, %v77
    %v79 = vrot.slane %v62, %v78
    %vm84 = vcmask 64512
    %v86 = vsel %vm84, %v52, 0
    %v89 = vsel %vm84, %v53, 0
    %v92 = vsel %vm84, %v54, 0
    %v95 = vsel %vm84, %v55, 0
    %v98 = vsel %vm84, %v56, 0
    %v101 = vsel %vm84, %v57, 0
    %103 = vmatprep.subr.mxu0 0.0
    %104 = vmatpush1.msra.mxu0 0.0
    %105 = vmatprep.subr.mxu0 0.0
    %106 = vmatpush1.msra.mxu0 0.0
    %107 = vmatprep.subr.mxu0 0.0
    %108 = vmatpush1.msra.mxu0 0.0
    %109 = vmatprep.subr.mxu0 0.0
    %110 = vmatpush1.msra.mxu0 0.0
    %111 = vmatprep.subr.mxu0 0.0
    %112 = vmatpush1.msra.mxu0 0.0
    %113 = vmatprep.subr.mxu0 0.0
    %114 = vmatpush1.msra.mxu0 0.0
    %115 = vmatprep.subr.mxu0 0.0
    %116 = vmatpush1.msra.mxu0 0.0
    %117 = vmatprep.subr.mxu0 0.0
    %118 = vmatpush1.msra.mxu0 0.0
    %119 = vmatprep.subr.mxu0 0.0
    %120 = vmatpush1.msra.mxu0 0.0
    %121 = vmatprep.subr.mxu0 0.0
    %122 = vmatpush1.msra.mxu0 0.0
    %123 = vmatprep.subr.mxu0 0.0
    %124 = vmatpush1.msra.mxu0 0.0
    %125 = vmatprep.subr.mxu0 0.0
    %126 = vmatpush1.msra.mxu0 0.0
    %127 = vmatprep.subr.mxu0 0.0
    %128 = vmatpush1.msra.mxu0 0.0
    %129 = vmatprep.subr.mxu0 0.0
    %130 = vmatpush1.msra.mxu0 0.0
    %131 = vmatprep.subr.mxu0 0.0
    %132 = vmatpush1.msra.mxu0 0.0
    %133 = vmatprep.subr.mxu0 %v59
    %134 = vmatpush1.msra.mxu0 %v58
    %135 = vmatprep.subr.mxu0 0.0
    %136 = vmatpush2.msra.mxu0 0.0
    %137 = vmatprep.subr.mxu0 0.0
    %138 = vmatpush2.msra.mxu0 0.0
    %139 = vmatprep.subr.mxu0 0.0
    %140 = vmatpush2.msra.mxu0 0.0
    %141 = vmatprep.subr.mxu0 0.0
    %142 = vmatpush2.msra.mxu0 0.0
    %143 = vmatprep.subr.mxu0 0.0
    %144 = vmatpush2.msra.mxu0 0.0
    %145 = vmatprep.subr.mxu0 0.0
    %146 = vmatpush2.msra.mxu0 0.0
    %147 = vmatprep.subr.mxu0 0.0
    %148 = vmatpush2.msra.mxu0 0.0
    %149 = vmatprep.subr.mxu0 0.0
    %150 = vmatpush2.msra.mxu0 0.0
    %151 = vmatprep.subr.mxu0 0.0
    %152 = vmatpush2.msra.mxu0 0.0
    %153 = vmatprep.subr.mxu0 0.0
    %154 = vmatpush2.msra.mxu0 0.0
    %155 = vmatprep.subr.mxu0 0.0
    %156 = vmatpush2.msra.mxu0 0.0
    %157 = vmatprep.subr.mxu0 0.0
    %158 = vmatpush2.msra.mxu0 0.0
    %159 = vmatprep.subr.mxu0 0.0
    %160 = vmatpush2.msra.mxu0 0.0
    %161 = vmatprep.subr.mxu0 0.0
    %162 = vmatpush2.msra.mxu0 0.0
    %163 = vmatprep.subr.mxu0 0.0
    %164 = vmatpush2.msra.mxu0 0.0
    %165 = vmatprep.subr.mxu0 0.0
    %166 = vmatpush2.msra.mxu0 0.0
    %167 = vmatprep.mubr.f32.mxu0 0.0
    %168 = vmatmul.mubr.f32.gmra.mxu0 %v86
    %v169 = vpop.f32.mrf.mxu0
    %v170 = vadd.f32 %v67, %v169
    %v171 = vpop.f32.mrf.mxu0
    %v172 = vadd.f32 %v71, %v171
    %173 = vmatprep.mubr.f32.mxu0 0.0
    %174 = vmatmul.mubr.f32.gmra.mxu0 %v89
    %v175 = vpop.f32.mrf.mxu0
    %v176 = vadd.f32 %v67, %v175
    %v177 = vpop.f32.mrf.mxu0
    %v178 = vadd.f32 %v71, %v177
    %179 = vmatprep.mubr.f32.mxu0 0.0
    %180 = vmatmul.mubr.f32.gmra.mxu0 %v92
    %v181 = vpop.f32.mrf.mxu0
    %v182 = vadd.f32 %v67, %v181
    %v183 = vpop.f32.mrf.mxu0
    %v184 = vadd.f32 %v71, %v183
    %185 = vmatprep.mubr.f32.mxu0 0.0
    %186 = vmatmul.mubr.f32.gmra.mxu0 %v95
    %v187 = vpop.f32.mrf.mxu0
    %v188 = vadd.f32 %v67, %v187
    %v189 = vpop.f32.mrf.mxu0
    %v190 = vadd.f32 %v71, %v189
    %191 = vmatprep.mubr.f32.mxu0 0.0
    %192 = vmatmul.mubr.f32.gmra.mxu0 %v98
    %v193 = vpop.f32.mrf.mxu0
    %v194 = vadd.f32 %v67, %v193
    %v195 = vpop.f32.mrf.mxu0
    %v196 = vadd.f32 %v71, %v195
    %197 = vmatprep.mubr.f32.mxu0 0.0
    %198 = vmatmul.mubr.f32.gmra.mxu0 %v101
    %v199 = vpop.f32.mrf.mxu0
    %v200 = vadd.f32 %v67, %v199
    %v201 = vpop.f32.mrf.mxu0
    %v202 = vadd.f32 %v71, %v201
    %203 = vdwg.mxu0
    %204 = vmatprep.subr.mxu0 0.0
    %205 = vmatpush1.msra.mxu0 0.0
    %206 = vmatprep.subr.mxu0 0.0
    %207 = vmatpush1.msra.mxu0 0.0
    %208 = vmatprep.subr.mxu0 0.0
    %209 = vmatpush1.msra.mxu0 0.0
    %210 = vmatprep.subr.mxu0 0.0
    %211 = vmatpush1.msra.mxu0 0.0
    %212 = vmatprep.subr.mxu0 0.0
    %213 = vmatpush1.msra.mxu0 0.0
    %214 = vmatprep.subr.mxu0 0.0
    %215 = vmatpush1.msra.mxu0 0.0
    %216 = vmatprep.subr.mxu0 0.0
    %217 = vmatpush1.msra.mxu0 0.0
    %218 = vmatprep.subr.mxu0 0.0
    %219 = vmatpush1.msra.mxu0 0.0
    %220 = vmatprep.subr.mxu0 0.0
    %221 = vmatpush1.msra.mxu0 0.0
    %222 = vmatprep.subr.mxu0 0.0
    %223 = vmatpush1.msra.mxu0 0.0
    %224 = vmatprep.subr.mxu0 0.0
    %225 = vmatpush1.msra.mxu0 0.0
    %226 = vmatprep.subr.mxu0 0.0
    %227 = vmatpush1.msra.mxu0 0.0
    %228 = vmatprep.subr.mxu0 0.0
    %229 = vmatpush1.msra.mxu0 0.0
    %230 = vmatprep.subr.mxu0 0.0
    %231 = vmatpush1.msra.mxu0 0.0
    %232 = vmatprep.subr.mxu0 0.0
    %233 = vmatpush1.msra.mxu0 0.0
    %234 = vmatprep.subr.mxu0 %v61
    %235 = vmatpush1.msra.mxu0 %v60
    %236 = vmatprep.subr.mxu0 0.0
    %237 = vmatpush2.msra.mxu0 0.0
    %238 = vmatprep.subr.mxu0 0.0
    %239 = vmatpush2.msra.mxu0 0.0
    %240 = vmatprep.subr.mxu0 0.0
    %241 = vmatpush2.msra.mxu0 0.0
    %242 = vmatprep.subr.mxu0 0.0
    %243 = vmatpush2.msra.mxu0 0.0
    %244 = vmatprep.subr.mxu0 0.0
    %245 = vmatpush2.msra.mxu0 0.0
    %246 = vmatprep.subr.mxu0 0.0
    %247 = vmatpush2.msra.mxu0 0.0
    %248 = vmatprep.subr.mxu0 0.0
    %249 = vmatpush2.msra.mxu0 0.0
    %250 = vmatprep.subr.mxu0 0.0
    %251 = vmatpush2.msra.mxu0 0.0
    %252 = vmatprep.subr.mxu0 0.0
    %253 = vmatpush2.msra.mxu0 0.0
    %254 = vmatprep.subr.mxu0 0.0
    %255 = vmatpush2.msra.mxu0 0.0
    %256 = vmatprep.subr.mxu0 0.0
    %257 = vmatpush2.msra.mxu0 0.0
    %258 = vmatprep.subr.mxu0 0.0
    %259 = vmatpush2.msra.mxu0 0.0
    %260 = vmatprep.subr.mxu0 0.0
    %261 = vmatpush2.msra.mxu0 0.0
    %262 = vmatprep.subr.mxu0 0.0
    %263 = vmatpush2.msra.mxu0 0.0
    %264 = vmatprep.subr.mxu0 0.0
    %265 = vmatpush2.msra.mxu0 0.0
    %266 = vmatprep.subr.mxu0 0.0
    %267 = vmatpush2.msra.mxu0 0.0
    %268 = vmatprep.mubr.f32.mxu0 0.0
    %269 = vmatmul.mubr.f32.gmra.mxu0 %v86
    %v270 = vpop.f32.mrf.mxu0
    %v271 = vadd.f32 %v75, %v270
    %v272 = vpop.f32.mrf.mxu0
    %v273 = vadd.f32 %v79, %v272
    %274 = vmatprep.mubr.f32.mxu0 0.0
    %275 = vmatmul.mubr.f32.gmra.mxu0 %v89
    %v276 = vpop.f32.mrf.mxu0
    %v277 = vadd.f32 %v75, %v276
    %v278 = vpop.f32.mrf.mxu0
    %v279 = vadd.f32 %v79, %v278
    %280 = vmatprep.mubr.f32.mxu0 0.0
    %281 = vmatmul.mubr.f32.gmra.mxu0 %v92
    %v282 = vpop.f32.mrf.mxu0
    %v283 = vadd.f32 %v75, %v282
    %v284 = vpop.f32.mrf.mxu0
    %v285 = vadd.f32 %v79, %v284
    %286 = vmatprep.mubr.f32.mxu0 0.0
    %287 = vmatmul.mubr.f32.gmra.mxu0 %v95
    %v288 = vpop.f32.mrf.mxu0
    %v289 = vadd.f32 %v75, %v288
    %v290 = vpop.f32.mrf.mxu0
    %v291 = vadd.f32 %v79, %v290
    %292 = vmatprep.mubr.f32.mxu0 0.0
    %293 = vmatmul.mubr.f32.gmra.mxu0 %v98
    %v294 = vpop.f32.mrf.mxu0
    %v295 = vadd.f32 %v75, %v294
    %v296 = vpop.f32.mrf.mxu0
    %v297 = vadd.f32 %v79, %v296
    %298 = vmatprep.mubr.f32.mxu0 0.0
    %299 = vmatmul.mubr.f32.gmra.mxu0 %v101
    %v300 = vpop.f32.mrf.mxu0
    %v301 = vadd.f32 %v75, %v300
    %v302 = vpop.f32.mrf.mxu0
    %v303 = vadd.f32 %v79, %v302
    %304 = vdwg.mxu0
    %305 = vst [vmem:[#allocation2] sm:$0xff] %v170
    %306 = vst [vmem:[#allocation2 + $0x8] sm:$0xff] %v172
    %307 = vst [vmem:[#allocation2 + $0x10] sm:$0xff] %v271
    %308 = vst [vmem:[#allocation2 + $0x18] sm:$0xff] %v273
    %309 = vst [vmem:[#allocation2 + $0x20] sm:$0xff] %v176
    %310 = vst [vmem:[#allocation2 + $0x28] sm:$0xff] %v178
    %311 = vst [vmem:[#allocation2 + $0x30] sm:$0xff] %v277
    %312 = vst [vmem:[#allocation2 + $0x38] sm:$0xff] %v279
    %313 = vst [vmem:[#allocation2 + $0x40] sm:$0xff] %v182
    %314 = vst [vmem:[#allocation2 + $0x48] sm:$0xff] %v184
    %315 = vst [vmem:[#allocation2 + $0x50] sm:$0xff] %v283
    %316 = vst [vmem:[#allocation2 + $0x58] sm:$0xff] %v285
    %317 = vst [vmem:[#allocation2 + $0x60] sm:$0xff] %v188
    %318 = vst [vmem:[#allocation2 + $0x68] sm:$0xff] %v190
    %319 = vst [vmem:[#allocation2 + $0x70] sm:$0xff] %v289
    %320 = vst [vmem:[#allocation2 + $0x78] sm:$0xff] %v291
    %321 = vst [vmem:[#allocation2 + $0x80] sm:$0xff] %v194
    %322 = vst [vmem:[#allocation2 + $0x88] sm:$0xff] %v196
    %323 = vst [vmem:[#allocation2 + $0x90] sm:$0xff] %v295
    %324 = vst [vmem:[#allocation2 + $0x98] sm:$0xff] %v297
    %325 = vst [vmem:[#allocation2 + $0xa0] sm:$0xff] %v200
    %326 = vst [vmem:[#allocation2 + $0xa8] sm:$0xff] %v202
    %327 = vst [vmem:[#allocation2 + $0xb0] sm:$0xff] %v301
    %328 = vst [vmem:[#allocation2 + $0xb8] sm:$0xff] %v303
    %v329 = vld [vmem:[%s1] sm:$0xff]
    %s330 = smul.u32 0, 4
    %s331 = smul.addr %s330, 8
    %s332 = scalar_lea.vmem [#allocation2], %s331
    %v333 = vld [vmem:[%s332] sm:$0xff]
    %v334 = vld [vmem:[%s332 + $0x8] sm:$0xff]
    %v335 = vld [vmem:[%s332 + $0x10] sm:$0xff]
    %v336 = vld [vmem:[%s332 + $0x18] sm:$0xff]
    %v337 = vld [vmem:[#allocation4] sm:$0xff]
    %v338 = vld [vmem:[#allocation4 + $0x20] sm:$0xff]
    %v339 = vld [vmem:[#allocation4 + $0x40] sm:$0xff]
    %v340 = vld [vmem:[#allocation4 + $0x60] sm:$0xff]
    %v341 = vld [vmem:[#allocation4 + $0x80] sm:$0xff]
    %v342 = vld [vmem:[#allocation4 + $0xa0] sm:$0xff]
    %v343 = vld [vmem:[#allocation4 + $0xc0] sm:$0xff]
    %v344 = vld [vmem:[#allocation4 + $0xe0] sm:$0xff]
    %v345 = vld [vmem:[#allocation4 + $0x100] sm:$0xff]
    %v346 = vld [vmem:[#allocation4 + $0x120] sm:$0xff]
    %v347 = vld [vmem:[#allocation4 + $0x140] sm:$0xff]
    %v348 = vld [vmem:[#allocation4 + $0x160] sm:$0xff]
    %v349 = vld [vmem:[#allocation4 + $0x180] sm:$0xff]
    %v350 = vld [vmem:[#allocation4 + $0x1a0] sm:$0xff]
    %v351 = vld [vmem:[#allocation4 + $0x1c0] sm:$0xff]
    %v352 = vld [vmem:[#allocation4 + $0x1e0] sm:$0xff]
    %353 = vmatprep.subr.mxu0 0.0
    %354 = vmatpush1.msra.mxu0 %v352
    %355 = vmatprep.subr.mxu0 0.0
    %356 = vmatpush1.msra.mxu0 %v351
    %357 = vmatprep.subr.mxu0 0.0
    %358 = vmatpush1.msra.mxu0 %v350
    %359 = vmatprep.subr.mxu0 0.0
    %360 = vmatpush1.msra.mxu0 %v349
    %361 = vmatprep.subr.mxu0 0.0
    %362 = vmatpush1.msra.mxu0 %v348
    %363 = vmatprep.subr.mxu0 0.0
    %364 = vmatpush1.msra.mxu0 %v347
    %365 = vmatprep.subr.mxu0 0.0
    %366 = vmatpush1.msra.mxu0 %v346
    %367 = vmatprep.subr.mxu0 0.0
    %368 = vmatpush1.msra.mxu0 %v345
    %369 = vmatprep.subr.mxu0 0.0
    %370 = vmatpush1.msra.mxu0 %v344
    %371 = vmatprep.subr.mxu0 0.0
    %372 = vmatpush1.msra.mxu0 %v343
    %373 = vmatprep.subr.mxu0 0.0
    %374 = vmatpush1.msra.mxu0 %v342
    %375 = vmatprep.subr.mxu0 0.0
    %376 = vmatpush1.msra.mxu0 %v341
    %377 = vmatprep.subr.mxu0 0.0
    %378 = vmatpush1.msra.mxu0 %v340
    %379 = vmatprep.subr.mxu0 0.0
    %380 = vmatpush1.msra.mxu0 %v339
    %381 = vmatprep.subr.mxu0 0.0
    %382 = vmatpush1.msra.mxu0 %v338
    %383 = vmatprep.subr.mxu0 0.0
    %384 = vmatpush1.msra.mxu0 %v337
    %385 = vmatprep.subr.mxu0 0.0
    %386 = vmatpush2.msra.mxu0 0.0
    %387 = vmatprep.subr.mxu0 0.0
    %388 = vmatpush2.msra.mxu0 0.0
    %389 = vmatprep.subr.mxu0 0.0
    %390 = vmatpush2.msra.mxu0 0.0
    %391 = vmatprep.subr.mxu0 0.0
    %392 = vmatpush2.msra.mxu0 0.0
    %393 = vmatprep.subr.mxu0 0.0
    %394 = vmatpush2.msra.mxu0 0.0
    %395 = vmatprep.subr.mxu0 0.0
    %396 = vmatpush2.msra.mxu0 0.0
    %397 = vmatprep.subr.mxu0 0.0
    %398 = vmatpush2.msra.mxu0 0.0
    %399 = vmatprep.subr.mxu0 0.0
    %400 = vmatpush2.msra.mxu0 0.0
    %401 = vmatprep.subr.mxu0 0.0
    %402 = vmatpush2.msra.mxu0 0.0
    %403 = vmatprep.subr.mxu0 0.0
    %404 = vmatpush2.msra.mxu0 0.0
    %405 = vmatprep.subr.mxu0 0.0
    %406 = vmatpush2.msra.mxu0 0.0
    %407 = vmatprep.subr.mxu0 0.0
    %408 = vmatpush2.msra.mxu0 0.0
    %409 = vmatprep.subr.mxu0 0.0
    %410 = vmatpush2.msra.mxu0 0.0
    %411 = vmatprep.subr.mxu0 0.0
    %412 = vmatpush2.msra.mxu0 0.0
    %413 = vmatprep.subr.mxu0 0.0
    %414 = vmatpush2.msra.mxu0 0.0
    %415 = vmatprep.subr.mxu0 0.0
    %416 = vmatpush2.msra.mxu0 0.0
    %417 = vmatprep.mubr.f32.mxu0 0.0
    %418 = vmatmul.mubr.f32.gmra.mxu0 0.0
    %v419 = vpop.f32.mrf.mxu0
    %v420 = vadd.f32 0.0, %v419
    %v421 = vpop.f32.mrf.mxu0
    %422 = vdwg.mxu0
    %v423 = vadd.f32 %v333, %v420
    %v424 = vxor.u32 %v423, 2147483648
    %v425 = vmul.f32 %v424, 1.442695
    %v426 = vpow.pop %v425
    %v427 = vadd.f32 %v426, 1.0
    %v428 = vrcp.pop %v427
    %v429 = vmul.f32 1.0, %v428
    %v430 = vld [vmem:[#allocation4 + $0x8] sm:$0xff]
    %v431 = vld [vmem:[#allocation4 + $0x28] sm:$0xff]
    %v432 = vld [vmem:[#allocation4 + $0x48] sm:$0xff]
    %v433 = vld [vmem:[#allocation4 + $0x68] sm:$0xff]
    %v434 = vld [vmem:[#allocation4 + $0x88] sm:$0xff]
    %v435 = vld [vmem:[#allocation4 + $0xa8] sm:$0xff]
    %v436 = vld [vmem:[#allocation4 + $0xc8] sm:$0xff]
    %v437 = vld [vmem:[#allocation4 + $0xe8] sm:$0xff]
    %v438 = vld [vmem:[#allocation4 + $0x108] sm:$0xff]
    %v439 = vld [vmem:[#allocation4 + $0x128] sm:$0xff]
    %v440 = vld [vmem:[#allocation4 + $0x148] sm:$0xff]
    %v441 = vld [vmem:[#allocation4 + $0x168] sm:$0xff]
    %v442 = vld [vmem:[#allocation4 + $0x188] sm:$0xff]
    %v443 = vld [vmem:[#allocation4 + $0x1a8] sm:$0xff]
    %v444 = vld [vmem:[#allocation4 + $0x1c8] sm:$0xff]
    %v445 = vld [vmem:[#allocation4 + $0x1e8] sm:$0xff]
    %446 = vmatprep.subr.mxu0 0.0
    %447 = vmatpush1.msra.mxu0 %v445
    %448 = vmatprep.subr.mxu0 0.0
    %449 = vmatpush1.msra.mxu0 %v444
    %450 = vmatprep.subr.mxu0 0.0
    %451 = vmatpush1.msra.mxu0 %v443
    %452 = vmatprep.subr.mxu0 0.0
    %453 = vmatpush1.msra.mxu0 %v442
    %454 = vmatprep.subr.mxu0 0.0
    %455 = vmatpush1.msra.mxu0 %v441
    %456 = vmatprep.subr.mxu0 0.0
    %457 = vmatpush1.msra.mxu0 %v440
    %458 = vmatprep.subr.mxu0 0.0
    %459 = vmatpush1.msra.mxu0 %v439
    %460 = vmatprep.subr.mxu0 0.0
    %461 = vmatpush1.msra.mxu0 %v438
    %462 = vmatprep.subr.mxu0 0.0
    %463 = vmatpush1.msra.mxu0 %v437
    %464 = vmatprep.subr.mxu0 0.0
    %465 = vmatpush1.msra.mxu0 %v436
    %466 = vmatprep.subr.mxu0 0.0
    %467 = vmatpush1.msra.mxu0 %v435
    %468 = vmatprep.subr.mxu0 0.0
    %469 = vmatpush1.msra.mxu0 %v434
    %470 = vmatprep.subr.mxu0 0.0
    %471 = vmatpush1.msra.mxu0 %v433
    %472 = vmatprep.subr.mxu0 0.0
    %473 = vmatpush1.msra.mxu0 %v432
    %474 = vmatprep.subr.mxu0 0.0
    %475 = vmatpush1.msra.mxu0 %v431
    %476 = vmatprep.subr.mxu0 0.0
    %477 = vmatpush1.msra.mxu0 %v430
    %478 = vmatprep.subr.mxu0 0.0
    %479 = vmatpush2.msra.mxu0 0.0
    %480 = vmatprep.subr.mxu0 0.0
    %481 = vmatpush2.msra.mxu0 0.0
    %482 = vmatprep.subr.mxu0 0.0
    %483 = vmatpush2.msra.mxu0 0.0
    %484 = vmatprep.subr.mxu0 0.0
    %485 = vmatpush2.msra.mxu0 0.0
    %486 = vmatprep.subr.mxu0 0.0
    %487 = vmatpush2.msra.mxu0 0.0
    %488 = vmatprep.subr.mxu0 0.0
    %489 = vmatpush2.msra.mxu0 0.0
    %490 = vmatprep.subr.mxu0 0.0
    %491 = vmatpush2.msra.mxu0 0.0
    %492 = vmatprep.subr.mxu0 0.0
    %493 = vmatpush2.msra.mxu0 0.0
    %494 = vmatprep.subr.mxu0 0.0
    %495 = vmatpush2.msra.mxu0 0.0
    %496 = vmatprep.subr.mxu0 0.0
    %497 = vmatpush2.msra.mxu0 0.0
    %498 = vmatprep.subr.mxu0 0.0
    %499 = vmatpush2.msra.mxu0 0.0
    %500 = vmatprep.subr.mxu0 0.0
    %501 = vmatpush2.msra.mxu0 0.0
    %502 = vmatprep.subr.mxu0 0.0
    %503 = vmatpush2.msra.mxu0 0.0
    %504 = vmatprep.subr.mxu0 0.0
    %505 = vmatpush2.msra.mxu0 0.0
    %506 = vmatprep.subr.mxu0 0.0
    %507 = vmatpush2.msra.mxu0 0.0
    %508 = vmatprep.subr.mxu0 0.0
    %509 = vmatpush2.msra.mxu0 0.0
    %510 = vmatprep.mubr.f32.mxu0 0.0
    %511 = vmatmul.mubr.f32.gmra.mxu0 0.0
    %v512 = vpop.f32.mrf.mxu0
    %v513 = vadd.f32 0.0, %v512
    %v514 = vpop.f32.mrf.mxu0
    %515 = vdwg.mxu0
    %v516 = vadd.f32 %v334, %v513
    %v517 = vxor.u32 %v516, 2147483648
    %v518 = vmul.f32 %v517, 1.442695
    %v519 = vpow.pop %v518
    %v520 = vadd.f32 %v519, 1.0
    %v521 = vrcp.pop %v520
    %v522 = vmul.f32 1.0, %v521
    %v523 = vld [vmem:[#allocation4 + $0x10] sm:$0xff]
    %v524 = vld [vmem:[#allocation4 + $0x30] sm:$0xff]
    %v525 = vld [vmem:[#allocation4 + $0x50] sm:$0xff]
    %v526 = vld [vmem:[#allocation4 + $0x70] sm:$0xff]
    %v527 = vld [vmem:[#allocation4 + $0x90] sm:$0xff]
    %v528 = vld [vmem:[#allocation4 + $0xb0] sm:$0xff]
    %v529 = vld [vmem:[#allocation4 + $0xd0] sm:$0xff]
    %v530 = vld [vmem:[#allocation4 + $0xf0] sm:$0xff]
    %v531 = vld [vmem:[#allocation4 + $0x110] sm:$0xff]
    %v532 = vld [vmem:[#allocation4 + $0x130] sm:$0xff]
    %v533 = vld [vmem:[#allocation4 + $0x150] sm:$0xff]
    %v534 = vld [vmem:[#allocation4 + $0x170] sm:$0xff]
    %v535 = vld [vmem:[#allocation4 + $0x190] sm:$0xff]
    %v536 = vld [vmem:[#allocation4 + $0x1b0] sm:$0xff]
    %v537 = vld [vmem:[#allocation4 + $0x1d0] sm:$0xff]
    %v538 = vld [vmem:[#allocation4 + $0x1f0] sm:$0xff]
    %539 = vmatprep.subr.mxu0 0.0
    %540 = vmatpush1.msra.mxu0 %v538
    %541 = vmatprep.subr.mxu0 0.0
    %542 = vmatpush1.msra.mxu0 %v537
    %543 = vmatprep.subr.mxu0 0.0
    %544 = vmatpush1.msra.mxu0 %v536
    %545 = vmatprep.subr.mxu0 0.0
    %546 = vmatpush1.msra.mxu0 %v535
    %547 = vmatprep.subr.mxu0 0.0
    %548 = vmatpush1.msra.mxu0 %v534
    %549 = vmatprep.subr.mxu0 0.0
    %550 = vmatpush1.msra.mxu0 %v533
    %551 = vmatprep.subr.mxu0 0.0
    %552 = vmatpush1.msra.mxu0 %v532
    %553 = vmatprep.subr.mxu0 0.0
    %554 = vmatpush1.msra.mxu0 %v531
    %555 = vmatprep.subr.mxu0 0.0
    %556 = vmatpush1.msra.mxu0 %v530
    %557 = vmatprep.subr.mxu0 0.0
    %558 = vmatpush1.msra.mxu0 %v529
    %559 = vmatprep.subr.mxu0 0.0
    %560 = vmatpush1.msra.mxu0 %v528
    %561 = vmatprep.subr.mxu0 0.0
    %562 = vmatpush1.msra.mxu0 %v527
    %563 = vmatprep.subr.mxu0 0.0
    %564 = vmatpush1.msra.mxu0 %v526
    %565 = vmatprep.subr.mxu0 0.0
    %566 = vmatpush1.msra.mxu0 %v525
    %567 = vmatprep.subr.mxu0 0.0
    %568 = vmatpush1.msra.mxu0 %v524
    %569 = vmatprep.subr.mxu0 0.0
    %570 = vmatpush1.msra.mxu0 %v523
    %571 = vmatprep.subr.mxu0 0.0
    %572 = vmatpush2.msra.mxu0 0.0
    %573 = vmatprep.subr.mxu0 0.0
    %574 = vmatpush2.msra.mxu0 0.0
    %575 = vmatprep.subr.mxu0 0.0
    %576 = vmatpush2.msra.mxu0 0.0
    %577 = vmatprep.subr.mxu0 0.0
    %578 = vmatpush2.msra.mxu0 0.0
    %579 = vmatprep.subr.mxu0 0.0
    %580 = vmatpush2.msra.mxu0 0.0
    %581 = vmatprep.subr.mxu0 0.0
    %582 = vmatpush2.msra.mxu0 0.0
    %583 = vmatprep.subr.mxu0 0.0
    %584 = vmatpush2.msra.mxu0 0.0
    %585 = vmatprep.subr.mxu0 0.0
    %586 = vmatpush2.msra.mxu0 0.0
    %587 = vmatprep.subr.mxu0 0.0
    %588 = vmatpush2.msra.mxu0 0.0
    %589 = vmatprep.subr.mxu0 0.0
    %590 = vmatpush2.msra.mxu0 0.0
    %591 = vmatprep.subr.mxu0 0.0
    %592 = vmatpush2.msra.mxu0 0.0
    %593 = vmatprep.subr.mxu0 0.0
    %594 = vmatpush2.msra.mxu0 0.0
    %595 = vmatprep.subr.mxu0 0.0
    %596 = vmatpush2.msra.mxu0 0.0
    %597 = vmatprep.subr.mxu0 0.0
    %598 = vmatpush2.msra.mxu0 0.0
    %599 = vmatprep.subr.mxu0 0.0
    %600 = vmatpush2.msra.mxu0 0.0
    %601 = vmatprep.subr.mxu0 0.0
    %602 = vmatpush2.msra.mxu0 0.0
    %603 = vmatprep.mubr.f32.mxu0 0.0
    %604 = vmatmul.mubr.f32.gmra.mxu0 0.0
    %v605 = vpop.f32.mrf.mxu0
    %v606 = vadd.f32 0.0, %v605
    %v607 = vpop.f32.mrf.mxu0
    %608 = vdwg.mxu0
    %v609 = vadd.f32 %v335, %v606
    %v610 = vtanh.pop %v609
    %v611 = vld [vmem:[#allocation4 + $0x18] sm:$0xff]
    %v612 = vld [vmem:[#allocation4 + $0x38] sm:$0xff]
    %v613 = vld [vmem:[#allocation4 + $0x58] sm:$0xff]
    %v614 = vld [vmem:[#allocation4 + $0x78] sm:$0xff]
    %v615 = vld [vmem:[#allocation4 + $0x98] sm:$0xff]
    %v616 = vld [vmem:[#allocation4 + $0xb8] sm:$0xff]
    %v617 = vld [vmem:[#allocation4 + $0xd8] sm:$0xff]
    %v618 = vld [vmem:[#allocation4 + $0xf8] sm:$0xff]
    %v619 = vld [vmem:[#allocation4 + $0x118] sm:$0xff]
    %v620 = vld [vmem:[#allocation4 + $0x138] sm:$0xff]
    %v621 = vld [vmem:[#allocation4 + $0x158] sm:$0xff]
    %v622 = vld [vmem:[#allocation4 + $0x178] sm:$0xff]
    %v623 = vld [vmem:[#allocation4 + $0x198] sm:$0xff]
    %v624 = vld [vmem:[#allocation4 + $0x1b8] sm:$0xff]
    %v625 = vld [vmem:[#allocation4 + $0x1d8] sm:$0xff]
    %v626 = vld [vmem:[#allocation4 + $0x1f8] sm:$0xff]
    %627 = vmatprep.subr.mxu0 0.0
    %628 = vmatpush1.msra.mxu0 %v626
    %629 = vmatprep.subr.mxu0 0.0
    %630 = vmatpush1.msra.mxu0 %v625
    %631 = vmatprep.subr.mxu0 0.0
    %632 = vmatpush1.msra.mxu0 %v624
    %633 = vmatprep.subr.mxu0 0.0
    %634 = vmatpush1.msra.mxu0 %v623
    %635 = vmatprep.subr.mxu0 0.0
    %636 = vmatpush1.msra.mxu0 %v622
    %637 = vmatprep.subr.mxu0 0.0
    %638 = vmatpush1.msra.mxu0 %v621
    %639 = vmatprep.subr.mxu0 0.0
    %640 = vmatpush1.msra.mxu0 %v620
    %641 = vmatprep.subr.mxu0 0.0
    %642 = vmatpush1.msra.mxu0 %v619
    %643 = vmatprep.subr.mxu0 0.0
    %644 = vmatpush1.msra.mxu0 %v618
    %645 = vmatprep.subr.mxu0 0.0
    %646 = vmatpush1.msra.mxu0 %v617
    %647 = vmatprep.subr.mxu0 0.0
    %648 = vmatpush1.msra.mxu0 %v616
    %649 = vmatprep.subr.mxu0 0.0
    %650 = vmatpush1.msra.mxu0 %v615
    %651 = vmatprep.subr.mxu0 0.0
    %652 = vmatpush1.msra.mxu0 %v614
    %653 = vmatprep.subr.mxu0 0.0
    %654 = vmatpush1.msra.mxu0 %v613
    %655 = vmatprep.subr.mxu0 0.0
    %656 = vmatpush1.msra.mxu0 %v612
    %657 = vmatprep.subr.mxu0 0.0
    %658 = vmatpush1.msra.mxu0 %v611
    %659 = vmatprep.subr.mxu0 0.0
    %660 = vmatpush2.msra.mxu0 0.0
    %661 = vmatprep.subr.mxu0 0.0
    %662 = vmatpush2.msra.mxu0 0.0
    %663 = vmatprep.subr.mxu0 0.0
    %664 = vmatpush2.msra.mxu0 0.0
    %665 = vmatprep.subr.mxu0 0.0
    %666 = vmatpush2.msra.mxu0 0.0
    %667 = vmatprep.subr.mxu0 0.0
    %668 = vmatpush2.msra.mxu0 0.0
    %669 = vmatprep.subr.mxu0 0.0
    %670 = vmatpush2.msra.mxu0 0.0
    %671 = vmatprep.subr.mxu0 0.0
    %672 = vmatpush2.msra.mxu0 0.0
    %673 = vmatprep.subr.mxu0 0.0
    %674 = vmatpush2.msra.mxu0 0.0
    %675 = vmatprep.subr.mxu0 0.0
    %676 = vmatpush2.msra.mxu0 0.0
    %677 = vmatprep.subr.mxu0 0.0
    %678 = vmatpush2.msra.mxu0 0.0
    %679 = vmatprep.subr.mxu0 0.0
    %680 = vmatpush2.msra.mxu0 0.0
    %681 = vmatprep.subr.mxu0 0.0
    %682 = vmatpush2.msra.mxu0 0.0
    %683 = vmatprep.subr.mxu0 0.0
    %684 = vmatpush2.msra.mxu0 0.0
    %685 = vmatprep.subr.mxu0 0.0
    %686 = vmatpush2.msra.mxu0 0.0
    %687 = vmatprep.subr.mxu0 0.0
    %688 = vmatpush2.msra.mxu0 0.0
    %689 = vmatprep.subr.mxu0 0.0
    %690 = vmatpush2.msra.mxu0 0.0
    %691 = vmatprep.mubr.f32.mxu0 0.0
    %692 = vmatmul.mubr.f32.gmra.mxu0 0.0
    %v693 = vpop.f32.mrf.mxu0
    %v694 = vadd.f32 0.0, %v693
    %v695 = vpop.f32.mrf.mxu0
    %696 = vdwg.mxu0
    %v697 = vadd.f32 %v336, %v694
    %v698 = vxor.u32 %v697, 2147483648
    %v699 = vmul.f32 %v698, 1.442695
    %v700 = vpow.pop %v699
    %v701 = vadd.f32 %v700, 1.0
    %v702 = vrcp.pop %v701
    %v703 = vmul.f32 1.0, %v702
    %v704 = vmul.f32 %v522, 0.0
    %v705 = vmul.f32 %v429, %v610
    %v706 = vadd.f32 %v704, %v705
    %v707 = vtanh.pop %v706
    %v708 = vmul.f32 %v703, %v707
    %vm709 = vcmp.gt.s32.totalorder %v329, 0
    %v710 = vsel %vm709, 1, 0
    %711 = vset.pattern.permute.xlu0 0
    %712 = vperm.xlu0 %711, %v710
    %v713 = vpop.permute.xlu0 %712
    %vm714 = vcmp.eq.s32.totalorder %v713, 1
    %v715 = vsel %vm714, %v708, 0.0
    %v716 = vsel %vm714, %v706, 0.0
    %s717 = smul.u32 1, 4
    %s718 = smul.addr %s717, 8
    %s719 = scalar_lea.vmem [#allocation2], %s718
    %v720 = vld [vmem:[%s719] sm:$0xff]
    %v721 = vld [vmem:[%s719 + $0x8] sm:$0xff]
    %v722 = vld [vmem:[%s719 + $0x10] sm:$0xff]
    %v723 = vld [vmem:[%s719 + $0x18] sm:$0xff]
    %724 = vmatprep.subr.mxu0 0.0
    %725 = vmatpush1.msra.mxu0 %v352
    %726 = vmatprep.subr.mxu0 0.0
    %727 = vmatpush1.msra.mxu0 %v351
    %728 = vmatprep.subr.mxu0 0.0
    %729 = vmatpush1.msra.mxu0 %v350
    %730 = vmatprep.subr.mxu0 0.0
    %731 = vmatpush1.msra.mxu0 %v349
    %732 = vmatprep.subr.mxu0 0.0
    %733 = vmatpush1.msra.mxu0 %v348
    %734 = vmatprep.subr.mxu0 0.0
    %735 = vmatpush1.msra.mxu0 %v347
    %736 = vmatprep.subr.mxu0 0.0
    %737 = vmatpush1.msra.mxu0 %v346
    %738 = vmatprep.subr.mxu0 0.0
    %739 = vmatpush1.msra.mxu0 %v345
    %740 = vmatprep.subr.mxu0 0.0
    %741 = vmatpush1.msra.mxu0 %v344
    %742 = vmatprep.subr.mxu0 0.0
    %743 = vmatpush1.msra.mxu0 %v343
    %744 = vmatprep.subr.mxu0 0.0
    %745 = vmatpush1.msra.mxu0 %v342
    %746 = vmatprep.subr.mxu0 0.0
    %747 = vmatpush1.msra.mxu0 %v341
    %748 = vmatprep.subr.mxu0 0.0
    %749 = vmatpush1.msra.mxu0 %v340
    %750 = vmatprep.subr.mxu0 0.0
    %751 = vmatpush1.msra.mxu0 %v339
    %752 = vmatprep.subr.mxu0 0.0
    %753 = vmatpush1.msra.mxu0 %v338
    %754 = vmatprep.subr.mxu0 0.0
    %755 = vmatpush1.msra.mxu0 %v337
    %756 = vmatprep.subr.mxu0 0.0
    %757 = vmatpush2.msra.mxu0 0.0
    %758 = vmatprep.subr.mxu0 0.0
    %759 = vmatpush2.msra.mxu0 0.0
    %760 = vmatprep.subr.mxu0 0.0
    %761 = vmatpush2.msra.mxu0 0.0
    %762 = vmatprep.subr.mxu0 0.0
    %763 = vmatpush2.msra.mxu0 0.0
    %764 = vmatprep.subr.mxu0 0.0
    %765 = vmatpush2.msra.mxu0 0.0
    %766 = vmatprep.subr.mxu0 0.0
    %767 = vmatpush2.msra.mxu0 0.0
    %768 = vmatprep.subr.mxu0 0.0
    %769 = vmatpush2.msra.mxu0 0.0
    %770 = vmatprep.subr.mxu0 0.0
    %771 = vmatpush2.msra.mxu0 0.0
    %772 = vmatprep.subr.mxu0 0.0
    %773 = vmatpush2.msra.mxu0 0.0
    %774 = vmatprep.subr.mxu0 0.0
    %775 = vmatpush2.msra.mxu0 0.0
    %776 = vmatprep.subr.mxu0 0.0
    %777 = vmatpush2.msra.mxu0 0.0
    %778 = vmatprep.subr.mxu0 0.0
    %779 = vmatpush2.msra.mxu0 0.0
    %780 = vmatprep.subr.mxu0 0.0
    %781 = vmatpush2.msra.mxu0 0.0
    %782 = vmatprep.subr.mxu0 0.0
    %783 = vmatpush2.msra.mxu0 0.0
    %784 = vmatprep.subr.mxu0 0.0
    %785 = vmatpush2.msra.mxu0 0.0
    %786 = vmatprep.subr.mxu0 0.0
    %787 = vmatpush2.msra.mxu0 0.0
    %788 = vmatprep.mubr.f32.mxu0 0.0
    %789 = vmatmul.mubr.f32.gmra.mxu0 %v715
    %v790 = vpop.f32.mrf.mxu0
    %v791 = vadd.f32 0.0, %v790
    %v792 = vpop.f32.mrf.mxu0
    %793 = vdwg.mxu0
    %v794 = vadd.f32 %v720, %v791
    %v795 = vxor.u32 %v794, 2147483648
    %v796 = vmul.f32 %v795, 1.442695
    %v797 = vpow.pop %v796
    %v798 = vadd.f32 %v797, 1.0
    %v799 = vrcp.pop %v798
    %v800 = vmul.f32 1.0, %v799
    %801 = vmatprep.subr.mxu0 0.0
    %802 = vmatpush1.msra.mxu0 %v445
    %803 = vmatprep.subr.mxu0 0.0
    %804 = vmatpush1.msra.mxu0 %v444
    %805 = vmatprep.subr.mxu0 0.0
    %806 = vmatpush1.msra.mxu0 %v443
    %807 = vmatprep.subr.mxu0 0.0
    %808 = vmatpush1.msra.mxu0 %v442
    %809 = vmatprep.subr.mxu0 0.0
    %810 = vmatpush1.msra.mxu0 %v441
    %811 = vmatprep.subr.mxu0 0.0
    %812 = vmatpush1.msra.mxu0 %v440
    %813 = vmatprep.subr.mxu0 0.0
    %814 = vmatpush1.msra.mxu0 %v439
    %815 = vmatprep.subr.mxu0 0.0
    %816 = vmatpush1.msra.mxu0 %v438
    %817 = vmatprep.subr.mxu0 0.0
    %818 = vmatpush1.msra.mxu0 %v437
    %819 = vmatprep.subr.mxu0 0.0
    %820 = vmatpush1.msra.mxu0 %v436
    %821 = vmatprep.subr.mxu0 0.0
    %822 = vmatpush1.msra.mxu0 %v435
    %823 = vmatprep.subr.mxu0 0.0
    %824 = vmatpush1.msra.mxu0 %v434
    %825 = vmatprep.subr.mxu0 0.0
    %826 = vmatpush1.msra.mxu0 %v433
    %827 = vmatprep.subr.mxu0 0.0
    %828 = vmatpush1.msra.mxu0 %v432
    %829 = vmatprep.subr.mxu0 0.0
    %830 = vmatpush1.msra.mxu0 %v431
    %831 = vmatprep.subr.mxu0 0.0
    %832 = vmatpush1.msra.mxu0 %v430
    %833 = vmatprep.subr.mxu0 0.0
    %834 = vmatpush2.msra.mxu0 0.0
    %835 = vmatprep.subr.mxu0 0.0
    %836 = vmatpush2.msra.mxu0 0.0
    %837 = vmatprep.subr.mxu0 0.0
    %838 = vmatpush2.msra.mxu0 0.0
    %839 = vmatprep.subr.mxu0 0.0
    %840 = vmatpush2.msra.mxu0 0.0
    %841 = vmatprep.subr.mxu0 0.0
    %842 = vmatpush2.msra.mxu0 0.0
    %843 = vmatprep.subr.mxu0 0.0
    %844 = vmatpush2.msra.mxu0 0.0
    %845 = vmatprep.subr.mxu0 0.0
    %846 = vmatpush2.msra.mxu0 0.0
    %847 = vmatprep.subr.mxu0 0.0
    %848 = vmatpush2.msra.mxu0 0.0
    %849 = vmatprep.subr.mxu0 0.0
    %850 = vmatpush2.msra.mxu0 0.0
    %851 = vmatprep.subr.mxu0 0.0
    %852 = vmatpush2.msra.mxu0 0.0
    %853 = vmatprep.subr.mxu0 0.0
    %854 = vmatpush2.msra.mxu0 0.0
    %855 = vmatprep.subr.mxu0 0.0
    %856 = vmatpush2.msra.mxu0 0.0
    %857 = vmatprep.subr.mxu0 0.0
    %858 = vmatpush2.msra.mxu0 0.0
    %859 = vmatprep.subr.mxu0 0.0
    %860 = vmatpush2.msra.mxu0 0.0
    %861 = vmatprep.subr.mxu0 0.0
    %862 = vmatpush2.msra.mxu0 0.0
    %863 = vmatprep.subr.mxu0 0.0
    %864 = vmatpush2.msra.mxu0 0.0
    %865 = vmatprep.mubr.f32.mxu0 0.0
    %866 = vmatmul.mubr.f32.gmra.mxu0 %v715
    %v867 = vpop.f32.mrf.mxu0
    %v868 = vadd.f32 0.0, %v867
    %v869 = vpop.f32.mrf.mxu0
    %870 = vdwg.mxu0
    %v871 = vadd.f32 %v721, %v868
    %v872 = vxor.u32 %v871, 2147483648
    %v873 = vmul.f32 %v872, 1.442695
    %v874 = vpow.pop %v873
    %v875 = vadd.f32 %v874, 1.0
    %v876 = vrcp.pop %v875
    %v877 = vmul.f32 1.0, %v876
    %878 = vmatprep.subr.mxu0 0.0
    %879 = vmatpush1.msra.mxu0 %v538
    %880 = vmatprep.subr.mxu0 0.0
    %881 = vmatpush1.msra.mxu0 %v537
    %882 = vmatprep.subr.mxu0 0.0
    %883 = vmatpush1.msra.mxu0 %v536
    %884 = vmatprep.subr.mxu0 0.0
    %885 = vmatpush1.msra.mxu0 %v535
    %886 = vmatprep.subr.mxu0 0.0
    %887 = vmatpush1.msra.mxu0 %v534
    %888 = vmatprep.subr.mxu0 0.0
    %889 = vmatpush1.msra.mxu0 %v533
    %890 = vmatprep.subr.mxu0 0.0
    %891 = vmatpush1.msra.mxu0 %v532
    %892 = vmatprep.subr.mxu0 0.0
    %893 = vmatpush1.msra.mxu0 %v531
    %894 = vmatprep.subr.mxu0 0.0
    %895 = vmatpush1.msra.mxu0 %v530
    %896 = vmatprep.subr.mxu0 0.0
    %897 = vmatpush1.msra.mxu0 %v529
    %898 = vmatprep.subr.mxu0 0.0
    %899 = vmatpush1.msra.mxu0 %v528
    %900 = vmatprep.subr.mxu0 0.0
    %901 = vmatpush1.msra.mxu0 %v527
    %902 = vmatprep.subr.mxu0 0.0
    %903 = vmatpush1.msra.mxu0 %v526
    %904 = vmatprep.subr.mxu0 0.0
    %905 = vmatpush1.msra.mxu0 %v525
    %906 = vmatprep.subr.mxu0 0.0
    %907 = vmatpush1.msra.mxu0 %v524
    %908 = vmatprep.subr.mxu0 0.0
    %909 = vmatpush1.msra.mxu0 %v523
    %910 = vmatprep.subr.mxu0 0.0
    %911 = vmatpush2.msra.mxu0 0.0
    %912 = vmatprep.subr.mxu0 0.0
    %913 = vmatpush2.msra.mxu0 0.0
    %914 = vmatprep.subr.mxu0 0.0
    %915 = vmatpush2.msra.mxu0 0.0
    %916 = vmatprep.subr.mxu0 0.0
    %917 = vmatpush2.msra.mxu0 0.0
    %918 = vmatprep.subr.mxu0 0.0
    %919 = vmatpush2.msra.mxu0 0.0
    %920 = vmatprep.subr.mxu0 0.0
    %921 = vmatpush2.msra.mxu0 0.0
    %922 = vmatprep.subr.mxu0 0.0
    %923 = vmatpush2.msra.mxu0 0.0
    %924 = vmatprep.subr.mxu0 0.0
    %925 = vmatpush2.msra.mxu0 0.0
    %926 = vmatprep.subr.mxu0 0.0
    %927 = vmatpush2.msra.mxu0 0.0
    %928 = vmatprep.subr.mxu0 0.0
    %929 = vmatpush2.msra.mxu0 0.0
    %930 = vmatprep.subr.mxu0 0.0
    %931 = vmatpush2.msra.mxu0 0.0
    %932 = vmatprep.subr.mxu0 0.0
    %933 = vmatpush2.msra.mxu0 0.0
    %934 = vmatprep.subr.mxu0 0.0
    %935 = vmatpush2.msra.mxu0 0.0
    %936 = vmatprep.subr.mxu0 0.0
    %937 = vmatpush2.msra.mxu0 0.0
    %938 = vmatprep.subr.mxu0 0.0
    %939 = vmatpush2.msra.mxu0 0.0
    %940 = vmatprep.subr.mxu0 0.0
    %941 = vmatpush2.msra.mxu0 0.0
    %942 = vmatprep.mubr.f32.mxu0 0.0
    %943 = vmatmul.mubr.f32.gmra.mxu0 %v715
    %v944 = vpop.f32.mrf.mxu0
    %v945 = vadd.f32 0.0, %v944
    %v946 = vpop.f32.mrf.mxu0
    %947 = vdwg.mxu0
    %v948 = vadd.f32 %v722, %v945
    %v949 = vtanh.pop %v948
    %950 = vmatprep.subr.mxu0 0.0
    %951 = vmatpush1.msra.mxu0 %v626
    %952 = vmatprep.subr.mxu0 0.0
    %953 = vmatpush1.msra.mxu0 %v625
    %954 = vmatprep.subr.mxu0 0.0
    %955 = vmatpush1.msra.mxu0 %v624
    %956 = vmatprep.subr.mxu0 0.0
    %957 = vmatpush1.msra.mxu0 %v623
    %958 = vmatprep.subr.mxu0 0.0
    %959 = vmatpush1.msra.mxu0 %v622
    %960 = vmatprep.subr.mxu0 0.0
    %961 = vmatpush1.msra.mxu0 %v621
    %962 = vmatprep.subr.mxu0 0.0
    %963 = vmatpush1.msra.mxu0 %v620
    %964 = vmatprep.subr.mxu0 0.0
    %965 = vmatpush1.msra.mxu0 %v619
    %966 = vmatprep.subr.mxu0 0.0
    %967 = vmatpush1.msra.mxu0 %v618
    %968 = vmatprep.subr.mxu0 0.0
    %969 = vmatpush1.msra.mxu0 %v617
    %970 = vmatprep.subr.mxu0 0.0
    %971 = vmatpush1.msra.mxu0 %v616
    %972 = vmatprep.subr.mxu0 0.0
    %973 = vmatpush1.msra.mxu0 %v615
    %974 = vmatprep.subr.mxu0 0.0
    %975 = vmatpush1.msra.mxu0 %v614
    %976 = vmatprep.subr.mxu0 0.0
    %977 = vmatpush1.msra.mxu0 %v613
    %978 = vmatprep.subr.mxu0 0.0
    %979 = vmatpush1.msra.mxu0 %v612
    %980 = vmatprep.subr.mxu0 0.0
    %981 = vmatpush1.msra.mxu0 %v611
    %982 = vmatprep.subr.mxu0 0.0
    %983 = vmatpush2.msra.mxu0 0.0
    %984 = vmatprep.subr.mxu0 0.0
    %985 = vmatpush2.msra.mxu0 0.0
    %986 = vmatprep.subr.mxu0 0.0
    %987 = vmatpush2.msra.mxu0 0.0
    %988 = vmatprep.subr.mxu0 0.0
    %989 = vmatpush2.msra.mxu0 0.0
    %990 = vmatprep.subr.mxu0 0.0
    %991 = vmatpush2.msra.mxu0 0.0
    %992 = vmatprep.subr.mxu0 0.0
    %993 = vmatpush2.msra.mxu0 0.0
    %994 = vmatprep.subr.mxu0 0.0
    %995 = vmatpush2.msra.mxu0 0.0
    %996 = vmatprep.subr.mxu0 0.0
    %997 = vmatpush2.msra.mxu0 0.0
    %998 = vmatprep.subr.mxu0 0.0
    %999 = vmatpush2.msra.mxu0 0.0
    %1000 = vmatprep.subr.mxu0 0.0
    %1001 = vmatpush2.msra.mxu0 0.0
    %1002 = vmatprep.subr.mxu0 0.0
    %1003 = vmatpush2.msra.mxu0 0.0
    %1004 = vmatprep.subr.mxu0 0.0
    %1005 = vmatpush2.msra.mxu0 0.0
    %1006 = vmatprep.subr.mxu0 0.0
    %1007 = vmatpush2.msra.mxu0 0.0
    %1008 = vmatprep.subr.mxu0 0.0
    %1009 = vmatpush2.msra.mxu0 0.0
    %1010 = vmatprep.subr.mxu0 0.0
    %1011 = vmatpush2.msra.mxu0 0.0
    %1012 = vmatprep.subr.mxu0 0.0
    %1013 = vmatpush2.msra.mxu0 0.0
    %1014 = vmatprep.mubr.f32.mxu0 0.0
    %1015 = vmatmul.mubr.f32.gmra.mxu0 %v715
    %v1016 = vpop.f32.mrf.mxu0
    %v1017 = vadd.f32 0.0, %v1016
    %v1018 = vpop.f32.mrf.mxu0
    %1019 = vdwg.mxu0
    %v1020 = vadd.f32 %v723, %v1017
    %v1021 = vxor.u32 %v1020, 2147483648
    %v1022 = vmul.f32 %v1021, 1.442695
    %v1023 = vpow.pop %v1022
    %v1024 = vadd.f32 %v1023, 1.0
    %v1025 = vrcp.pop %v1024
    %v1026 = vmul.f32 1.0, %v1025
    %v1027 = vmul.f32 %v877, %v716
    %v1028 = vmul.f32 %v800, %v949
    %v1029 = vadd.f32 %v1027, %v1028
    %v1030 = vtanh.pop %v1029
    %v1031 = vmul.f32 %v1026, %v1030
    %vm1032 = vcmp.gt.s32.totalorder %v329, 1
    %v1033 = vsel %vm1032, 1, 0
    %1034 = vset.pattern.permute.xlu0 0
    %1035 = vperm.xlu0 %1034, %v1033
    %v1036 = vpop.permute.xlu0 %1035
    %vm1037 = vcmp.eq.s32.totalorder %v1036, 1
    %v1038 = vsel %vm1037, %v1031, %v715
    %v1039 = vsel %vm1037, %v1029, %v716
    %s1040 = smul.u32 2, 4
    %s1041 = smul.addr %s1040, 8
    %s1042 = scalar_lea.vmem [#allocation2], %s1041
    %v1043 = vld [vmem:[%s1042] sm:$0xff]
    %v1044 = vld [vmem:[%s1042 + $0x8] sm:$0xff]
    %v1045 = vld [vmem:[%s1042 + $0x10] sm:$0xff]
    %v1046 = vld [vmem:[%s1042 + $0x18] sm:$0xff]
    %1047 = vmatprep.subr.mxu0 0.0
    %1048 = vmatpush1.msra.mxu0 %v352
    %1049 = vmatprep.subr.mxu0 0.0
    %1050 = vmatpush1.msra.mxu0 %v351
    %1051 = vmatprep.subr.mxu0 0.0
    %1052 = vmatpush1.msra.mxu0 %v350
    %1053 = vmatprep.subr.mxu0 0.0
    %1054 = vmatpush1.msra.mxu0 %v349
    %1055 = vmatprep.subr.mxu0 0.0
    %1056 = vmatpush1.msra.mxu0 %v348
    %1057 = vmatprep.subr.mxu0 0.0
    %1058 = vmatpush1.msra.mxu0 %v347
    %1059 = vmatprep.subr.mxu0 0.0
    %1060 = vmatpush1.msra.mxu0 %v346
    %1061 = vmatprep.subr.mxu0 0.0
    %1062 = vmatpush1.msra.mxu0 %v345
    %1063 = vmatprep.subr.mxu0 0.0
    %1064 = vmatpush1.msra.mxu0 %v344
    %1065 = vmatprep.subr.mxu0 0.0
    %1066 = vmatpush1.msra.mxu0 %v343
    %1067 = vmatprep.subr.mxu0 0.0
    %1068 = vmatpush1.msra.mxu0 %v342
    %1069 = vmatprep.subr.mxu0 0.0
    %1070 = vmatpush1.msra.mxu0 %v341
    %1071 = vmatprep.subr.mxu0 0.0
    %1072 = vmatpush1.msra.mxu0 %v340
    %1073 = vmatprep.subr.mxu0 0.0
    %1074 = vmatpush1.msra.mxu0 %v339
    %1075 = vmatprep.subr.mxu0 0.0
    %1076 = vmatpush1.msra.mxu0 %v338
    %1077 = vmatprep.subr.mxu0 0.0
    %1078 = vmatpush1.msra.mxu0 %v337
    %1079 = vmatprep.subr.mxu0 0.0
    %1080 = vmatpush2.msra.mxu0 0.0
    %1081 = vmatprep.subr.mxu0 0.0
    %1082 = vmatpush2.msra.mxu0 0.0
    %1083 = vmatprep.subr.mxu0 0.0
    %1084 = vmatpush2.msra.mxu0 0.0
    %1085 = vmatprep.subr.mxu0 0.0
    %1086 = vmatpush2.msra.mxu0 0.0
    %1087 = vmatprep.subr.mxu0 0.0
    %1088 = vmatpush2.msra.mxu0 0.0
    %1089 = vmatprep.subr.mxu0 0.0
    %1090 = vmatpush2.msra.mxu0 0.0
    %1091 = vmatprep.subr.mxu0 0.0
    %1092 = vmatpush2.msra.mxu0 0.0
    %1093 = vmatprep.subr.mxu0 0.0
    %1094 = vmatpush2.msra.mxu0 0.0
    %1095 = vmatprep.subr.mxu0 0.0
    %1096 = vmatpush2.msra.mxu0 0.0
    %1097 = vmatprep.subr.mxu0 0.0
    %1098 = vmatpush2.msra.mxu0 0.0
    %1099 = vmatprep.subr.mxu0 0.0
    %1100 = vmatpush2.msra.mxu0 0.0
    %1101 = vmatprep.subr.mxu0 0.0
    %1102 = vmatpush2.msra.mxu0 0.0
    %1103 = vmatprep.subr.mxu0 0.0
    %1104 = vmatpush2.msra.mxu0 0.0
    %1105 = vmatprep.subr.mxu0 0.0
    %1106 = vmatpush2.msra.mxu0 0.0
    %1107 = vmatprep.subr.mxu0 0.0
    %1108 = vmatpush2.msra.mxu0 0.0
    %1109 = vmatprep.subr.mxu0 0.0
    %1110 = vmatpush2.msra.mxu0 0.0
    %1111 = vmatprep.mubr.f32.mxu0 0.0
    %1112 = vmatmul.mubr.f32.gmra.mxu0 %v1038
    %v1113 = vpop.f32.mrf.mxu0
    %v1114 = vadd.f32 0.0, %v1113
    %v1115 = vpop.f32.mrf.mxu0
    %1116 = vdwg.mxu0
    %v1117 = vadd.f32 %v1043, %v1114
    %v1118 = vxor.u32 %v1117, 2147483648
    %v1119 = vmul.f32 %v1118, 1.442695
    %v1120 = vpow.pop %v1119
    %v1121 = vadd.f32 %v1120, 1.0
    %v1122 = vrcp.pop %v1121
    %v1123 = vmul.f32 1.0, %v1122
    %1124 = vmatprep.subr.mxu0 0.0
    %1125 = vmatpush1.msra.mxu0 %v445
    %1126 = vmatprep.subr.mxu0 0.0
    %1127 = vmatpush1.msra.mxu0 %v444
    %1128 = vmatprep.subr.mxu0 0.0
    %1129 = vmatpush1.msra.mxu0 %v443
    %1130 = vmatprep.subr.mxu0 0.0
    %1131 = vmatpush1.msra.mxu0 %v442
    %1132 = vmatprep.subr.mxu0 0.0
    %1133 = vmatpush1.msra.mxu0 %v441
    %1134 = vmatprep.subr.mxu0 0.0
    %1135 = vmatpush1.msra.mxu0 %v440
    %1136 = vmatprep.subr.mxu0 0.0
    %1137 = vmatpush1.msra.mxu0 %v439
    %1138 = vmatprep.subr.mxu0 0.0
    %1139 = vmatpush1.msra.mxu0 %v438
    %1140 = vmatprep.subr.mxu0 0.0
    %1141 = vmatpush1.msra.mxu0 %v437
    %1142 = vmatprep.subr.mxu0 0.0
    %1143 = vmatpush1.msra.mxu0 %v436
    %1144 = vmatprep.subr.mxu0 0.0
    %1145 = vmatpush1.msra.mxu0 %v435
    %1146 = vmatprep.subr.mxu0 0.0
    %1147 = vmatpush1.msra.mxu0 %v434
    %1148 = vmatprep.subr.mxu0 0.0
    %1149 = vmatpush1.msra.mxu0 %v433
    %1150 = vmatprep.subr.mxu0 0.0
    %1151 = vmatpush1.msra.mxu0 %v432
    %1152 = vmatprep.subr.mxu0 0.0
    %1153 = vmatpush1.msra.mxu0 %v431
    %1154 = vmatprep.subr.mxu0 0.0
    %1155 = vmatpush1.msra.mxu0 %v430
    %1156 = vmatprep.subr.mxu0 0.0
    %1157 = vmatpush2.msra.mxu0 0.0
    %1158 = vmatprep.subr.mxu0 0.0
    %1159 = vmatpush2.msra.mxu0 0.0
    %1160 = vmatprep.subr.mxu0 0.0
    %1161 = vmatpush2.msra.mxu0 0.0
    %1162 = vmatprep.subr.mxu0 0.0
    %1163 = vmatpush2.msra.mxu0 0.0
    %1164 = vmatprep.subr.mxu0 0.0
    %1165 = vmatpush2.msra.mxu0 0.0
    %1166 = vmatprep.subr.mxu0 0.0
    %1167 = vmatpush2.msra.mxu0 0.0
    %1168 = vmatprep.subr.mxu0 0.0
    %1169 = vmatpush2.msra.mxu0 0.0
    %1170 = vmatprep.subr.mxu0 0.0
    %1171 = vmatpush2.msra.mxu0 0.0
    %1172 = vmatprep.subr.mxu0 0.0
    %1173 = vmatpush2.msra.mxu0 0.0
    %1174 = vmatprep.subr.mxu0 0.0
    %1175 = vmatpush2.msra.mxu0 0.0
    %1176 = vmatprep.subr.mxu0 0.0
    %1177 = vmatpush2.msra.mxu0 0.0
    %1178 = vmatprep.subr.mxu0 0.0
    %1179 = vmatpush2.msra.mxu0 0.0
    %1180 = vmatprep.subr.mxu0 0.0
    %1181 = vmatpush2.msra.mxu0 0.0
    %1182 = vmatprep.subr.mxu0 0.0
    %1183 = vmatpush2.msra.mxu0 0.0
    %1184 = vmatprep.subr.mxu0 0.0
    %1185 = vmatpush2.msra.mxu0 0.0
    %1186 = vmatprep.subr.mxu0 0.0
    %1187 = vmatpush2.msra.mxu0 0.0
    %1188 = vmatprep.mubr.f32.mxu0 0.0
    %1189 = vmatmul.mubr.f32.gmra.mxu0 %v1038
    %v1190 = vpop.f32.mrf.mxu0
    %v1191 = vadd.f32 0.0, %v1190
    %v1192 = vpop.f32.mrf.mxu0
    %1193 = vdwg.mxu0
    %v1194 = vadd.f32 %v1044, %v1191
    %v1195 = vxor.u32 %v1194, 2147483648
    %v1196 = vmul.f32 %v1195, 1.442695
    %v1197 = vpow.pop %v1196
    %v1198 = vadd.f32 %v1197, 1.0
    %v1199 = vrcp.pop %v1198
    %v1200 = vmul.f32 1.0, %v1199
    %1201 = vmatprep.subr.mxu0 0.0
    %1202 = vmatpush1.msra.mxu0 %v538
    %1203 = vmatprep.subr.mxu0 0.0
    %1204 = vmatpush1.msra.mxu0 %v537
    %1205 = vmatprep.subr.mxu0 0.0
    %1206 = vmatpush1.msra.mxu0 %v536
    %1207 = vmatprep.subr.mxu0 0.0
    %1208 = vmatpush1.msra.mxu0 %v535
    %1209 = vmatprep.subr.mxu0 0.0
    %1210 = vmatpush1.msra.mxu0 %v534
    %1211 = vmatprep.subr.mxu0 0.0
    %1212 = vmatpush1.msra.mxu0 %v533
    %1213 = vmatprep.subr.mxu0 0.0
    %1214 = vmatpush1.msra.mxu0 %v532
    %1215 = vmatprep.subr.mxu0 0.0
    %1216 = vmatpush1.msra.mxu0 %v531
    %1217 = vmatprep.subr.mxu0 0.0
    %1218 = vmatpush1.msra.mxu0 %v530
    %1219 = vmatprep.subr.mxu0 0.0
    %1220 = vmatpush1.msra.mxu0 %v529
    %1221 = vmatprep.subr.mxu0 0.0
    %1222 = vmatpush1.msra.mxu0 %v528
    %1223 = vmatprep.subr.mxu0 0.0
    %1224 = vmatpush1.msra.mxu0 %v527
    %1225 = vmatprep.subr.mxu0 0.0
    %1226 = vmatpush1.msra.mxu0 %v526
    %1227 = vmatprep.subr.mxu0 0.0
    %1228 = vmatpush1.msra.mxu0 %v525
    %1229 = vmatprep.subr.mxu0 0.0
    %1230 = vmatpush1.msra.mxu0 %v524
    %1231 = vmatprep.subr.mxu0 0.0
    %1232 = vmatpush1.msra.mxu0 %v523
    %1233 = vmatprep.subr.mxu0 0.0
    %1234 = vmatpush2.msra.mxu0 0.0
    %1235 = vmatprep.subr.mxu0 0.0
    %1236 = vmatpush2.msra.mxu0 0.0
    %1237 = vmatprep.subr.mxu0 0.0
    %1238 = vmatpush2.msra.mxu0 0.0
    %1239 = vmatprep.subr.mxu0 0.0
    %1240 = vmatpush2.msra.mxu0 0.0
    %1241 = vmatprep.subr.mxu0 0.0
    %1242 = vmatpush2.msra.mxu0 0.0
    %1243 = vmatprep.subr.mxu0 0.0
    %1244 = vmatpush2.msra.mxu0 0.0
    %1245 = vmatprep.subr.mxu0 0.0
    %1246 = vmatpush2.msra.mxu0 0.0
    %1247 = vmatprep.subr.mxu0 0.0
    %1248 = vmatpush2.msra.mxu0 0.0
    %1249 = vmatprep.subr.mxu0 0.0
    %1250 = vmatpush2.msra.mxu0 0.0
    %1251 = vmatprep.subr.mxu0 0.0
    %1252 = vmatpush2.msra.mxu0 0.0
    %1253 = vmatprep.subr.mxu0 0.0
    %1254 = vmatpush2.msra.mxu0 0.0
    %1255 = vmatprep.subr.mxu0 0.0
    %1256 = vmatpush2.msra.mxu0 0.0
    %1257 = vmatprep.subr.mxu0 0.0
    %1258 = vmatpush2.msra.mxu0 0.0
    %1259 = vmatprep.subr.mxu0 0.0
    %1260 = vmatpush2.msra.mxu0 0.0
    %1261 = vmatprep.subr.mxu0 0.0
    %1262 = vmatpush2.msra.mxu0 0.0
    %1263 = vmatprep.subr.mxu0 0.0
    %1264 = vmatpush2.msra.mxu0 0.0
    %1265 = vmatprep.mubr.f32.mxu0 0.0
    %1266 = vmatmul.mubr.f32.gmra.mxu0 %v1038
    %v1267 = vpop.f32.mrf.mxu0
    %v1268 = vadd.f32 0.0, %v1267
    %v1269 = vpop.f32.mrf.mxu0
    %1270 = vdwg.mxu0
    %v1271 = vadd.f32 %v1045, %v1268
    %v1272 = vtanh.pop %v1271
    %1273 = vmatprep.subr.mxu0 0.0
    %1274 = vmatpush1.msra.mxu0 %v626
    %1275 = vmatprep.subr.mxu0 0.0
    %1276 = vmatpush1.msra.mxu0 %v625
    %1277 = vmatprep.subr.mxu0 0.0
    %1278 = vmatpush1.msra.mxu0 %v624
    %1279 = vmatprep.subr.mxu0 0.0
    %1280 = vmatpush1.msra.mxu0 %v623
    %1281 = vmatprep.subr.mxu0 0.0
    %1282 = vmatpush1.msra.mxu0 %v622
    %1283 = vmatprep.subr.mxu0 0.0
    %1284 = vmatpush1.msra.mxu0 %v621
    %1285 = vmatprep.subr.mxu0 0.0
    %1286 = vmatpush1.msra.mxu0 %v620
    %1287 = vmatprep.subr.mxu0 0.0
    %1288 = vmatpush1.msra.mxu0 %v619
    %1289 = vmatprep.subr.mxu0 0.0
    %1290 = vmatpush1.msra.mxu0 %v618
    %1291 = vmatprep.subr.mxu0 0.0
    %1292 = vmatpush1.msra.mxu0 %v617
    %1293 = vmatprep.subr.mxu0 0.0
    %1294 = vmatpush1.msra.mxu0 %v616
    %1295 = vmatprep.subr.mxu0 0.0
    %1296 = vmatpush1.msra.mxu0 %v615
    %1297 = vmatprep.subr.mxu0 0.0
    %1298 = vmatpush1.msra.mxu0 %v614
    %1299 = vmatprep.subr.mxu0 0.0
    %1300 = vmatpush1.msra.mxu0 %v613
    %1301 = vmatprep.subr.mxu0 0.0
    %1302 = vmatpush1.msra.mxu0 %v612
    %1303 = vmatprep.subr.mxu0 0.0
    %1304 = vmatpush1.msra.mxu0 %v611
    %1305 = vmatprep.subr.mxu0 0.0
    %1306 = vmatpush2.msra.mxu0 0.0
    %1307 = vmatprep.subr.mxu0 0.0
    %1308 = vmatpush2.msra.mxu0 0.0
    %1309 = vmatprep.subr.mxu0 0.0
    %1310 = vmatpush2.msra.mxu0 0.0
    %1311 = vmatprep.subr.mxu0 0.0
    %1312 = vmatpush2.msra.mxu0 0.0
    %1313 = vmatprep.subr.mxu0 0.0
    %1314 = vmatpush2.msra.mxu0 0.0
    %1315 = vmatprep.subr.mxu0 0.0
    %1316 = vmatpush2.msra.mxu0 0.0
    %1317 = vmatprep.subr.mxu0 0.0
    %1318 = vmatpush2.msra.mxu0 0.0
    %1319 = vmatprep.subr.mxu0 0.0
    %1320 = vmatpush2.msra.mxu0 0.0
    %1321 = vmatprep.subr.mxu0 0.0
    %1322 = vmatpush2.msra.mxu0 0.0
    %1323 = vmatprep.subr.mxu0 0.0
    %1324 = vmatpush2.msra.mxu0 0.0
    %1325 = vmatprep.subr.mxu0 0.0
    %1326 = vmatpush2.msra.mxu0 0.0
    %1327 = vmatprep.subr.mxu0 0.0
    %1328 = vmatpush2.msra.mxu0 0.0
    %1329 = vmatprep.subr.mxu0 0.0
    %1330 = vmatpush2.msra.mxu0 0.0
    %1331 = vmatprep.subr.mxu0 0.0
    %1332 = vmatpush2.msra.mxu0 0.0
    %1333 = vmatprep.subr.mxu0 0.0
    %1334 = vmatpush2.msra.mxu0 0.0
    %1335 = vmatprep.subr.mxu0 0.0
    %1336 = vmatpush2.msra.mxu0 0.0
    %1337 = vmatprep.mubr.f32.mxu0 0.0
    %1338 = vmatmul.mubr.f32.gmra.mxu0 %v1038
    %v1339 = vpop.f32.mrf.mxu0
    %v1340 = vadd.f32 0.0, %v1339
    %v1341 = vpop.f32.mrf.mxu0
    %1342 = vdwg.mxu0
    %v1343 = vadd.f32 %v1046, %v1340
    %v1344 = vxor.u32 %v1343, 2147483648
    %v1345 = vmul.f32 %v1344, 1.442695
    %v1346 = vpow.pop %v1345
    %v1347 = vadd.f32 %v1346, 1.0
    %v1348 = vrcp.pop %v1347
    %v1349 = vmul.f32 1.0, %v1348
    %v1350 = vmul.f32 %v1200, %v1039
    %v1351 = vmul.f32 %v1123, %v1272
    %v1352 = vadd.f32 %v1350, %v1351
    %v1353 = vtanh.pop %v1352
    %v1354 = vmul.f32 %v1349, %v1353
    %vm1355 = vcmp.gt.s32.totalorder %v329, 2
    %v1356 = vsel %vm1355, 1, 0
    %1357 = vset.pattern.permute.xlu0 0
    %1358 = vperm.xlu0 %1357, %v1356
    %v1359 = vpop.permute.xlu0 %1358
    %vm1360 = vcmp.eq.s32.totalorder %v1359, 1
    %v1361 = vsel %vm1360, %v1354, %v1038
    %v1362 = vsel %vm1360, %v1352, %v1039
    %s1363 = smul.u32 3, 4
    %s1364 = smul.addr %s1363, 8
    %s1365 = scalar_lea.vmem [#allocation2], %s1364
    %v1366 = vld [vmem:[%s1365] sm:$0xff]
    %v1367 = vld [vmem:[%s1365 + $0x8] sm:$0xff]
    %v1368 = vld [vmem:[%s1365 + $0x10] sm:$0xff]
    %v1369 = vld [vmem:[%s1365 + $0x18] sm:$0xff]
    %1370 = vmatprep.subr.mxu0 0.0
    %1371 = vmatpush1.msra.mxu0 %v352
    %1372 = vmatprep.subr.mxu0 0.0
    %1373 = vmatpush1.msra.mxu0 %v351
    %1374 = vmatprep.subr.mxu0 0.0
    %1375 = vmatpush1.msra.mxu0 %v350
    %1376 = vmatprep.subr.mxu0 0.0
    %1377 = vmatpush1.msra.mxu0 %v349
    %1378 = vmatprep.subr.mxu0 0.0
    %1379 = vmatpush1.msra.mxu0 %v348
    %1380 = vmatprep.subr.mxu0 0.0
    %1381 = vmatpush1.msra.mxu0 %v347
    %1382 = vmatprep.subr.mxu0 0.0
    %1383 = vmatpush1.msra.mxu0 %v346
    %1384 = vmatprep.subr.mxu0 0.0
    %1385 = vmatpush1.msra.mxu0 %v345
    %1386 = vmatprep.subr.mxu0 0.0
    %1387 = vmatpush1.msra.mxu0 %v344
    %1388 = vmatprep.subr.mxu0 0.0
    %1389 = vmatpush1.msra.mxu0 %v343
    %1390 = vmatprep.subr.mxu0 0.0
    %1391 = vmatpush1.msra.mxu0 %v342
    %1392 = vmatprep.subr.mxu0 0.0
    %1393 = vmatpush1.msra.mxu0 %v341
    %1394 = vmatprep.subr.mxu0 0.0
    %1395 = vmatpush1.msra.mxu0 %v340
    %1396 = vmatprep.subr.mxu0 0.0
    %1397 = vmatpush1.msra.mxu0 %v339
    %1398 = vmatprep.subr.mxu0 0.0
    %1399 = vmatpush1.msra.mxu0 %v338
    %1400 = vmatprep.subr.mxu0 0.0
    %1401 = vmatpush1.msra.mxu0 %v337
    %1402 = vmatprep.subr.mxu0 0.0
    %1403 = vmatpush2.msra.mxu0 0.0
    %1404 = vmatprep.subr.mxu0 0.0
    %1405 = vmatpush2.msra.mxu0 0.0
    %1406 = vmatprep.subr.mxu0 0.0
    %1407 = vmatpush2.msra.mxu0 0.0
    %1408 = vmatprep.subr.mxu0 0.0
    %1409 = vmatpush2.msra.mxu0 0.0
    %1410 = vmatprep.subr.mxu0 0.0
    %1411 = vmatpush2.msra.mxu0 0.0
    %1412 = vmatprep.subr.mxu0 0.0
    %1413 = vmatpush2.msra.mxu0 0.0
    %1414 = vmatprep.subr.mxu0 0.0
    %1415 = vmatpush2.msra.mxu0 0.0
    %1416 = vmatprep.subr.mxu0 0.0
    %1417 = vmatpush2.msra.mxu0 0.0
    %1418 = vmatprep.subr.mxu0 0.0
    %1419 = vmatpush2.msra.mxu0 0.0
    %1420 = vmatprep.subr.mxu0 0.0
    %1421 = vmatpush2.msra.mxu0 0.0
    %1422 = vmatprep.subr.mxu0 0.0
    %1423 = vmatpush2.msra.mxu0 0.0
    %1424 = vmatprep.subr.mxu0 0.0
    %1425 = vmatpush2.msra.mxu0 0.0
    %1426 = vmatprep.subr.mxu0 0.0
    %1427 = vmatpush2.msra.mxu0 0.0
    %1428 = vmatprep.subr.mxu0 0.0
    %1429 = vmatpush2.msra.mxu0 0.0
    %1430 = vmatprep.subr.mxu0 0.0
    %1431 = vmatpush2.msra.mxu0 0.0
    %1432 = vmatprep.subr.mxu0 0.0
    %1433 = vmatpush2.msra.mxu0 0.0
    %1434 = vmatprep.mubr.f32.mxu0 0.0
    %1435 = vmatmul.mubr.f32.gmra.mxu0 %v1361
    %v1436 = vpop.f32.mrf.mxu0
    %v1437 = vadd.f32 0.0, %v1436
    %v1438 = vpop.f32.mrf.mxu0
    %1439 = vdwg.mxu0
    %v1440 = vadd.f32 %v1366, %v1437
    %v1441 = vxor.u32 %v1440, 2147483648
    %v1442 = vmul.f32 %v1441, 1.442695
    %v1443 = vpow.pop %v1442
    %v1444 = vadd.f32 %v1443, 1.0
    %v1445 = vrcp.pop %v1444
    %v1446 = vmul.f32 1.0, %v1445
    %1447 = vmatprep.subr.mxu0 0.0
    %1448 = vmatpush1.msra.mxu0 %v445
    %1449 = vmatprep.subr.mxu0 0.0
    %1450 = vmatpush1.msra.mxu0 %v444
    %1451 = vmatprep.subr.mxu0 0.0
    %1452 = vmatpush1.msra.mxu0 %v443
    %1453 = vmatprep.subr.mxu0 0.0
    %1454 = vmatpush1.msra.mxu0 %v442
    %1455 = vmatprep.subr.mxu0 0.0
    %1456 = vmatpush1.msra.mxu0 %v441
    %1457 = vmatprep.subr.mxu0 0.0
    %1458 = vmatpush1.msra.mxu0 %v440
    %1459 = vmatprep.subr.mxu0 0.0
    %1460 = vmatpush1.msra.mxu0 %v439
    %1461 = vmatprep.subr.mxu0 0.0
    %1462 = vmatpush1.msra.mxu0 %v438
    %1463 = vmatprep.subr.mxu0 0.0
    %1464 = vmatpush1.msra.mxu0 %v437
    %1465 = vmatprep.subr.mxu0 0.0
    %1466 = vmatpush1.msra.mxu0 %v436
    %1467 = vmatprep.subr.mxu0 0.0
    %1468 = vmatpush1.msra.mxu0 %v435
    %1469 = vmatprep.subr.mxu0 0.0
    %1470 = vmatpush1.msra.mxu0 %v434
    %1471 = vmatprep.subr.mxu0 0.0
    %1472 = vmatpush1.msra.mxu0 %v433
    %1473 = vmatprep.subr.mxu0 0.0
    %1474 = vmatpush1.msra.mxu0 %v432
    %1475 = vmatprep.subr.mxu0 0.0
    %1476 = vmatpush1.msra.mxu0 %v431
    %1477 = vmatprep.subr.mxu0 0.0
    %1478 = vmatpush1.msra.mxu0 %v430
    %1479 = vmatprep.subr.mxu0 0.0
    %1480 = vmatpush2.msra.mxu0 0.0
    %1481 = vmatprep.subr.mxu0 0.0
    %1482 = vmatpush2.msra.mxu0 0.0
    %1483 = vmatprep.subr.mxu0 0.0
    %1484 = vmatpush2.msra.mxu0 0.0
    %1485 = vmatprep.subr.mxu0 0.0
    %1486 = vmatpush2.msra.mxu0 0.0
    %1487 = vmatprep.subr.mxu0 0.0
    %1488 = vmatpush2.msra.mxu0 0.0
    %1489 = vmatprep.subr.mxu0 0.0
    %1490 = vmatpush2.msra.mxu0 0.0
    %1491 = vmatprep.subr.mxu0 0.0
    %1492 = vmatpush2.msra.mxu0 0.0
    %1493 = vmatprep.subr.mxu0 0.0
    %1494 = vmatpush2.msra.mxu0 0.0
    %1495 = vmatprep.subr.mxu0 0.0
    %1496 = vmatpush2.msra.mxu0 0.0
    %1497 = vmatprep.subr.mxu0 0.0
    %1498 = vmatpush2.msra.mxu0 0.0
    %1499 = vmatprep.subr.mxu0 0.0
    %1500 = vmatpush2.msra.mxu0 0.0
    %1501 = vmatprep.subr.mxu0 0.0
    %1502 = vmatpush2.msra.mxu0 0.0
    %1503 = vmatprep.subr.mxu0 0.0
    %1504 = vmatpush2.msra.mxu0 0.0
    %1505 = vmatprep.subr.mxu0 0.0
    %1506 = vmatpush2.msra.mxu0 0.0
    %1507 = vmatprep.subr.mxu0 0.0
    %1508 = vmatpush2.msra.mxu0 0.0
    %1509 = vmatprep.subr.mxu0 0.0
    %1510 = vmatpush2.msra.mxu0 0.0
    %1511 = vmatprep.mubr.f32.mxu0 0.0
    %1512 = vmatmul.mubr.f32.gmra.mxu0 %v1361
    %v1513 = vpop.f32.mrf.mxu0
    %v1514 = vadd.f32 0.0, %v1513
    %v1515 = vpop.f32.mrf.mxu0
    %1516 = vdwg.mxu0
    %v1517 = vadd.f32 %v1367, %v1514
    %v1518 = vxor.u32 %v1517, 2147483648
    %v1519 = vmul.f32 %v1518, 1.442695
    %v1520 = vpow.pop %v1519
    %v1521 = vadd.f32 %v1520, 1.0
    %v1522 = vrcp.pop %v1521
    %v1523 = vmul.f32 1.0, %v1522
    %1524 = vmatprep.subr.mxu0 0.0
    %1525 = vmatpush1.msra.mxu0 %v538
    %1526 = vmatprep.subr.mxu0 0.0
    %1527 = vmatpush1.msra.mxu0 %v537
    %1528 = vmatprep.subr.mxu0 0.0
    %1529 = vmatpush1.msra.mxu0 %v536
    %1530 = vmatprep.subr.mxu0 0.0
    %1531 = vmatpush1.msra.mxu0 %v535
    %1532 = vmatprep.subr.mxu0 0.0
    %1533 = vmatpush1.msra.mxu0 %v534
    %1534 = vmatprep.subr.mxu0 0.0
    %1535 = vmatpush1.msra.mxu0 %v533
    %1536 = vmatprep.subr.mxu0 0.0
    %1537 = vmatpush1.msra.mxu0 %v532
    %1538 = vmatprep.subr.mxu0 0.0
    %1539 = vmatpush1.msra.mxu0 %v531
    %1540 = vmatprep.subr.mxu0 0.0
    %1541 = vmatpush1.msra.mxu0 %v530
    %1542 = vmatprep.subr.mxu0 0.0
    %1543 = vmatpush1.msra.mxu0 %v529
    %1544 = vmatprep.subr.mxu0 0.0
    %1545 = vmatpush1.msra.mxu0 %v528
    %1546 = vmatprep.subr.mxu0 0.0
    %1547 = vmatpush1.msra.mxu0 %v527
    %1548 = vmatprep.subr.mxu0 0.0
    %1549 = vmatpush1.msra.mxu0 %v526
    %1550 = vmatprep.subr.mxu0 0.0
    %1551 = vmatpush1.msra.mxu0 %v525
    %1552 = vmatprep.subr.mxu0 0.0
    %1553 = vmatpush1.msra.mxu0 %v524
    %1554 = vmatprep.subr.mxu0 0.0
    %1555 = vmatpush1.msra.mxu0 %v523
    %1556 = vmatprep.subr.mxu0 0.0
    %1557 = vmatpush2.msra.mxu0 0.0
    %1558 = vmatprep.subr.mxu0 0.0
    %1559 = vmatpush2.msra.mxu0 0.0
    %1560 = vmatprep.subr.mxu0 0.0
    %1561 = vmatpush2.msra.mxu0 0.0
    %1562 = vmatprep.subr.mxu0 0.0
    %1563 = vmatpush2.msra.mxu0 0.0
    %1564 = vmatprep.subr.mxu0 0.0
    %1565 = vmatpush2.msra.mxu0 0.0
    %1566 = vmatprep.subr.mxu0 0.0
    %1567 = vmatpush2.msra.mxu0 0.0
    %1568 = vmatprep.subr.mxu0 0.0
    %1569 = vmatpush2.msra.mxu0 0.0
    %1570 = vmatprep.subr.mxu0 0.0
    %1571 = vmatpush2.msra.mxu0 0.0
    %1572 = vmatprep.subr.mxu0 0.0
    %1573 = vmatpush2.msra.mxu0 0.0
    %1574 = vmatprep.subr.mxu0 0.0
    %1575 = vmatpush2.msra.mxu0 0.0
    %1576 = vmatprep.subr.mxu0 0.0
    %1577 = vmatpush2.msra.mxu0 0.0
    %1578 = vmatprep.subr.mxu0 0.0
    %1579 = vmatpush2.msra.mxu0 0.0
    %1580 = vmatprep.subr.mxu0 0.0
    %1581 = vmatpush2.msra.mxu0 0.0
    %1582 = vmatprep.subr.mxu0 0.0
    %1583 = vmatpush2.msra.mxu0 0.0
    %1584 = vmatprep.subr.mxu0 0.0
    %1585 = vmatpush2.msra.mxu0 0.0
    %1586 = vmatprep.subr.mxu0 0.0
    %1587 = vmatpush2.msra.mxu0 0.0
    %1588 = vmatprep.mubr.f32.mxu0 0.0
    %1589 = vmatmul.mubr.f32.gmra.mxu0 %v1361
    %v1590 = vpop.f32.mrf.mxu0
    %v1591 = vadd.f32 0.0, %v1590
    %v1592 = vpop.f32.mrf.mxu0
    %1593 = vdwg.mxu0
    %v1594 = vadd.f32 %v1368, %v1591
    %v1595 = vtanh.pop %v1594
    %1596 = vmatprep.subr.mxu0 0.0
    %1597 = vmatpush1.msra.mxu0 %v626
    %1598 = vmatprep.subr.mxu0 0.0
    %1599 = vmatpush1.msra.mxu0 %v625
    %1600 = vmatprep.subr.mxu0 0.0
    %1601 = vmatpush1.msra.mxu0 %v624
    %1602 = vmatprep.subr.mxu0 0.0
    %1603 = vmatpush1.msra.mxu0 %v623
    %1604 = vmatprep.subr.mxu0 0.0
    %1605 = vmatpush1.msra.mxu0 %v622
    %1606 = vmatprep.subr.mxu0 0.0
    %1607 = vmatpush1.msra.mxu0 %v621
    %1608 = vmatprep.subr.mxu0 0.0
    %1609 = vmatpush1.msra.mxu0 %v620
    %1610 = vmatprep.subr.mxu0 0.0
    %1611 = vmatpush1.msra.mxu0 %v619
    %1612 = vmatprep.subr.mxu0 0.0
    %1613 = vmatpush1.msra.mxu0 %v618
    %1614 = vmatprep.subr.mxu0 0.0
    %1615 = vmatpush1.msra.mxu0 %v617
    %1616 = vmatprep.subr.mxu0 0.0
    %1617 = vmatpush1.msra.mxu0 %v616
    %1618 = vmatprep.subr.mxu0 0.0
    %1619 = vmatpush1.msra.mxu0 %v615
    %1620 = vmatprep.subr.mxu0 0.0
    %1621 = vmatpush1.msra.mxu0 %v614
    %1622 = vmatprep.subr.mxu0 0.0
    %1623 = vmatpush1.msra.mxu0 %v613
    %1624 = vmatprep.subr.mxu0 0.0
    %1625 = vmatpush1.msra.mxu0 %v612
    %1626 = vmatprep.subr.mxu0 0.0
    %1627 = vmatpush1.msra.mxu0 %v611
    %1628 = vmatprep.subr.mxu0 0.0
    %1629 = vmatpush2.msra.mxu0 0.0
    %1630 = vmatprep.subr.mxu0 0.0
    %1631 = vmatpush2.msra.mxu0 0.0
    %1632 = vmatprep.subr.mxu0 0.0
    %1633 = vmatpush2.msra.mxu0 0.0
    %1634 = vmatprep.subr.mxu0 0.0
    %1635 = vmatpush2.msra.mxu0 0.0
    %1636 = vmatprep.subr.mxu0 0.0
    %1637 = vmatpush2.msra.mxu0 0.0
    %1638 = vmatprep.subr.mxu0 0.0
    %1639 = vmatpush2.msra.mxu0 0.0
    %1640 = vmatprep.subr.mxu0 0.0
    %1641 = vmatpush2.msra.mxu0 0.0
    %1642 = vmatprep.subr.mxu0 0.0
    %1643 = vmatpush2.msra.mxu0 0.0
    %1644 = vmatprep.subr.mxu0 0.0
    %1645 = vmatpush2.msra.mxu0 0.0
    %1646 = vmatprep.subr.mxu0 0.0
    %1647 = vmatpush2.msra.mxu0 0.0
    %1648 = vmatprep.subr.mxu0 0.0
    %1649 = vmatpush2.msra.mxu0 0.0
    %1650 = vmatprep.subr.mxu0 0.0
    %1651 = vmatpush2.msra.mxu0 0.0
    %1652 = vmatprep.subr.mxu0 0.0
    %1653 = vmatpush2.msra.mxu0 0.0
    %1654 = vmatprep.subr.mxu0 0.0
    %1655 = vmatpush2.msra.mxu0 0.0
    %1656 = vmatprep.subr.mxu0 0.0
    %1657 = vmatpush2.msra.mxu0 0.0
    %1658 = vmatprep.subr.mxu0 0.0
    %1659 = vmatpush2.msra.mxu0 0.0
    %1660 = vmatprep.mubr.f32.mxu0 0.0
    %1661 = vmatmul.mubr.f32.gmra.mxu0 %v1361
    %v1662 = vpop.f32.mrf.mxu0
    %v1663 = vadd.f32 0.0, %v1662
    %v1664 = vpop.f32.mrf.mxu0
    %1665 = vdwg.mxu0
    %v1666 = vadd.f32 %v1369, %v1663
    %v1667 = vxor.u32 %v1666, 2147483648
    %v1668 = vmul.f32 %v1667, 1.442695
    %v1669 = vpow.pop %v1668
    %v1670 = vadd.f32 %v1669, 1.0
    %v1671 = vrcp.pop %v1670
    %v1672 = vmul.f32 1.0, %v1671
    %v1673 = vmul.f32 %v1523, %v1362
    %v1674 = vmul.f32 %v1446, %v1595
    %v1675 = vadd.f32 %v1673, %v1674
    %v1676 = vtanh.pop %v1675
    %v1677 = vmul.f32 %v1672, %v1676
    %vm1678 = vcmp.gt.s32.totalorder %v329, 3
    %v1679 = vsel %vm1678, 1, 0
    %1680 = vset.pattern.permute.xlu0 0
    %1681 = vperm.xlu0 %1680, %v1679
    %v1682 = vpop.permute.xlu0 %1681
    %vm1683 = vcmp.eq.s32.totalorder %v1682, 1
    %v1684 = vsel %vm1683, %v1677, %v1361
    %v1685 = vsel %vm1683, %v1675, %v1362
    %s1686 = smul.u32 4, 4
    %s1687 = smul.addr %s1686, 8
    %s1688 = scalar_lea.vmem [#allocation2], %s1687
    %v1689 = vld [vmem:[%s1688] sm:$0xff]
    %v1690 = vld [vmem:[%s1688 + $0x8] sm:$0xff]
    %v1691 = vld [vmem:[%s1688 + $0x10] sm:$0xff]
    %v1692 = vld [vmem:[%s1688 + $0x18] sm:$0xff]
    %1693 = vmatprep.subr.mxu0 0.0
    %1694 = vmatpush1.msra.mxu0 %v352
    %1695 = vmatprep.subr.mxu0 0.0
    %1696 = vmatpush1.msra.mxu0 %v351
    %1697 = vmatprep.subr.mxu0 0.0
    %1698 = vmatpush1.msra.mxu0 %v350
    %1699 = vmatprep.subr.mxu0 0.0
    %1700 = vmatpush1.msra.mxu0 %v349
    %1701 = vmatprep.subr.mxu0 0.0
    %1702 = vmatpush1.msra.mxu0 %v348
    %1703 = vmatprep.subr.mxu0 0.0
    %1704 = vmatpush1.msra.mxu0 %v347
    %1705 = vmatprep.subr.mxu0 0.0
    %1706 = vmatpush1.msra.mxu0 %v346
    %1707 = vmatprep.subr.mxu0 0.0
    %1708 = vmatpush1.msra.mxu0 %v345
    %1709 = vmatprep.subr.mxu0 0.0
    %1710 = vmatpush1.msra.mxu0 %v344
    %1711 = vmatprep.subr.mxu0 0.0
    %1712 = vmatpush1.msra.mxu0 %v343
    %1713 = vmatprep.subr.mxu0 0.0
    %1714 = vmatpush1.msra.mxu0 %v342
    %1715 = vmatprep.subr.mxu0 0.0
    %1716 = vmatpush1.msra.mxu0 %v341
    %1717 = vmatprep.subr.mxu0 0.0
    %1718 = vmatpush1.msra.mxu0 %v340
    %1719 = vmatprep.subr.mxu0 0.0
    %1720 = vmatpush1.msra.mxu0 %v339
    %1721 = vmatprep.subr.mxu0 0.0
    %1722 = vmatpush1.msra.mxu0 %v338
    %1723 = vmatprep.subr.mxu0 0.0
    %1724 = vmatpush1.msra.mxu0 %v337
    %1725 = vmatprep.subr.mxu0 0.0
    %1726 = vmatpush2.msra.mxu0 0.0
    %1727 = vmatprep.subr.mxu0 0.0
    %1728 = vmatpush2.msra.mxu0 0.0
    %1729 = vmatprep.subr.mxu0 0.0
    %1730 = vmatpush2.msra.mxu0 0.0
    %1731 = vmatprep.subr.mxu0 0.0
    %1732 = vmatpush2.msra.mxu0 0.0
    %1733 = vmatprep.subr.mxu0 0.0
    %1734 = vmatpush2.msra.mxu0 0.0
    %1735 = vmatprep.subr.mxu0 0.0
    %1736 = vmatpush2.msra.mxu0 0.0
    %1737 = vmatprep.subr.mxu0 0.0
    %1738 = vmatpush2.msra.mxu0 0.0
    %1739 = vmatprep.subr.mxu0 0.0
    %1740 = vmatpush2.msra.mxu0 0.0
    %1741 = vmatprep.subr.mxu0 0.0
    %1742 = vmatpush2.msra.mxu0 0.0
    %1743 = vmatprep.subr.mxu0 0.0
    %1744 = vmatpush2.msra.mxu0 0.0
    %1745 = vmatprep.subr.mxu0 0.0
    %1746 = vmatpush2.msra.mxu0 0.0
    %1747 = vmatprep.subr.mxu0 0.0
    %1748 = vmatpush2.msra.mxu0 0.0
    %1749 = vmatprep.subr.mxu0 0.0
    %1750 = vmatpush2.msra.mxu0 0.0
    %1751 = vmatprep.subr.mxu0 0.0
    %1752 = vmatpush2.msra.mxu0 0.0
    %1753 = vmatprep.subr.mxu0 0.0
    %1754 = vmatpush2.msra.mxu0 0.0
    %1755 = vmatprep.subr.mxu0 0.0
    %1756 = vmatpush2.msra.mxu0 0.0
    %1757 = vmatprep.mubr.f32.mxu0 0.0
    %1758 = vmatmul.mubr.f32.gmra.mxu0 %v1684
    %v1759 = vpop.f32.mrf.mxu0
    %v1760 = vadd.f32 0.0, %v1759
    %v1761 = vpop.f32.mrf.mxu0
    %1762 = vdwg.mxu0
    %v1763 = vadd.f32 %v1689, %v1760
    %v1764 = vxor.u32 %v1763, 2147483648
    %v1765 = vmul.f32 %v1764, 1.442695
    %v1766 = vpow.pop %v1765
    %v1767 = vadd.f32 %v1766, 1.0
    %v1768 = vrcp.pop %v1767
    %v1769 = vmul.f32 1.0, %v1768
    %1770 = vmatprep.subr.mxu0 0.0
    %1771 = vmatpush1.msra.mxu0 %v445
    %1772 = vmatprep.subr.mxu0 0.0
    %1773 = vmatpush1.msra.mxu0 %v444
    %1774 = vmatprep.subr.mxu0 0.0
    %1775 = vmatpush1.msra.mxu0 %v443
    %1776 = vmatprep.subr.mxu0 0.0
    %1777 = vmatpush1.msra.mxu0 %v442
    %1778 = vmatprep.subr.mxu0 0.0
    %1779 = vmatpush1.msra.mxu0 %v441
    %1780 = vmatprep.subr.mxu0 0.0
    %1781 = vmatpush1.msra.mxu0 %v440
    %1782 = vmatprep.subr.mxu0 0.0
    %1783 = vmatpush1.msra.mxu0 %v439
    %1784 = vmatprep.subr.mxu0 0.0
    %1785 = vmatpush1.msra.mxu0 %v438
    %1786 = vmatprep.subr.mxu0 0.0
    %1787 = vmatpush1.msra.mxu0 %v437
    %1788 = vmatprep.subr.mxu0 0.0
    %1789 = vmatpush1.msra.mxu0 %v436
    %1790 = vmatprep.subr.mxu0 0.0
    %1791 = vmatpush1.msra.mxu0 %v435
    %1792 = vmatprep.subr.mxu0 0.0
    %1793 = vmatpush1.msra.mxu0 %v434
    %1794 = vmatprep.subr.mxu0 0.0
    %1795 = vmatpush1.msra.mxu0 %v433
    %1796 = vmatprep.subr.mxu0 0.0
    %1797 = vmatpush1.msra.mxu0 %v432
    %1798 = vmatprep.subr.mxu0 0.0
    %1799 = vmatpush1.msra.mxu0 %v431
    %1800 = vmatprep.subr.mxu0 0.0
    %1801 = vmatpush1.msra.mxu0 %v430
    %1802 = vmatprep.subr.mxu0 0.0
    %1803 = vmatpush2.msra.mxu0 0.0
    %1804 = vmatprep.subr.mxu0 0.0
    %1805 = vmatpush2.msra.mxu0 0.0
    %1806 = vmatprep.subr.mxu0 0.0
    %1807 = vmatpush2.msra.mxu0 0.0
    %1808 = vmatprep.subr.mxu0 0.0
    %1809 = vmatpush2.msra.mxu0 0.0
    %1810 = vmatprep.subr.mxu0 0.0
    %1811 = vmatpush2.msra.mxu0 0.0
    %1812 = vmatprep.subr.mxu0 0.0
    %1813 = vmatpush2.msra.mxu0 0.0
    %1814 = vmatprep.subr.mxu0 0.0
    %1815 = vmatpush2.msra.mxu0 0.0
    %1816 = vmatprep.subr.mxu0 0.0
    %1817 = vmatpush2.msra.mxu0 0.0
    %1818 = vmatprep.subr.mxu0 0.0
    %1819 = vmatpush2.msra.mxu0 0.0
    %1820 = vmatprep.subr.mxu0 0.0
    %1821 = vmatpush2.msra.mxu0 0.0
    %1822 = vmatprep.subr.mxu0 0.0
    %1823 = vmatpush2.msra.mxu0 0.0
    %1824 = vmatprep.subr.mxu0 0.0
    %1825 = vmatpush2.msra.mxu0 0.0
    %1826 = vmatprep.subr.mxu0 0.0
    %1827 = vmatpush2.msra.mxu0 0.0
    %1828 = vmatprep.subr.mxu0 0.0
    %1829 = vmatpush2.msra.mxu0 0.0
    %1830 = vmatprep.subr.mxu0 0.0
    %1831 = vmatpush2.msra.mxu0 0.0
    %1832 = vmatprep.subr.mxu0 0.0
    %1833 = vmatpush2.msra.mxu0 0.0
    %1834 = vmatprep.mubr.f32.mxu0 0.0
    %1835 = vmatmul.mubr.f32.gmra.mxu0 %v1684
    %v1836 = vpop.f32.mrf.mxu0
    %v1837 = vadd.f32 0.0, %v1836
    %v1838 = vpop.f32.mrf.mxu0
    %1839 = vdwg.mxu0
    %v1840 = vadd.f32 %v1690, %v1837
    %v1841 = vxor.u32 %v1840, 2147483648
    %v1842 = vmul.f32 %v1841, 1.442695
    %v1843 = vpow.pop %v1842
    %v1844 = vadd.f32 %v1843, 1.0
    %v1845 = vrcp.pop %v1844
    %v1846 = vmul.f32 1.0, %v1845
    %1847 = vmatprep.subr.mxu0 0.0
    %1848 = vmatpush1.msra.mxu0 %v538
    %1849 = vmatprep.subr.mxu0 0.0
    %1850 = vmatpush1.msra.mxu0 %v537
    %1851 = vmatprep.subr.mxu0 0.0
    %1852 = vmatpush1.msra.mxu0 %v536
    %1853 = vmatprep.subr.mxu0 0.0
    %1854 = vmatpush1.msra.mxu0 %v535
    %1855 = vmatprep.subr.mxu0 0.0
    %1856 = vmatpush1.msra.mxu0 %v534
    %1857 = vmatprep.subr.mxu0 0.0
    %1858 = vmatpush1.msra.mxu0 %v533
    %1859 = vmatprep.subr.mxu0 0.0
    %1860 = vmatpush1.msra.mxu0 %v532
    %1861 = vmatprep.subr.mxu0 0.0
    %1862 = vmatpush1.msra.mxu0 %v531
    %1863 = vmatprep.subr.mxu0 0.0
    %1864 = vmatpush1.msra.mxu0 %v530
    %1865 = vmatprep.subr.mxu0 0.0
    %1866 = vmatpush1.msra.mxu0 %v529
    %1867 = vmatprep.subr.mxu0 0.0
    %1868 = vmatpush1.msra.mxu0 %v528
    %1869 = vmatprep.subr.mxu0 0.0
    %1870 = vmatpush1.msra.mxu0 %v527
    %1871 = vmatprep.subr.mxu0 0.0
    %1872 = vmatpush1.msra.mxu0 %v526
    %1873 = vmatprep.subr.mxu0 0.0
    %1874 = vmatpush1.msra.mxu0 %v525
    %1875 = vmatprep.subr.mxu0 0.0
    %1876 = vmatpush1.msra.mxu0 %v524
    %1877 = vmatprep.subr.mxu0 0.0
    %1878 = vmatpush1.msra.mxu0 %v523
    %1879 = vmatprep.subr.mxu0 0.0
    %1880 = vmatpush2.msra.mxu0 0.0
    %1881 = vmatprep.subr.mxu0 0.0
    %1882 = vmatpush2.msra.mxu0 0.0
    %1883 = vmatprep.subr.mxu0 0.0
    %1884 = vmatpush2.msra.mxu0 0.0
    %1885 = vmatprep.subr.mxu0 0.0
    %1886 = vmatpush2.msra.mxu0 0.0
    %1887 = vmatprep.subr.mxu0 0.0
    %1888 = vmatpush2.msra.mxu0 0.0
    %1889 = vmatprep.subr.mxu0 0.0
    %1890 = vmatpush2.msra.mxu0 0.0
    %1891 = vmatprep.subr.mxu0 0.0
    %1892 = vmatpush2.msra.mxu0 0.0
    %1893 = vmatprep.subr.mxu0 0.0
    %1894 = vmatpush2.msra.mxu0 0.0
    %1895 = vmatprep.subr.mxu0 0.0
    %1896 = vmatpush2.msra.mxu0 0.0
    %1897 = vmatprep.subr.mxu0 0.0
    %1898 = vmatpush2.msra.mxu0 0.0
    %1899 = vmatprep.subr.mxu0 0.0
    %1900 = vmatpush2.msra.mxu0 0.0
    %1901 = vmatprep.subr.mxu0 0.0
    %1902 = vmatpush2.msra.mxu0 0.0
    %1903 = vmatprep.subr.mxu0 0.0
    %1904 = vmatpush2.msra.mxu0 0.0
    %1905 = vmatprep.subr.mxu0 0.0
    %1906 = vmatpush2.msra.mxu0 0.0
    %1907 = vmatprep.subr.mxu0 0.0
    %1908 = vmatpush2.msra.mxu0 0.0
    %1909 = vmatprep.subr.mxu0 0.0
    %1910 = vmatpush2.msra.mxu0 0.0
    %1911 = vmatprep.mubr.f32.mxu0 0.0
    %1912 = vmatmul.mubr.f32.gmra.mxu0 %v1684
    %v1913 = vpop.f32.mrf.mxu0
    %v1914 = vadd.f32 0.0, %v1913
    %v1915 = vpop.f32.mrf.mxu0
    %1916 = vdwg.mxu0
    %v1917 = vadd.f32 %v1691, %v1914
    %v1918 = vtanh.pop %v1917
    %1919 = vmatprep.subr.mxu0 0.0
    %1920 = vmatpush1.msra.mxu0 %v626
    %1921 = vmatprep.subr.mxu0 0.0
    %1922 = vmatpush1.msra.mxu0 %v625
    %1923 = vmatprep.subr.mxu0 0.0
    %1924 = vmatpush1.msra.mxu0 %v624
    %1925 = vmatprep.subr.mxu0 0.0
    %1926 = vmatpush1.msra.mxu0 %v623
    %1927 = vmatprep.subr.mxu0 0.0
    %1928 = vmatpush1.msra.mxu0 %v622
    %1929 = vmatprep.subr.mxu0 0.0
    %1930 = vmatpush1.msra.mxu0 %v621
    %1931 = vmatprep.subr.mxu0 0.0
    %1932 = vmatpush1.msra.mxu0 %v620
    %1933 = vmatprep.subr.mxu0 0.0
    %1934 = vmatpush1.msra.mxu0 %v619
    %1935 = vmatprep.subr.mxu0 0.0
    %1936 = vmatpush1.msra.mxu0 %v618
    %1937 = vmatprep.subr.mxu0 0.0
    %1938 = vmatpush1.msra.mxu0 %v617
    %1939 = vmatprep.subr.mxu0 0.0
    %1940 = vmatpush1.msra.mxu0 %v616
    %1941 = vmatprep.subr.mxu0 0.0
    %1942 = vmatpush1.msra.mxu0 %v615
    %1943 = vmatprep.subr.mxu0 0.0
    %1944 = vmatpush1.msra.mxu0 %v614
    %1945 = vmatprep.subr.mxu0 0.0
    %1946 = vmatpush1.msra.mxu0 %v613
    %1947 = vmatprep.subr.mxu0 0.0
    %1948 = vmatpush1.msra.mxu0 %v612
    %1949 = vmatprep.subr.mxu0 0.0
    %1950 = vmatpush1.msra.mxu0 %v611
    %1951 = vmatprep.subr.mxu0 0.0
    %1952 = vmatpush2.msra.mxu0 0.0
    %1953 = vmatprep.subr.mxu0 0.0
    %1954 = vmatpush2.msra.mxu0 0.0
    %1955 = vmatprep.subr.mxu0 0.0
    %1956 = vmatpush2.msra.mxu0 0.0
    %1957 = vmatprep.subr.mxu0 0.0
    %1958 = vmatpush2.msra.mxu0 0.0
    %1959 = vmatprep.subr.mxu0 0.0
    %1960 = vmatpush2.msra.mxu0 0.0
    %1961 = vmatprep.subr.mxu0 0.0
    %1962 = vmatpush2.msra.mxu0 0.0
    %1963 = vmatprep.subr.mxu0 0.0
    %1964 = vmatpush2.msra.mxu0 0.0
    %1965 = vmatprep.subr.mxu0 0.0
    %1966 = vmatpush2.msra.mxu0 0.0
    %1967 = vmatprep.subr.mxu0 0.0
    %1968 = vmatpush2.msra.mxu0 0.0
    %1969 = vmatprep.subr.mxu0 0.0
    %1970 = vmatpush2.msra.mxu0 0.0
    %1971 = vmatprep.subr.mxu0 0.0
    %1972 = vmatpush2.msra.mxu0 0.0
    %1973 = vmatprep.subr.mxu0 0.0
    %1974 = vmatpush2.msra.mxu0 0.0
    %1975 = vmatprep.subr.mxu0 0.0
    %1976 = vmatpush2.msra.mxu0 0.0
    %1977 = vmatprep.subr.mxu0 0.0
    %1978 = vmatpush2.msra.mxu0 0.0
    %1979 = vmatprep.subr.mxu0 0.0
    %1980 = vmatpush2.msra.mxu0 0.0
    %1981 = vmatprep.subr.mxu0 0.0
    %1982 = vmatpush2.msra.mxu0 0.0
    %1983 = vmatprep.mubr.f32.mxu0 0.0
    %1984 = vmatmul.mubr.f32.gmra.mxu0 %v1684
    %v1985 = vpop.f32.mrf.mxu0
    %v1986 = vadd.f32 0.0, %v1985
    %v1987 = vpop.f32.mrf.mxu0
    %1988 = vdwg.mxu0
    %v1989 = vadd.f32 %v1692, %v1986
    %v1990 = vxor.u32 %v1989, 2147483648
    %v1991 = vmul.f32 %v1990, 1.442695
    %v1992 = vpow.pop %v1991
    %v1993 = vadd.f32 %v1992, 1.0
    %v1994 = vrcp.pop %v1993
    %v1995 = vmul.f32 1.0, %v1994
    %v1996 = vmul.f32 %v1846, %v1685
    %v1997 = vmul.f32 %v1769, %v1918
    %v1998 = vadd.f32 %v1996, %v1997
    %v1999 = vtanh.pop %v1998
    %v2000 = vmul.f32 %v1995, %v1999
    %vm2001 = vcmp.gt.s32.totalorder %v329, 4
    %v2002 = vsel %vm2001, 1, 0
    %2003 = vset.pattern.permute.xlu0 0
    %2004 = vperm.xlu0 %2003, %v2002
    %v2005 = vpop.permute.xlu0 %2004
    %vm2006 = vcmp.eq.s32.totalorder %v2005, 1
    %v2007 = vsel %vm2006, %v2000, %v1684
    %v2008 = vsel %vm2006, %v1998, %v1685
    %s2009 = smul.u32 5, 4
    %s2010 = smul.addr %s2009, 8
    %s2011 = scalar_lea.vmem [#allocation2], %s2010
    %v2012 = vld [vmem:[%s2011] sm:$0xff]
    %v2013 = vld [vmem:[%s2011 + $0x8] sm:$0xff]
    %v2014 = vld [vmem:[%s2011 + $0x10] sm:$0xff]
    %v2015 = vld [vmem:[%s2011 + $0x18] sm:$0xff]
    %2016 = vmatprep.subr.mxu0 0.0
    %2017 = vmatpush1.msra.mxu0 %v352
    %2018 = vmatprep.subr.mxu0 0.0
    %2019 = vmatpush1.msra.mxu0 %v351
    %2020 = vmatprep.subr.mxu0 0.0
    %2021 = vmatpush1.msra.mxu0 %v350
    %2022 = vmatprep.subr.mxu0 0.0
    %2023 = vmatpush1.msra.mxu0 %v349
    %2024 = vmatprep.subr.mxu0 0.0
    %2025 = vmatpush1.msra.mxu0 %v348
    %2026 = vmatprep.subr.mxu0 0.0
    %2027 = vmatpush1.msra.mxu0 %v347
    %2028 = vmatprep.subr.mxu0 0.0
    %2029 = vmatpush1.msra.mxu0 %v346
    %2030 = vmatprep.subr.mxu0 0.0
    %2031 = vmatpush1.msra.mxu0 %v345
    %2032 = vmatprep.subr.mxu0 0.0
    %2033 = vmatpush1.msra.mxu0 %v344
    %2034 = vmatprep.subr.mxu0 0.0
    %2035 = vmatpush1.msra.mxu0 %v343
    %2036 = vmatprep.subr.mxu0 0.0
    %2037 = vmatpush1.msra.mxu0 %v342
    %2038 = vmatprep.subr.mxu0 0.0
    %2039 = vmatpush1.msra.mxu0 %v341
    %2040 = vmatprep.subr.mxu0 0.0
    %2041 = vmatpush1.msra.mxu0 %v340
    %2042 = vmatprep.subr.mxu0 0.0
    %2043 = vmatpush1.msra.mxu0 %v339
    %2044 = vmatprep.subr.mxu0 0.0
    %2045 = vmatpush1.msra.mxu0 %v338
    %2046 = vmatprep.subr.mxu0 0.0
    %2047 = vmatpush1.msra.mxu0 %v337
    %2048 = vmatprep.subr.mxu0 0.0
    %2049 = vmatpush2.msra.mxu0 0.0
    %2050 = vmatprep.subr.mxu0 0.0
    %2051 = vmatpush2.msra.mxu0 0.0
    %2052 = vmatprep.subr.mxu0 0.0
    %2053 = vmatpush2.msra.mxu0 0.0
    %2054 = vmatprep.subr.mxu0 0.0
    %2055 = vmatpush2.msra.mxu0 0.0
    %2056 = vmatprep.subr.mxu0 0.0
    %2057 = vmatpush2.msra.mxu0 0.0
    %2058 = vmatprep.subr.mxu0 0.0
    %2059 = vmatpush2.msra.mxu0 0.0
    %2060 = vmatprep.subr.mxu0 0.0
    %2061 = vmatpush2.msra.mxu0 0.0
    %2062 = vmatprep.subr.mxu0 0.0
    %2063 = vmatpush2.msra.mxu0 0.0
    %2064 = vmatprep.subr.mxu0 0.0
    %2065 = vmatpush2.msra.mxu0 0.0
    %2066 = vmatprep.subr.mxu0 0.0
    %2067 = vmatpush2.msra.mxu0 0.0
    %2068 = vmatprep.subr.mxu0 0.0
    %2069 = vmatpush2.msra.mxu0 0.0
    %2070 = vmatprep.subr.mxu0 0.0
    %2071 = vmatpush2.msra.mxu0 0.0
    %2072 = vmatprep.subr.mxu0 0.0
    %2073 = vmatpush2.msra.mxu0 0.0
    %2074 = vmatprep.subr.mxu0 0.0
    %2075 = vmatpush2.msra.mxu0 0.0
    %2076 = vmatprep.subr.mxu0 0.0
    %2077 = vmatpush2.msra.mxu0 0.0
    %2078 = vmatprep.subr.mxu0 0.0
    %2079 = vmatpush2.msra.mxu0 0.0
    %2080 = vmatprep.mubr.f32.mxu0 0.0
    %2081 = vmatmul.mubr.f32.gmra.mxu0 %v2007
    %v2082 = vpop.f32.mrf.mxu0
    %v2083 = vadd.f32 0.0, %v2082
    %v2084 = vpop.f32.mrf.mxu0
    %2085 = vdwg.mxu0
    %v2086 = vadd.f32 %v2012, %v2083
    %v2087 = vxor.u32 %v2086, 2147483648
    %v2088 = vmul.f32 %v2087, 1.442695
    %v2089 = vpow.pop %v2088
    %v2090 = vadd.f32 %v2089, 1.0
    %v2091 = vrcp.pop %v2090
    %v2092 = vmul.f32 1.0, %v2091
    %2093 = vmatprep.subr.mxu0 0.0
    %2094 = vmatpush1.msra.mxu0 %v445
    %2095 = vmatprep.subr.mxu0 0.0
    %2096 = vmatpush1.msra.mxu0 %v444
    %2097 = vmatprep.subr.mxu0 0.0
    %2098 = vmatpush1.msra.mxu0 %v443
    %2099 = vmatprep.subr.mxu0 0.0
    %2100 = vmatpush1.msra.mxu0 %v442
    %2101 = vmatprep.subr.mxu0 0.0
    %2102 = vmatpush1.msra.mxu0 %v441
    %2103 = vmatprep.subr.mxu0 0.0
    %2104 = vmatpush1.msra.mxu0 %v440
    %2105 = vmatprep.subr.mxu0 0.0
    %2106 = vmatpush1.msra.mxu0 %v439
    %2107 = vmatprep.subr.mxu0 0.0
    %2108 = vmatpush1.msra.mxu0 %v438
    %2109 = vmatprep.subr.mxu0 0.0
    %2110 = vmatpush1.msra.mxu0 %v437
    %2111 = vmatprep.subr.mxu0 0.0
    %2112 = vmatpush1.msra.mxu0 %v436
    %2113 = vmatprep.subr.mxu0 0.0
    %2114 = vmatpush1.msra.mxu0 %v435
    %2115 = vmatprep.subr.mxu0 0.0
    %2116 = vmatpush1.msra.mxu0 %v434
    %2117 = vmatprep.subr.mxu0 0.0
    %2118 = vmatpush1.msra.mxu0 %v433
    %2119 = vmatprep.subr.mxu0 0.0
    %2120 = vmatpush1.msra.mxu0 %v432
    %2121 = vmatprep.subr.mxu0 0.0
    %2122 = vmatpush1.msra.mxu0 %v431
    %2123 = vmatprep.subr.mxu0 0.0
    %2124 = vmatpush1.msra.mxu0 %v430
    %2125 = vmatprep.subr.mxu0 0.0
    %2126 = vmatpush2.msra.mxu0 0.0
    %2127 = vmatprep.subr.mxu0 0.0
    %2128 = vmatpush2.msra.mxu0 0.0
    %2129 = vmatprep.subr.mxu0 0.0
    %2130 = vmatpush2.msra.mxu0 0.0
    %2131 = vmatprep.subr.mxu0 0.0
    %2132 = vmatpush2.msra.mxu0 0.0
    %2133 = vmatprep.subr.mxu0 0.0
    %2134 = vmatpush2.msra.mxu0 0.0
    %2135 = vmatprep.subr.mxu0 0.0
    %2136 = vmatpush2.msra.mxu0 0.0
    %2137 = vmatprep.subr.mxu0 0.0
    %2138 = vmatpush2.msra.mxu0 0.0
    %2139 = vmatprep.subr.mxu0 0.0
    %2140 = vmatpush2.msra.mxu0 0.0
    %2141 = vmatprep.subr.mxu0 0.0
    %2142 = vmatpush2.msra.mxu0 0.0
    %2143 = vmatprep.subr.mxu0 0.0
    %2144 = vmatpush2.msra.mxu0 0.0
    %2145 = vmatprep.subr.mxu0 0.0
    %2146 = vmatpush2.msra.mxu0 0.0
    %2147 = vmatprep.subr.mxu0 0.0
    %2148 = vmatpush2.msra.mxu0 0.0
    %2149 = vmatprep.subr.mxu0 0.0
    %2150 = vmatpush2.msra.mxu0 0.0
    %2151 = vmatprep.subr.mxu0 0.0
    %2152 = vmatpush2.msra.mxu0 0.0
    %2153 = vmatprep.subr.mxu0 0.0
    %2154 = vmatpush2.msra.mxu0 0.0
    %2155 = vmatprep.subr.mxu0 0.0
    %2156 = vmatpush2.msra.mxu0 0.0
    %2157 = vmatprep.mubr.f32.mxu0 0.0
    %2158 = vmatmul.mubr.f32.gmra.mxu0 %v2007
    %v2159 = vpop.f32.mrf.mxu0
    %v2160 = vadd.f32 0.0, %v2159
    %v2161 = vpop.f32.mrf.mxu0
    %2162 = vdwg.mxu0
    %v2163 = vadd.f32 %v2013, %v2160
    %v2164 = vxor.u32 %v2163, 2147483648
    %v2165 = vmul.f32 %v2164, 1.442695
    %v2166 = vpow.pop %v2165
    %v2167 = vadd.f32 %v2166, 1.0
    %v2168 = vrcp.pop %v2167
    %v2169 = vmul.f32 1.0, %v2168
    %2170 = vmatprep.subr.mxu0 0.0
    %2171 = vmatpush1.msra.mxu0 %v538
    %2172 = vmatprep.subr.mxu0 0.0
    %2173 = vmatpush1.msra.mxu0 %v537
    %2174 = vmatprep.subr.mxu0 0.0
    %2175 = vmatpush1.msra.mxu0 %v536
    %2176 = vmatprep.subr.mxu0 0.0
    %2177 = vmatpush1.msra.mxu0 %v535
    %2178 = vmatprep.subr.mxu0 0.0
    %2179 = vmatpush1.msra.mxu0 %v534
    %2180 = vmatprep.subr.mxu0 0.0
    %2181 = vmatpush1.msra.mxu0 %v533
    %2182 = vmatprep.subr.mxu0 0.0
    %2183 = vmatpush1.msra.mxu0 %v532
    %2184 = vmatprep.subr.mxu0 0.0
    %2185 = vmatpush1.msra.mxu0 %v531
    %2186 = vmatprep.subr.mxu0 0.0
    %2187 = vmatpush1.msra.mxu0 %v530
    %2188 = vmatprep.subr.mxu0 0.0
    %2189 = vmatpush1.msra.mxu0 %v529
    %2190 = vmatprep.subr.mxu0 0.0
    %2191 = vmatpush1.msra.mxu0 %v528
    %2192 = vmatprep.subr.mxu0 0.0
    %2193 = vmatpush1.msra.mxu0 %v527
    %2194 = vmatprep.subr.mxu0 0.0
    %2195 = vmatpush1.msra.mxu0 %v526
    %2196 = vmatprep.subr.mxu0 0.0
    %2197 = vmatpush1.msra.mxu0 %v525
    %2198 = vmatprep.subr.mxu0 0.0
    %2199 = vmatpush1.msra.mxu0 %v524
    %2200 = vmatprep.subr.mxu0 0.0
    %2201 = vmatpush1.msra.mxu0 %v523
    %2202 = vmatprep.subr.mxu0 0.0
    %2203 = vmatpush2.msra.mxu0 0.0
    %2204 = vmatprep.subr.mxu0 0.0
    %2205 = vmatpush2.msra.mxu0 0.0
    %2206 = vmatprep.subr.mxu0 0.0
    %2207 = vmatpush2.msra.mxu0 0.0
    %2208 = vmatprep.subr.mxu0 0.0
    %2209 = vmatpush2.msra.mxu0 0.0
    %2210 = vmatprep.subr.mxu0 0.0
    %2211 = vmatpush2.msra.mxu0 0.0
    %2212 = vmatprep.subr.mxu0 0.0
    %2213 = vmatpush2.msra.mxu0 0.0
    %2214 = vmatprep.subr.mxu0 0.0
    %2215 = vmatpush2.msra.mxu0 0.0
    %2216 = vmatprep.subr.mxu0 0.0
    %2217 = vmatpush2.msra.mxu0 0.0
    %2218 = vmatprep.subr.mxu0 0.0
    %2219 = vmatpush2.msra.mxu0 0.0
    %2220 = vmatprep.subr.mxu0 0.0
    %2221 = vmatpush2.msra.mxu0 0.0
    %2222 = vmatprep.subr.mxu0 0.0
    %2223 = vmatpush2.msra.mxu0 0.0
    %2224 = vmatprep.subr.mxu0 0.0
    %2225 = vmatpush2.msra.mxu0 0.0
    %2226 = vmatprep.subr.mxu0 0.0
    %2227 = vmatpush2.msra.mxu0 0.0
    %2228 = vmatprep.subr.mxu0 0.0
    %2229 = vmatpush2.msra.mxu0 0.0
    %2230 = vmatprep.subr.mxu0 0.0
    %2231 = vmatpush2.msra.mxu0 0.0
    %2232 = vmatprep.subr.mxu0 0.0
    %2233 = vmatpush2.msra.mxu0 0.0
    %2234 = vmatprep.mubr.f32.mxu0 0.0
    %2235 = vmatmul.mubr.f32.gmra.mxu0 %v2007
    %v2236 = vpop.f32.mrf.mxu0
    %v2237 = vadd.f32 0.0, %v2236
    %v2238 = vpop.f32.mrf.mxu0
    %2239 = vdwg.mxu0
    %v2240 = vadd.f32 %v2014, %v2237
    %v2241 = vtanh.pop %v2240
    %2242 = vmatprep.subr.mxu0 0.0
    %2243 = vmatpush1.msra.mxu0 %v626
    %2244 = vmatprep.subr.mxu0 0.0
    %2245 = vmatpush1.msra.mxu0 %v625
    %2246 = vmatprep.subr.mxu0 0.0
    %2247 = vmatpush1.msra.mxu0 %v624
    %2248 = vmatprep.subr.mxu0 0.0
    %2249 = vmatpush1.msra.mxu0 %v623
    %2250 = vmatprep.subr.mxu0 0.0
    %2251 = vmatpush1.msra.mxu0 %v622
    %2252 = vmatprep.subr.mxu0 0.0
    %2253 = vmatpush1.msra.mxu0 %v621
    %2254 = vmatprep.subr.mxu0 0.0
    %2255 = vmatpush1.msra.mxu0 %v620
    %2256 = vmatprep.subr.mxu0 0.0
    %2257 = vmatpush1.msra.mxu0 %v619
    %2258 = vmatprep.subr.mxu0 0.0
    %2259 = vmatpush1.msra.mxu0 %v618
    %2260 = vmatprep.subr.mxu0 0.0
    %2261 = vmatpush1.msra.mxu0 %v617
    %2262 = vmatprep.subr.mxu0 0.0
    %2263 = vmatpush1.msra.mxu0 %v616
    %2264 = vmatprep.subr.mxu0 0.0
    %2265 = vmatpush1.msra.mxu0 %v615
    %2266 = vmatprep.subr.mxu0 0.0
    %2267 = vmatpush1.msra.mxu0 %v614
    %2268 = vmatprep.subr.mxu0 0.0
    %2269 = vmatpush1.msra.mxu0 %v613
    %2270 = vmatprep.subr.mxu0 0.0
    %2271 = vmatpush1.msra.mxu0 %v612
    %2272 = vmatprep.subr.mxu0 0.0
    %2273 = vmatpush1.msra.mxu0 %v611
    %2274 = vmatprep.subr.mxu0 0.0
    %2275 = vmatpush2.msra.mxu0 0.0
    %2276 = vmatprep.subr.mxu0 0.0
    %2277 = vmatpush2.msra.mxu0 0.0
    %2278 = vmatprep.subr.mxu0 0.0
    %2279 = vmatpush2.msra.mxu0 0.0
    %2280 = vmatprep.subr.mxu0 0.0
    %2281 = vmatpush2.msra.mxu0 0.0
    %2282 = vmatprep.subr.mxu0 0.0
    %2283 = vmatpush2.msra.mxu0 0.0
    %2284 = vmatprep.subr.mxu0 0.0
    %2285 = vmatpush2.msra.mxu0 0.0
    %2286 = vmatprep.subr.mxu0 0.0
    %2287 = vmatpush2.msra.mxu0 0.0
    %2288 = vmatprep.subr.mxu0 0.0
    %2289 = vmatpush2.msra.mxu0 0.0
    %2290 = vmatprep.subr.mxu0 0.0
    %2291 = vmatpush2.msra.mxu0 0.0
    %2292 = vmatprep.subr.mxu0 0.0
    %2293 = vmatpush2.msra.mxu0 0.0
    %2294 = vmatprep.subr.mxu0 0.0
    %2295 = vmatpush2.msra.mxu0 0.0
    %2296 = vmatprep.subr.mxu0 0.0
    %2297 = vmatpush2.msra.mxu0 0.0
    %2298 = vmatprep.subr.mxu0 0.0
    %2299 = vmatpush2.msra.mxu0 0.0
    %2300 = vmatprep.subr.mxu0 0.0
    %2301 = vmatpush2.msra.mxu0 0.0
    %2302 = vmatprep.subr.mxu0 0.0
    %2303 = vmatpush2.msra.mxu0 0.0
    %2304 = vmatprep.subr.mxu0 0.0
    %2305 = vmatpush2.msra.mxu0 0.0
    %2306 = vmatprep.mubr.f32.mxu0 0.0
    %2307 = vmatmul.mubr.f32.gmra.mxu0 %v2007
    %v2308 = vpop.f32.mrf.mxu0
    %v2309 = vadd.f32 0.0, %v2308
    %v2310 = vpop.f32.mrf.mxu0
    %2311 = vdwg.mxu0
    %v2312 = vadd.f32 %v2015, %v2309
    %v2313 = vxor.u32 %v2312, 2147483648
    %v2314 = vmul.f32 %v2313, 1.442695
    %v2315 = vpow.pop %v2314
    %v2316 = vadd.f32 %v2315, 1.0
    %v2317 = vrcp.pop %v2316
    %v2318 = vmul.f32 1.0, %v2317
    %v2319 = vmul.f32 %v2169, %v2008
    %v2320 = vmul.f32 %v2092, %v2241
    %v2321 = vadd.f32 %v2319, %v2320
    %v2322 = vtanh.pop %v2321
    %v2323 = vmul.f32 %v2318, %v2322
    %vm2324 = vcmp.gt.s32.totalorder %v329, 5
    %v2325 = vsel %vm2324, 1, 0
    %2326 = vset.pattern.permute.xlu0 0
    %2327 = vperm.xlu0 %2326, %v2325
    %v2328 = vpop.permute.xlu0 %2327
    %vm2329 = vcmp.eq.s32.totalorder %v2328, 1
    %v2330 = vsel %vm2329, %v2323, %v2007
    %v2331 = vld [vmem:[%s2] sm:$0x1]
    %vm2332 = vcmask 57344
    %v2333 = vsel %vm2332, %v2331, 0.0
    %2334 = vadd.xlane.f32.xlu0 %v2333
    %v2335 = vpop.xlane.xlu0 %2334
    %v2336 = vrot.slane %v2335, 4
    %v2337 = vadd.f32 %v2335, %v2336
    %v2338 = vrot.slane %v2337, 2
    %v2339 = vadd.f32 %v2337, %v2338
    %v2340 = vrot.slane %v2339, 1
    %v2341 = vadd.f32 %v2339, %v2340
    %s2342 = vtos %v2341
    %v2344 = vsel %vm84, %v2331, 0
    %2346 = vmatprep.subr.mxu0 0.0
    %2347 = vmatpush1.msra.mxu0 0.0
    %2348 = vmatprep.subr.mxu0 0.0
    %2349 = vmatpush1.msra.mxu0 0.0
    %2350 = vmatprep.subr.mxu0 0.0
    %2351 = vmatpush1.msra.mxu0 0.0
    %2352 = vmatprep.subr.mxu0 0.0
    %2353 = vmatpush1.msra.mxu0 0.0
    %2354 = vmatprep.subr.mxu0 0.0
    %2355 = vmatpush1.msra.mxu0 0.0
    %2356 = vmatprep.subr.mxu0 0.0
    %2357 = vmatpush1.msra.mxu0 0.0
    %2358 = vmatprep.subr.mxu0 0.0
    %2359 = vmatpush1.msra.mxu0 0.0
    %2360 = vmatprep.subr.mxu0 0.0
    %2361 = vmatpush1.msra.mxu0 0.0
    %2362 = vmatprep.subr.mxu0 0.0
    %2363 = vmatpush1.msra.mxu0 0.0
    %2364 = vmatprep.subr.mxu0 0.0
    %2365 = vmatpush1.msra.mxu0 0.0
    %2366 = vmatprep.subr.mxu0 0.0
    %2367 = vmatpush1.msra.mxu0 0.0
    %2368 = vmatprep.subr.mxu0 0.0
    %2369 = vmatpush1.msra.mxu0 0.0
    %2370 = vmatprep.subr.mxu0 0.0
    %2371 = vmatpush1.msra.mxu0 0.0
    %2372 = vmatprep.subr.mxu0 0.0
    %2373 = vmatpush1.msra.mxu0 0.0
    %2374 = vmatprep.subr.mxu0 0.0
    %2375 = vmatpush1.msra.mxu0 0.0
    %2376 = vmatprep.subr.mxu0 0.0
    %2377 = vmatpush1.msra.mxu0 %v2330
    %2378 = vmatprep.subr.mxu0 0.0
    %2379 = vmatpush2.msra.mxu0 0.0
    %2380 = vmatprep.subr.mxu0 0.0
    %2381 = vmatpush2.msra.mxu0 0.0
    %2382 = vmatprep.subr.mxu0 0.0
    %2383 = vmatpush2.msra.mxu0 0.0
    %2384 = vmatprep.subr.mxu0 0.0
    %2385 = vmatpush2.msra.mxu0 0.0
    %2386 = vmatprep.subr.mxu0 0.0
    %2387 = vmatpush2.msra.mxu0 0.0
    %2388 = vmatprep.subr.mxu0 0.0
    %2389 = vmatpush2.msra.mxu0 0.0
    %2390 = vmatprep.subr.mxu0 0.0
    %2391 = vmatpush2.msra.mxu0 0.0
    %2392 = vmatprep.subr.mxu0 0.0
    %2393 = vmatpush2.msra.mxu0 0.0
    %2394 = vmatprep.subr.mxu0 0.0
    %2395 = vmatpush2.msra.mxu0 0.0
    %2396 = vmatprep.subr.mxu0 0.0
    %2397 = vmatpush2.msra.mxu0 0.0
    %2398 = vmatprep.subr.mxu0 0.0
    %2399 = vmatpush2.msra.mxu0 0.0
    %2400 = vmatprep.subr.mxu0 0.0
    %2401 = vmatpush2.msra.mxu0 0.0
    %2402 = vmatprep.subr.mxu0 0.0
    %2403 = vmatpush2.msra.mxu0 0.0
    %2404 = vmatprep.subr.mxu0 0.0
    %2405 = vmatpush2.msra.mxu0 0.0
    %2406 = vmatprep.subr.mxu0 0.0
    %2407 = vmatpush2.msra.mxu0 0.0
    %2408 = vmatprep.subr.mxu0 0.0
    %2409 = vmatpush2.msra.mxu0 0.0
    %2410 = vmatprep.mubr.f32.mxu0 0.0
    %2411 = vmatmul.mubr.f32.gmra.mxu0 %v2344
    %v2412 = vpop.f32.mrf.mxu0
    %v2413 = vadd.f32 0.0, %v2412
    %v2414 = vpop.f32.mrf.mxu0
    %2415 = vdwg.mxu0
    %v2416 = vld [vmem:[%s6] sm:$0xff]
    %v2417 = vld [vmem:[%s6 + $0x8] sm:$0xff]
    %v2418 = vld [vmem:[%s6 + $0x10] sm:$0xff]
    %v2419 = vld [vmem:[%s6 + $0x18] sm:$0xff]
    %v2420 = vld [vmem:[%s6 + $0x20] sm:$0xff]
    %v2421 = vld [vmem:[%s6 + $0x28] sm:$0xff]
    %v2422 = vld [vmem:[%s6 + $0x30] sm:$0xff]
    %v2423 = vld [vmem:[%s6 + $0x38] sm:$0xff]
    %v2424 = vld [vmem:[%s6 + $0x40] sm:$0xff]
    %v2425 = vld [vmem:[%s6 + $0x48] sm:$0xff]
    %v2426 = vld [vmem:[%s6 + $0x50] sm:$0xff]
    %v2427 = vld [vmem:[%s6 + $0x58] sm:$0xff]
    %v2428 = vld [vmem:[%s6 + $0x60] sm:$0xff]
    %v2429 = vld [vmem:[%s6 + $0x68] sm:$0xff]
    %v2430 = vld [vmem:[%s6 + $0x70] sm:$0xff]
    %v2431 = vld [vmem:[%s6 + $0x78] sm:$0xff]
    %v2432 = vld [vmem:[%s7] sm:$0x1]
    %v2433 = vstv %s2342
    %v2434 = vmul.f32 %v2433, %v2432
    %2435 = vmatprep.subr.mxu0 0.0
    %2436 = vmatpush1.msra.mxu0 %v2431
    %2437 = vmatprep.subr.mxu0 0.0
    %2438 = vmatpush1.msra.mxu0 %v2430
    %2439 = vmatprep.subr.mxu0 0.0
    %2440 = vmatpush1.msra.mxu0 %v2429
    %2441 = vmatprep.subr.mxu0 0.0
    %2442 = vmatpush1.msra.mxu0 %v2428
    %2443 = vmatprep.subr.mxu0 0.0
    %2444 = vmatpush1.msra.mxu0 %v2427
    %2445 = vmatprep.subr.mxu0 0.0
    %2446 = vmatpush1.msra.mxu0 %v2426
    %2447 = vmatprep.subr.mxu0 0.0
    %2448 = vmatpush1.msra.mxu0 %v2425
    %2449 = vmatprep.subr.mxu0 0.0
    %2450 = vmatpush1.msra.mxu0 %v2424
    %2451 = vmatprep.subr.mxu0 0.0
    %2452 = vmatpush1.msra.mxu0 %v2423
    %2453 = vmatprep.subr.mxu0 0.0
    %2454 = vmatpush1.msra.mxu0 %v2422
    %2455 = vmatprep.subr.mxu0 0.0
    %2456 = vmatpush1.msra.mxu0 %v2421
    %2457 = vmatprep.subr.mxu0 0.0
    %2458 = vmatpush1.msra.mxu0 %v2420
    %2459 = vmatprep.subr.mxu0 0.0
    %2460 = vmatpush1.msra.mxu0 %v2419
    %2461 = vmatprep.subr.mxu0 0.0
    %2462 = vmatpush1.msra.mxu0 %v2418
    %2463 = vmatprep.subr.mxu0 0.0
    %2464 = vmatpush1.msra.mxu0 %v2417
    %2465 = vmatprep.subr.mxu0 0.0
    %2466 = vmatpush1.msra.mxu0 %v2416
    %2467 = vmatprep.subr.mxu0 0.0
    %2468 = vmatpush2.msra.mxu0 0.0
    %2469 = vmatprep.subr.mxu0 0.0
    %2470 = vmatpush2.msra.mxu0 0.0
    %2471 = vmatprep.subr.mxu0 0.0
    %2472 = vmatpush2.msra.mxu0 0.0
    %2473 = vmatprep.subr.mxu0 0.0
    %2474 = vmatpush2.msra.mxu0 0.0
    %2475 = vmatprep.subr.mxu0 0.0
    %2476 = vmatpush2.msra.mxu0 0.0
    %2477 = vmatprep.subr.mxu0 0.0
    %2478 = vmatpush2.msra.mxu0 0.0
    %2479 = vmatprep.subr.mxu0 0.0
    %2480 = vmatpush2.msra.mxu0 0.0
    %2481 = vmatprep.subr.mxu0 0.0
    %2482 = vmatpush2.msra.mxu0 0.0
    %2483 = vmatprep.subr.mxu0 0.0
    %2484 = vmatpush2.msra.mxu0 0.0
    %2485 = vmatprep.subr.mxu0 0.0
    %2486 = vmatpush2.msra.mxu0 0.0
    %2487 = vmatprep.subr.mxu0 0.0
    %2488 = vmatpush2.msra.mxu0 0.0
    %2489 = vmatprep.subr.mxu0 0.0
    %2490 = vmatpush2.msra.mxu0 0.0
    %2491 = vmatprep.subr.mxu0 0.0
    %2492 = vmatpush2.msra.mxu0 0.0
    %2493 = vmatprep.subr.mxu0 0.0
    %2494 = vmatpush2.msra.mxu0 0.0
    %2495 = vmatprep.subr.mxu0 0.0
    %2496 = vmatpush2.msra.mxu0 0.0
    %2497 = vmatprep.subr.mxu0 0.0
    %2498 = vmatpush2.msra.mxu0 0.0
    %2499 = vmatprep.mubr.f32.mxu0 0.0
    %2500 = vmatmul.mubr.f32.gmra.mxu0 %v2413
    %v2501 = vpop.f32.mrf.mxu0
    %v2502 = vadd.f32 %v2434, %v2501
    %v2503 = vpop.f32.mrf.mxu0
    %2504 = vdwg.mxu0
    %v2505 = vld [vmem:[%s8] sm:$0xff]
    %v2506 = vld [vmem:[%s8 + $0x8] sm:$0xff]
    %v2507 = vld [vmem:[%s8 + $0x10] sm:$0xff]
    %v2508 = vld [vmem:[%s8 + $0x18] sm:$0xff]
    %v2509 = vld [vmem:[%s8 + $0x20] sm:$0xff]
    %v2510 = vld [vmem:[%s8 + $0x28] sm:$0xff]
    %v2511 = vld [vmem:[%s8 + $0x30] sm:$0xff]
    %v2512 = vld [vmem:[%s8 + $0x38] sm:$0xff]
    %v2513 = vld [vmem:[%s8 + $0x40] sm:$0xff]
    %v2514 = vld [vmem:[%s8 + $0x48] sm:$0xff]
    %v2515 = vld [vmem:[%s8 + $0x50] sm:$0xff]
    %v2516 = vld [vmem:[%s8 + $0x58] sm:$0xff]
    %v2517 = vld [vmem:[%s8 + $0x60] sm:$0xff]
    %v2518 = vld [vmem:[%s8 + $0x68] sm:$0xff]
    %v2519 = vld [vmem:[%s8 + $0x70] sm:$0xff]
    %v2520 = vld [vmem:[%s8 + $0x78] sm:$0xff]
    %v2521 = vld [vmem:[#allocation3] sm:$0x1]
    %v2522 = vmul.f32 %v2433, %v2521
    %2523 = vmatprep.subr.mxu0 0.0
    %2524 = vmatpush1.msra.mxu0 %v2520
    %2525 = vmatprep.subr.mxu0 0.0
    %2526 = vmatpush1.msra.mxu0 %v2519
    %2527 = vmatprep.subr.mxu0 0.0
    %2528 = vmatpush1.msra.mxu0 %v2518
    %2529 = vmatprep.subr.mxu0 0.0
    %2530 = vmatpush1.msra.mxu0 %v2517
    %2531 = vmatprep.subr.mxu0 0.0
    %2532 = vmatpush1.msra.mxu0 %v2516
    %2533 = vmatprep.subr.mxu0 0.0
    %2534 = vmatpush1.msra.mxu0 %v2515
    %2535 = vmatprep.subr.mxu0 0.0
    %2536 = vmatpush1.msra.mxu0 %v2514
    %2537 = vmatprep.subr.mxu0 0.0
    %2538 = vmatpush1.msra.mxu0 %v2513
    %2539 = vmatprep.subr.mxu0 0.0
    %2540 = vmatpush1.msra.mxu0 %v2512
    %2541 = vmatprep.subr.mxu0 0.0
    %2542 = vmatpush1.msra.mxu0 %v2511
    %2543 = vmatprep.subr.mxu0 0.0
    %2544 = vmatpush1.msra.mxu0 %v2510
    %2545 = vmatprep.subr.mxu0 0.0
    %2546 = vmatpush1.msra.mxu0 %v2509
    %2547 = vmatprep.subr.mxu0 0.0
    %2548 = vmatpush1.msra.mxu0 %v2508
    %2549 = vmatprep.subr.mxu0 0.0
    %2550 = vmatpush1.msra.mxu0 %v2507
    %2551 = vmatprep.subr.mxu0 0.0
    %2552 = vmatpush1.msra.mxu0 %v2506
    %2553 = vmatprep.subr.mxu0 0.0
    %2554 = vmatpush1.msra.mxu0 %v2505
    %2555 = vmatprep.subr.mxu0 0.0
    %2556 = vmatpush2.msra.mxu0 0.0
    %2557 = vmatprep.subr.mxu0 0.0
    %2558 = vmatpush2.msra.mxu0 0.0
    %2559 = vmatprep.subr.mxu0 0.0
    %2560 = vmatpush2.msra.mxu0 0.0
    %2561 = vmatprep.subr.mxu0 0.0
    %2562 = vmatpush2.msra.mxu0 0.0
    %2563 = vmatprep.subr.mxu0 0.0
    %2564 = vmatpush2.msra.mxu0 0.0
    %2565 = vmatprep.subr.mxu0 0.0
    %2566 = vmatpush2.msra.mxu0 0.0
    %2567 = vmatprep.subr.mxu0 0.0
    %2568 = vmatpush2.msra.mxu0 0.0
    %2569 = vmatprep.subr.mxu0 0.0
    %2570 = vmatpush2.msra.mxu0 0.0
    %2571 = vmatprep.subr.mxu0 0.0
    %2572 = vmatpush2.msra.mxu0 0.0
    %2573 = vmatprep.subr.mxu0 0.0
    %2574 = vmatpush2.msra.mxu0 0.0
    %2575 = vmatprep.subr.mxu0 0.0
    %2576 = vmatpush2.msra.mxu0 0.0
    %2577 = vmatprep.subr.mxu0 0.0
    %2578 = vmatpush2.msra.mxu0 0.0
    %2579 = vmatprep.subr.mxu0 0.0
    %2580 = vmatpush2.msra.mxu0 0.0
    %2581 = vmatprep.subr.mxu0 0.0
    %2582 = vmatpush2.msra.mxu0 0.0
    %2583 = vmatprep.subr.mxu0 0.0
    %2584 = vmatpush2.msra.mxu0 0.0
    %2585 = vmatprep.subr.mxu0 0.0
    %2586 = vmatpush2.msra.mxu0 0.0
    %2587 = vmatprep.mubr.f32.mxu0 0.0
    %2588 = vmatmul.mubr.f32.gmra.mxu0 %v2502
    %v2589 = vpop.f32.mrf.mxu0
    %v2590 = vadd.f32 %v2522, %v2589
    %v2591 = vpop.f32.mrf.mxu0
    %2592 = vdwg.mxu0
    %vm2593 = vcmask 0
    %2594 = vst.msk [vmem:[#allocation7] sm:$0x1] %vm2593, %v2590
    // Predicated region
    $region46: #{yield_groups_rnn_forward.1} parent=1 // pred_check
      _
    $region47: #{yield_groups_rnn_forward.1} parent=1 // pred_check_branch
      %2596 = sbr.rel (0) target = $region49
    $region48: #{yield_groups_rnn_forward.1} parent=1 // pred_region
      %s2598 = ssub.s32 16, 16
      %2599 = vsyncadd [#allocation6], %s2598
      %s2601 = sshll.u32 [#allocation7], 4
      %s2602 = int_to_ptr.vmem [resolvable:$true] %s2601
      %2604 = dma.vmem_to_hbm [thread:$0]  %s2602, 16, %s10, [#allocation6]
    $region49: #{yield_groups_rnn_forward.1} parent=1 // pred_fallthru
      _
    // Predicated region
    $region50: #{yield_groups_rnn_forward.1} parent=1 // pred_check
      _
    $region51: #{yield_groups_rnn_forward.1} parent=1 // pred_check_branch
      %2606 = sbr.rel (0) target = $region53
    $region52: #{yield_groups_rnn_forward.1} parent=1 // pred_region
      %2607 = dma.done [#allocation6], 16
    $region53: #{yield_groups_rnn_forward.1} parent=1 // pred_fallthru
      _
    %2608 = vsyncpa [#allocation5], 1
    %2609 = vsyncpa [#allocation6], 1

</llo_original>
